<compile_context>
chip_gen: v7x
topology: tpu7x:2x2x1
jax: 0.10.0
libtpu: 0.0.40
codegen_flags: <defaults>
</compile_context>

<pallas_src>
import math
from functools import partial

import jax
import jax.numpy as jnp
from jax import lax
from jax.experimental import pallas as pl
from jax.experimental.pallas import tpu as pltpu


def _encoder_layer_kernel(nh, hd, eps,
                          x_ref, pos_ref, mask_ref, k_ref, v_ref,
                          wq_ref, bq_ref, wo_ref, w1_ref, b1_ref, w2_ref,
                          vec_ref,
                          o_ref, q_scr, acc_scr):
    # vec_ref rows: 0=bo, 1=gamma1, 2=beta1, 3=b_ffn2, 4=gamma2, 5=beta2
    bf16 = jnp.bfloat16
    f32 = jnp.float32

    x_t = x_ref[...]                                     # (tq, c) f32 (residual)
    s_t = (x_t + pos_ref[...]).astype(bf16)              # q input = x + pos

    # ---- per-tile Q projection (scale folded into wq / bq in the wrapper) ----
    q_t = (jnp.dot(s_t, wq_ref[...], preferred_element_type=f32)
           + bq_ref[...]).astype(bf16)                   # (tq, c)
    for n in range(nh):                                  # head scatter (tiny, static)
        q_scr[n] = q_t[:, n * hd:(n + 1) * hd]           # (tq, hd) bf16

    acc_scr[...] = jnp.zeros_like(acc_scr)               # (tq, c) f32 out-proj acc
    mask_row = mask_ref[...]                             # (1, hw_pad) additive mask

    # ---- per-head attention; one head's (tq, hw_pad) temporaries live at once ----
    def head_body(n, carry):
        s = jnp.dot(q_scr[n], k_ref[n],                  # (tq, hd) x (hd, hw_pad)
                    preferred_element_type=f32)          # (tq, hw_pad) f32, pre-scaled
        s = s + mask_row
        m = jnp.max(s, axis=-1, keepdims=True)
        e = jnp.exp(s - m)
        l = jnp.sum(e, axis=-1, keepdims=True)
        o_h = jnp.dot(e.astype(bf16), v_ref[n],          # (tq, hw_pad) x (hw_pad, hd)
                      preferred_element_type=f32)        # (tq, hd)
        o_h = o_h * pl.reciprocal(l, approx=True)        # denom on head output (EUP)
        # fold head output directly into the output projection (head-major wo)
        acc_scr[...] += jnp.dot(o_h.astype(bf16), wo_ref[n],
                                preferred_element_type=f32)
        return carry

    lax.fori_loop(0, nh, head_body, 0, unroll=True)

    # ---- residual + LayerNorm 1 (f32) ----
    y = x_t + acc_scr[...] + vec_ref[0:1, :]
    mu = jnp.mean(y, axis=-1, keepdims=True)
    var = jnp.mean((y - mu) ** 2, axis=-1, keepdims=True)
    y = (y - mu) * lax.rsqrt(var + eps) * vec_ref[1:2, :] + vec_ref[2:3, :]

    # ---- FFN: linear1 -> relu -> linear2 -> residual -> LayerNorm 2 ----
    h1 = jnp.dot(y.astype(bf16), w1_ref[...],
                 preferred_element_type=f32) + b1_ref[...]
    h1 = jnp.maximum(h1, 0.0)
    y2 = jnp.dot(h1.astype(bf16), w2_ref[...],
                 preferred_element_type=f32) + vec_ref[3:4, :]
    z = y + y2
    mu2 = jnp.mean(z, axis=-1, keepdims=True)
    var2 = jnp.mean((z - mu2) ** 2, axis=-1, keepdims=True)
    o_ref[...] = (z - mu2) * lax.rsqrt(var2 + eps) * vec_ref[4:5, :] + vec_ref[5:6, :]


def transformer_encoder_layer_spatial(src, posemb_2d, padding_mask, params,
                                      n_heads, tq=128):
    """src: (bz, c, h, w) NCHW; posemb_2d: (bz, h, w, c); padding_mask: (bz, h, w) bool.

    tq=128 is the v5e sweet spot; use tq=256 on v6e/v7x for large hw."""
    bz, c, h, w = src.shape
    hw = h * w
    hd = c // n_heads
    d_ffn = params[10].shape[1]
    bf16, f32 = jnp.bfloat16, jnp.float32

    n_q = pl.cdiv(hw, tq)
    hw_pad = n_q * tq                        # token count padded to multiple of tq
    pad = hw_pad - hw

    x = jnp.transpose(src, (0, 2, 3, 1)).reshape(bz, hw, c).astype(f32)
    pos = posemb_2d.reshape(bz, hw, c).astype(f32)
    maskb = padding_mask.reshape(bz, hw)
    if pad:
        x = jnp.pad(x, ((0, 0), (0, pad), (0, 0)))
        pos = jnp.pad(pos, ((0, 0), (0, pad), (0, 0)))
        maskb = jnp.pad(maskb, ((0, 0), (0, pad)), constant_values=True)
    maskf = jnp.where(maskb, -1e9, 0.0).astype(f32).reshape(bz, 1, hw_pad)

    (wq, wk, wv, bq, bk, bv, wo, bo,
     g1, beta1, w1, bf1, w2, bf2, g2, beta2) = params

    # fold the 1/sqrt(hd) attention scale into the Q projection
    scale = 1.0 / math.sqrt(hd)
    wq_s = (wq * scale).astype(bf16)
    bq_s = (bq * scale).astype(f32)

    # K / V computed ONCE per batch here (bf16 operands, f32 accumulate), laid
    # out head-major so the kernel indexes heads on a leading axis.
    s_in = (x + pos).astype(bf16)
    k = jnp.einsum('btc,cd->btd', s_in, wk.astype(bf16),
                   preferred_element_type=f32) + bk
    v = jnp.einsum('btc,cd->btd', x.astype(bf16), wv.astype(bf16),
                   preferred_element_type=f32) + bv
    k_hm = jnp.transpose(k.reshape(bz, hw_pad, n_heads, hd),
                         (0, 2, 3, 1)).astype(bf16)      # (bz, nh, hd, hw_pad)
    v_hm = jnp.transpose(v.reshape(bz, hw_pad, n_heads, hd),
                         (0, 2, 1, 3)).astype(bf16)      # (bz, nh, hw_pad, hd)
    wo_hm = wo.reshape(n_heads, hd, c).astype(bf16)      # head-major out-proj

    # packed bias / LayerNorm vectors: bo, g1, beta1, b_ffn2, g2, beta2, pad, pad
    vec = jnp.concatenate([bo, g1, beta1, bf2, g2, beta2,
                           jnp.zeros((2, c), f32)], axis=0).astype(f32)  # (8, c)

    kernel = partial(_encoder_layer_kernel, n_heads, hd, 1e-5)

    def const(shape):
        return pl.BlockSpec(shape, lambda b, q: (0,) * len(shape))

    in_specs = [
        pl.BlockSpec((None, tq, c), lambda b, q: (b, q, 0)),                 # x tile
        pl.BlockSpec((None, tq, c), lambda b, q: (b, q, 0)),                 # pos tile
        pl.BlockSpec((None, 1, hw_pad), lambda b, q: (b, 0, 0)),             # key mask
        pl.BlockSpec((None, n_heads, hd, hw_pad), lambda b, q: (b, 0, 0, 0)),  # K
        pl.BlockSpec((None, n_heads, hw_pad, hd), lambda b, q: (b, 0, 0, 0)),  # V
        const((c, c)),             # wq (scaled, bf16)
        const((1, c)),             # bq (scaled, f32)
        const((n_heads, hd, c)),   # wo head-major (bf16)
        const((c, d_ffn)),         # linear1 w (bf16)
        const((1, d_ffn)),         # linear1 b (f32)
        const((d_ffn, c)),         # linear2 w (bf16)
        const((8, c)),             # packed bias / LayerNorm vectors
    ]

    # VMEM limit: ~3/4 of physical (<=48 MiB on v7x, ~96 MiB on v5e/v6e).
    try:
        vmem_phys = int(pltpu.get_tpu_info().vmem_capacity_bytes)
    except Exception:
        vmem_phys = 64 * 1024 * 1024
    vmem_limit = int(min(100 * 1024 * 1024, (vmem_phys * 3) // 4))

    per_tile_flops = (
        2 * tq * c * c              # Q projection (tile only)
        + 2 * tq * hw_pad * c       # scores over all heads
        + 2 * tq * hw_pad * c       # P·V over all heads
        + 2 * tq * c * c            # output projection (per-head accumulated)
        + 4 * tq * c * d_ffn        # FFN
    )
    cost = pl.CostEstimate(
        flops=int(bz * n_q * per_tile_flops),
        transcendentals=int(bz * n_q * n_heads * tq * hw_pad),
        bytes_accessed=int(
            4 * bz * n_q * tq * c * 2                # x, pos tiles (f32)
            + 4 * bz * hw_pad                        # mask (per batch)
            + 2 * bz * hw_pad * c * 2                # K, V bf16 (resident per batch)
            + 4 * bz * hw_pad * c                    # output f32
            + 2 * (c * c + c * c + 2 * c * d_ffn)    # bf16 weights
            + 4 * (c + d_ffn + 8 * c)                # f32 vectors
        ),
    )

    out = pl.pallas_call(
        kernel,
        out_shape=jax.ShapeDtypeStruct((bz, hw_pad, c), jnp.float32),
        grid=(bz, n_q),
        in_specs=in_specs,
        out_specs=pl.BlockSpec((None, tq, c), lambda b, q: (b, q, 0)),
        scratch_shapes=[
            pltpu.VMEM((n_heads, tq, hd), jnp.bfloat16),   # head-major Q tile
            pltpu.VMEM((tq, c), jnp.float32),              # out-proj accumulator
        ],
        compiler_params=pltpu.CompilerParams(
            dimension_semantics=("parallel", "parallel"),
            vmem_limit_bytes=vmem_limit,
        ),
        cost_estimate=cost,
    )(x, pos, maskf, k_hm, v_hm, wq_s, bq_s, wo_hm,
      w1.astype(bf16), bf1.astype(f32), w2.astype(bf16), vec)

    out = out[:, :hw, :]
    return jnp.transpose(out.reshape(bz, h, w, c), (0, 3, 1, 2))


def reference_jax(src, posemb_2d, padding_mask, params, n_heads):
    """Plain-JAX mirror of the forward pass with the same bf16-operand /
    f32-accumulate numerics as the kernel (nn.MultiheadAttention branch)."""
    bz, c, h, w = src.shape
    hw = h * w
    hd = c // n_heads
    bf16, f32 = jnp.bfloat16, jnp.float32
    (wq, wk, wv, bq, bk, bv, wo, bo,
     g1, beta1, w1, bf1, w2, bf2, g2, beta2) = params

    x = jnp.transpose(src, (0, 2, 3, 1)).reshape(bz, hw, c).astype(f32)
    pos = posemb_2d.reshape(bz, hw, c).astype(f32)
    maskf = jnp.where(padding_mask.reshape(bz, hw), -1e9, 0.0).astype(f32)

    scale = 1.0 / math.sqrt(hd)
    s = (x + pos).astype(bf16)
    q = (jnp.einsum('btc,cd->btd', s, (wq * scale).astype(bf16),
                    preferred_element_type=f32) + bq * scale).astype(bf16)
    k = (jnp.einsum('btc,cd->btd', s, wk.astype(bf16),
                    preferred_element_type=f32) + bk).astype(bf16)
    v = (jnp.einsum('btc,cd->btd', x.astype(bf16), wv.astype(bf16),
                    preferred_element_type=f32) + bv).astype(bf16)
    q = q.reshape(bz, hw, n_heads, hd)
    k = k.reshape(bz, hw, n_heads, hd)
    v = v.reshape(bz, hw, n_heads, hd)

    scores = jnp.einsum('bqnd,bknd->bnqk', q, k, preferred_element_type=f32)
    scores = scores + maskf[:, None, None, :]
    m = scores.max(-1, keepdims=True)
    e = jnp.exp(scores - m)
    p = e / e.sum(-1, keepdims=True)
    attn = jnp.einsum('bnqk,bknd->bqnd', p.astype(bf16), v,
                      preferred_element_type=f32).reshape(bz, hw, c)
    attn = jnp.einsum('bqc,cd->bqd', attn.astype(bf16), wo.astype(bf16),
                      preferred_element_type=f32) + bo

    def ln(t, g, b, eps=1e-5):
        mu = jnp.mean(t, axis=-1, keepdims=True)
        var = jnp.mean((t - mu) ** 2, axis=-1, keepdims=True)
        return (t - mu) * lax.rsqrt(var + eps) * g + b

    y = ln(x + attn, g1, beta1)
    h1 = jnp.maximum(jnp.einsum('bqc,cf->bqf', y.astype(bf16), w1.astype(bf16),
                                preferred_element_type=f32) + bf1, 0.0)
    y2 = jnp.einsum('bqf,fc->bqc', h1.astype(bf16), w2.astype(bf16),
                    preferred_element_type=f32) + bf2
    z = ln(y + y2, g2, beta2)
    return jnp.transpose(z.reshape(bz, h, w, c), (0, 3, 1, 2))


if __name__ == "__main__":
    bz, c, h, w = 2, 32, 12, 16          # hw=192 -> 2 query tiles + 64 pad tokens
    n_heads, d_ffn = 4, 64

    key = jax.random.PRNGKey(0)
    ks = jax.random.split(key, 24)
    s = 0.05
    f32 = jnp.float32
    params = (
        jax.random.normal(ks[0], (c, c), f32) * s,                 # wq
        jax.random.normal(ks[1], (c, c), f32) * s,                 # wk
        jax.random.normal(ks[2], (c, c), f32) * s,                 # wv
        jax.random.normal(ks[3], (1, c), f32) * s,                 # bq
        jax.random.normal(ks[4], (1, c), f32) * s,                 # bk
        jax.random.normal(ks[5], (1, c), f32) * s,                 # bv
        jax.random.normal(ks[6], (c, c), f32) * s,                 # out_proj w
        jax.random.normal(ks[7], (1, c), f32) * s,                 # out_proj b
        1.0 + jax.random.normal(ks[8], (1, c), f32) * 0.01,        # norm1 gamma
        jax.random.normal(ks[9], (1, c), f32) * 0.01,              # norm1 beta
        jax.random.normal(ks[10], (c, d_ffn), f32) * s,            # linear1 w
        jax.random.normal(ks[11], (1, d_ffn), f32) * s,            # linear1 b
        jax.random.normal(ks[12], (d_ffn, c), f32) * s,            # linear2 w
        jax.random.normal(ks[13], (1, c), f32) * s,                # linear2 b
        1.0 + jax.random.normal(ks[14], (1, c), f32) * 0.01,       # norm2 gamma
        jax.random.normal(ks[15], (1, c), f32) * 0.01,             # norm2 beta
    )

    src = jax.random.normal(ks[16], (bz, c, h, w), f32)            # NCHW input
    posemb_2d = jax.random.normal(ks[17], (bz, h, w, c), f32)      # 2D pos-embed
    padding_mask = jnp.zeros((bz, h, w), dtype=bool)
    padding_mask = padding_mask.at[1, :, 12:].set(True)            # some padded keys

    out = transformer_encoder_layer_spatial(src, posemb_2d, padding_mask,
                                            params, n_heads)
    out = jax.block_until_ready(out)

    ref = reference_jax(src, posemb_2d, padding_mask, params, n_heads)
    assert out.shape == (bz, c, h, w)
    assert jnp.allclose(out, ref, atol=5e-3, rtol=5e-3), "mismatch vs JAX reference"

    print("KERNEL_OK")
</pallas_src>

<mosaic_0001>
module attributes {stable_mosaic.version = 11 : i64} {
  func.func @_encoder_layer_kernel(%arg0: i32, %arg1: i32, %arg2: memref<1x128x32xf32, #tpu.memory_space<vmem>>, %arg3: memref<1x128x32xf32, #tpu.memory_space<vmem>>, %arg4: memref<1x1x256xf32, #tpu.memory_space<vmem>>, %arg5: memref<1x4x8x256xbf16, #tpu.memory_space<vmem>>, %arg6: memref<1x4x256x8xbf16, #tpu.memory_space<vmem>>, %arg7: memref<32x32xbf16, #tpu.memory_space<vmem>>, %arg8: memref<1x32xf32, #tpu.memory_space<vmem>>, %arg9: memref<4x8x32xbf16, #tpu.memory_space<vmem>>, %arg10: memref<32x64xbf16, #tpu.memory_space<vmem>>, %arg11: memref<1x64xf32, #tpu.memory_space<vmem>>, %arg12: memref<64x32xbf16, #tpu.memory_space<vmem>>, %arg13: memref<8x32xf32, #tpu.memory_space<vmem>>, %arg14: memref<1x128x32xf32, #tpu.memory_space<vmem>>, %arg15: memref<4x128x8xbf16, #tpu.memory_space<vmem>>, %arg16: memref<128x32xf32, #tpu.memory_space<vmem>>) attributes {dimension_semantics = [#tpu.dimension_semantics<parallel>, #tpu.dimension_semantics<parallel>], iteration_bounds = array<i64: 2, 2>, scalar_prefetch = 0 : i64, scratch_operands = 2 : i64, tpu.core_type = #tpu.core_type<tc>, window_params = [{transform_indices = @transform_0, window_bounds = array<i64: 1, 128, 32>}, {transform_indices = @transform_1, window_bounds = array<i64: 1, 128, 32>}, {transform_indices = @transform_2, window_bounds = array<i64: 1, 1, 256>}, {transform_indices = @transform_3, window_bounds = array<i64: 1, 4, 8, 256>}, {transform_indices = @transform_4, window_bounds = array<i64: 1, 4, 256, 8>}, {pipeline_mode = #tpu.pipeline_mode<synchronous>, transform_indices = @transform_5, window_bounds = array<i64: 32, 32>}, {pipeline_mode = #tpu.pipeline_mode<synchronous>, transform_indices = @transform_6, window_bounds = array<i64: 1, 32>}, {pipeline_mode = #tpu.pipeline_mode<synchronous>, transform_indices = @transform_7, window_bounds = array<i64: 4, 8, 32>}, {pipeline_mode = #tpu.pipeline_mode<synchronous>, transform_indices = @transform_8, window_bounds = array<i64: 32, 64>}, {pipeline_mode = #tpu.pipeline_mode<synchronous>, transform_indices = @transform_9, window_bounds = array<i64: 1, 64>}, {pipeline_mode = #tpu.pipeline_mode<synchronous>, transform_indices = @transform_10, window_bounds = array<i64: 64, 32>}, {pipeline_mode = #tpu.pipeline_mode<synchronous>, transform_indices = @transform_11, window_bounds = array<i64: 8, 32>}, {transform_indices = @transform_12, window_bounds = array<i64: 1, 128, 32>}]} {
    %c0 = arith.constant 0 : index
    %c0_0 = arith.constant 0 : index
    %c0_1 = arith.constant 0 : index
    %0 = vector.load %arg2[%c0, %c0_0, %c0_1] : memref<1x128x32xf32, #tpu.memory_space<vmem>>, vector<1x128x32xf32>
    %1 = vector.shape_cast %0 : vector<1x128x32xf32> to vector<128x32xf32>
    %c0_2 = arith.constant 0 : index
    %c0_3 = arith.constant 0 : index
    %c0_4 = arith.constant 0 : index
    %2 = vector.load %arg3[%c0_2, %c0_3, %c0_4] : memref<1x128x32xf32, #tpu.memory_space<vmem>>, vector<1x128x32xf32>
    %3 = vector.shape_cast %2 : vector<1x128x32xf32> to vector<128x32xf32>
    %4 = arith.addf %1, %3 : vector<128x32xf32>
    %5 = arith.truncf %4 : vector<128x32xf32> to vector<128x32xbf16>
    %c0_5 = arith.constant 0 : index
    %c0_6 = arith.constant 0 : index
    %6 = vector.load %arg7[%c0_5, %c0_6] : memref<32x32xbf16, #tpu.memory_space<vmem>>, vector<32x32xbf16>
    %cst = arith.constant dense<0.000000e+00> : vector<128x32xf32>
    %7 = tpu.matmul %5, %6, %cst {dimension_numbers = #tpu.dot_dimension_numbers<[1], [0], [0], [1], [0, 0, 1, 1], [], []>} : vector<128x32xbf16>, vector<32x32xbf16>, vector<128x32xf32> -> vector<128x32xf32>
    %c0_7 = arith.constant 0 : index
    %c0_8 = arith.constant 0 : index
    %8 = vector.load %arg8[%c0_7, %c0_8] : memref<1x32xf32, #tpu.memory_space<vmem>>, vector<1x32xf32>
    %9 = vector.broadcast %8 : vector<1x32xf32> to vector<128x32xf32>
    %10 = arith.addf %7, %9 : vector<128x32xf32>
    %11 = arith.truncf %10 : vector<128x32xf32> to vector<128x32xbf16>
    %12 = vector.extract_strided_slice %11 {offsets = [0, 0], sizes = [128, 8], strides = [1, 1]} : vector<128x32xbf16> to vector<128x8xbf16>
    %c0_9 = arith.constant 0 : index
    %c0_10 = arith.constant 0 : index
    %c0_11 = arith.constant 0 : index
    %13 = vector.load %arg15[%c0_9, %c0_10, %c0_11] : memref<4x128x8xbf16, #tpu.memory_space<vmem>>, vector<1x128x8xbf16>
    %14 = vector.shape_cast %13 : vector<1x128x8xbf16> to vector<128x8xbf16>
    %15 = vector.shape_cast %12 : vector<128x8xbf16> to vector<1x128x8xbf16>
    tpu.vector_store %arg15[%c0_9, %c0_10, %c0_11], %15 {strides = array<i32>} : memref<4x128x8xbf16, #tpu.memory_space<vmem>>, vector<1x128x8xbf16>,
    %16 = vector.extract_strided_slice %11 {offsets = [0, 8], sizes = [128, 8], strides = [1, 1]} : vector<128x32xbf16> to vector<128x8xbf16>
    %c1 = arith.constant 1 : index
    %c0_12 = arith.constant 0 : index
    %c0_13 = arith.constant 0 : index
    %17 = vector.load %arg15[%c1, %c0_12, %c0_13] : memref<4x128x8xbf16, #tpu.memory_space<vmem>>, vector<1x128x8xbf16>
    %18 = vector.shape_cast %17 : vector<1x128x8xbf16> to vector<128x8xbf16>
    %19 = vector.shape_cast %16 : vector<128x8xbf16> to vector<1x128x8xbf16>
    tpu.vector_store %arg15[%c1, %c0_12, %c0_13], %19 {strides = array<i32>} : memref<4x128x8xbf16, #tpu.memory_space<vmem>>, vector<1x128x8xbf16>,
    %20 = vector.extract_strided_slice %11 {offsets = [0, 16], sizes = [128, 8], strides = [1, 1]} : vector<128x32xbf16> to vector<128x8xbf16>
    %c2 = arith.constant 2 : index
    %c0_14 = arith.constant 0 : index
    %c0_15 = arith.constant 0 : index
    %21 = vector.load %arg15[%c2, %c0_14, %c0_15] : memref<4x128x8xbf16, #tpu.memory_space<vmem>>, vector<1x128x8xbf16>
    %22 = vector.shape_cast %21 : vector<1x128x8xbf16> to vector<128x8xbf16>
    %23 = vector.shape_cast %20 : vector<128x8xbf16> to vector<1x128x8xbf16>
    tpu.vector_store %arg15[%c2, %c0_14, %c0_15], %23 {strides = array<i32>} : memref<4x128x8xbf16, #tpu.memory_space<vmem>>, vector<1x128x8xbf16>,
    %24 = vector.extract_strided_slice %11 {offsets = [0, 24], sizes = [128, 8], strides = [1, 1]} : vector<128x32xbf16> to vector<128x8xbf16>
    %c3 = arith.constant 3 : index
    %c0_16 = arith.constant 0 : index
    %c0_17 = arith.constant 0 : index
    %25 = vector.load %arg15[%c3, %c0_16, %c0_17] : memref<4x128x8xbf16, #tpu.memory_space<vmem>>, vector<1x128x8xbf16>
    %26 = vector.shape_cast %25 : vector<1x128x8xbf16> to vector<128x8xbf16>
    %27 = vector.shape_cast %24 : vector<128x8xbf16> to vector<1x128x8xbf16>
    tpu.vector_store %arg15[%c3, %c0_16, %c0_17], %27 {strides = array<i32>} : memref<4x128x8xbf16, #tpu.memory_space<vmem>>, vector<1x128x8xbf16>,
    %cst_18 = arith.constant 0.000000e+00 : f32
    %28 = vector.broadcast %cst_18 : f32 to vector<128x32xf32>
    %c0_19 = arith.constant 0 : index
    %c0_20 = arith.constant 0 : index
    %29 = vector.load %arg16[%c0_19, %c0_20] : memref<128x32xf32, #tpu.memory_space<vmem>>, vector<128x32xf32>
    tpu.vector_store %arg16[%c0_19, %c0_20], %28 {strides = array<i32>} : memref<128x32xf32, #tpu.memory_space<vmem>>, vector<128x32xf32>,
    %c0_21 = arith.constant 0 : index
    %c0_22 = arith.constant 0 : index
    %c0_23 = arith.constant 0 : index
    %30 = vector.load %arg4[%c0_21, %c0_22, %c0_23] : memref<1x1x256xf32, #tpu.memory_space<vmem>>, vector<1x1x256xf32>
    %31 = vector.shape_cast %30 : vector<1x1x256xf32> to vector<1x256xf32>
    %c0_i32 = arith.constant 0 : i32
    %32 = arith.index_cast %c0_i32 : i32 to index
    %c0_24 = arith.constant 0 : index
    %c0_25 = arith.constant 0 : index
    %33 = vector.load %arg15[%32, %c0_24, %c0_25] : memref<4x128x8xbf16, #tpu.memory_space<vmem>>, vector<1x128x8xbf16>
    %34 = vector.shape_cast %33 : vector<1x128x8xbf16> to vector<128x8xbf16>
    %c0_26 = arith.constant 0 : index
    %35 = arith.index_cast %c0_i32 : i32 to index
    %c0_27 = arith.constant 0 : index
    %c0_28 = arith.constant 0 : index
    %36 = vector.load %arg5[%c0_26, %35, %c0_27, %c0_28] : memref<1x4x8x256xbf16, #tpu.memory_space<vmem>>, vector<1x1x8x256xbf16>
    %37 = vector.shape_cast %36 : vector<1x1x8x256xbf16> to vector<8x256xbf16>
    %cst_29 = arith.constant dense<0.000000e+00> : vector<128x256xf32>
    %38 = tpu.matmul %34, %37, %cst_29 {dimension_numbers = #tpu.dot_dimension_numbers<[1], [0], [0], [1], [0, 0, 1, 1], [], []>} : vector<128x8xbf16>, vector<8x256xbf16>, vector<128x256xf32> -> vector<128x256xf32>
    %39 = vector.broadcast %31 : vector<1x256xf32> to vector<128x256xf32>
    %40 = arith.addf %38, %39 : vector<128x256xf32>
    %cst_30 = arith.constant dense<0xFF800000> : vector<128xf32>
    %41 = vector.multi_reduction <maximumf>, %40, %cst_30 [1] : vector<128x256xf32> to vector<128xf32>
    %42 = vector.shape_cast %41 : vector<128xf32> to vector<128x1xf32>
    %43 = vector.broadcast %42 : vector<128x1xf32> to vector<128x256xf32>
    %44 = arith.subf %40, %43 : vector<128x256xf32>
    %45 = math.exp %44 : vector<128x256xf32>
    %cst_31 = arith.constant dense<0.000000e+00> : vector<128xf32>
    %46 = vector.multi_reduction <add>, %45, %cst_31 [1] : vector<128x256xf32> to vector<128xf32>
    %47 = vector.shape_cast %46 : vector<128xf32> to vector<128x1xf32>
    %48 = arith.truncf %45 : vector<128x256xf32> to vector<128x256xbf16>
    %c0_32 = arith.constant 0 : index
    %49 = arith.index_cast %c0_i32 : i32 to index
    %c0_33 = arith.constant 0 : index
    %c0_34 = arith.constant 0 : index
    %50 = vector.load %arg6[%c0_32, %49, %c0_33, %c0_34] : memref<1x4x256x8xbf16, #tpu.memory_space<vmem>>, vector<1x1x256x8xbf16>
    %51 = vector.shape_cast %50 : vector<1x1x256x8xbf16> to vector<256x8xbf16>
    %cst_35 = arith.constant dense<0.000000e+00> : vector<128x8xf32>
    %52 = tpu.matmul %48, %51, %cst_35 {dimension_numbers = #tpu.dot_dimension_numbers<[1], [0], [0], [1], [0, 0, 1, 1], [], []>} : vector<128x256xbf16>, vector<256x8xbf16>, vector<128x8xf32> -> vector<128x8xf32>
    %53 = tpu.reciprocal %47 {approx = true} : vector<128x1xf32> -> vector<128x1xf32>
    %54 = vector.broadcast %53 : vector<128x1xf32> to vector<128x8xf32>
    %55 = arith.mulf %52, %54 : vector<128x8xf32>
    %c0_36 = arith.constant 0 : index
    %c0_37 = arith.constant 0 : index
    %56 = vector.load %arg16[%c0_36, %c0_37] : memref<128x32xf32, #tpu.memory_space<vmem>>, vector<128x32xf32>
    %57 = arith.truncf %55 : vector<128x8xf32> to vector<128x8xbf16>
    %58 = arith.index_cast %c0_i32 : i32 to index
    %c0_38 = arith.constant 0 : index
    %c0_39 = arith.constant 0 : index
    %59 = vector.load %arg9[%58, %c0_38, %c0_39] : memref<4x8x32xbf16, #tpu.memory_space<vmem>>, vector<1x8x32xbf16>
    %60 = vector.shape_cast %59 : vector<1x8x32xbf16> to vector<8x32xbf16>
    %cst_40 = arith.constant dense<0.000000e+00> : vector<128x32xf32>
    %61 = tpu.matmul %57, %60, %cst_40 {dimension_numbers = #tpu.dot_dimension_numbers<[1], [0], [0], [1], [0, 0, 1, 1], [], []>} : vector<128x8xbf16>, vector<8x32xbf16>, vector<128x32xf32> -> vector<128x32xf32>
    %62 = arith.addf %56, %61 : vector<128x32xf32>
    %c0_41 = arith.constant 0 : index
    %c0_42 = arith.constant 0 : index
    %63 = vector.load %arg16[%c0_41, %c0_42] : memref<128x32xf32, #tpu.memory_space<vmem>>, vector<128x32xf32>
    tpu.vector_store %arg16[%c0_41, %c0_42], %62 {strides = array<i32>} : memref<128x32xf32, #tpu.memory_space<vmem>>, vector<128x32xf32>,
    %c1_i32 = arith.constant 1 : i32
    %64 = arith.index_cast %c1_i32 : i32 to index
    %c0_43 = arith.constant 0 : index
    %c0_44 = arith.constant 0 : index
    %65 = vector.load %arg15[%64, %c0_43, %c0_44] : memref<4x128x8xbf16, #tpu.memory_space<vmem>>, vector<1x128x8xbf16>
    %66 = vector.shape_cast %65 : vector<1x128x8xbf16> to vector<128x8xbf16>
    %c0_45 = arith.constant 0 : index
    %67 = arith.index_cast %c1_i32 : i32 to index
    %c0_46 = arith.constant 0 : index
    %c0_47 = arith.constant 0 : index
    %68 = vector.load %arg5[%c0_45, %67, %c0_46, %c0_47] : memref<1x4x8x256xbf16, #tpu.memory_space<vmem>>, vector<1x1x8x256xbf16>
    %69 = vector.shape_cast %68 : vector<1x1x8x256xbf16> to vector<8x256xbf16>
    %cst_48 = arith.constant dense<0.000000e+00> : vector<128x256xf32>
    %70 = tpu.matmul %66, %69, %cst_48 {dimension_numbers = #tpu.dot_dimension_numbers<[1], [0], [0], [1], [0, 0, 1, 1], [], []>} : vector<128x8xbf16>, vector<8x256xbf16>, vector<128x256xf32> -> vector<128x256xf32>
    %71 = vector.broadcast %31 : vector<1x256xf32> to vector<128x256xf32>
    %72 = arith.addf %70, %71 : vector<128x256xf32>
    %cst_49 = arith.constant dense<0xFF800000> : vector<128xf32>
    %73 = vector.multi_reduction <maximumf>, %72, %cst_49 [1] : vector<128x256xf32> to vector<128xf32>
    %74 = vector.shape_cast %73 : vector<128xf32> to vector<128x1xf32>
    %75 = vector.broadcast %74 : vector<128x1xf32> to vector<128x256xf32>
    %76 = arith.subf %72, %75 : vector<128x256xf32>
    %77 = math.exp %76 : vector<128x256xf32>
    %cst_50 = arith.constant dense<0.000000e+00> : vector<128xf32>
    %78 = vector.multi_reduction <add>, %77, %cst_50 [1] : vector<128x256xf32> to vector<128xf32>
    %79 = vector.shape_cast %78 : vector<128xf32> to vector<128x1xf32>
    %80 = arith.truncf %77 : vector<128x256xf32> to vector<128x256xbf16>
    %c0_51 = arith.constant 0 : index
    %81 = arith.index_cast %c1_i32 : i32 to index
    %c0_52 = arith.constant 0 : index
    %c0_53 = arith.constant 0 : index
    %82 = vector.load %arg6[%c0_51, %81, %c0_52, %c0_53] : memref<1x4x256x8xbf16, #tpu.memory_space<vmem>>, vector<1x1x256x8xbf16>
    %83 = vector.shape_cast %82 : vector<1x1x256x8xbf16> to vector<256x8xbf16>
    %cst_54 = arith.constant dense<0.000000e+00> : vector<128x8xf32>
    %84 = tpu.matmul %80, %83, %cst_54 {dimension_numbers = #tpu.dot_dimension_numbers<[1], [0], [0], [1], [0, 0, 1, 1], [], []>} : vector<128x256xbf16>, vector<256x8xbf16>, vector<128x8xf32> -> vector<128x8xf32>
    %85 = tpu.reciprocal %79 {approx = true} : vector<128x1xf32> -> vector<128x1xf32>
    %86 = vector.broadcast %85 : vector<128x1xf32> to vector<128x8xf32>
    %87 = arith.mulf %84, %86 : vector<128x8xf32>
    %c0_55 = arith.constant 0 : index
    %c0_56 = arith.constant 0 : index
    %88 = vector.load %arg16[%c0_55, %c0_56] : memref<128x32xf32, #tpu.memory_space<vmem>>, vector<128x32xf32>
    %89 = arith.truncf %87 : vector<128x8xf32> to vector<128x8xbf16>
    %90 = arith.index_cast %c1_i32 : i32 to index
    %c0_57 = arith.constant 0 : index
    %c0_58 = arith.constant 0 : index
    %91 = vector.load %arg9[%90, %c0_57, %c0_58] : memref<4x8x32xbf16, #tpu.memory_space<vmem>>, vector<1x8x32xbf16>
    %92 = vector.shape_cast %91 : vector<1x8x32xbf16> to vector<8x32xbf16>
    %cst_59 = arith.constant dense<0.000000e+00> : vector<128x32xf32>
    %93 = tpu.matmul %89, %92, %cst_59 {dimension_numbers = #tpu.dot_dimension_numbers<[1], [0], [0], [1], [0, 0, 1, 1], [], []>} : vector<128x8xbf16>, vector<8x32xbf16>, vector<128x32xf32> -> vector<128x32xf32>
    %94 = arith.addf %88, %93 : vector<128x32xf32>
    %c0_60 = arith.constant 0 : index
    %c0_61 = arith.constant 0 : index
    %95 = vector.load %arg16[%c0_60, %c0_61] : memref<128x32xf32, #tpu.memory_space<vmem>>, vector<128x32xf32>
    tpu.vector_store %arg16[%c0_60, %c0_61], %94 {strides = array<i32>} : memref<128x32xf32, #tpu.memory_space<vmem>>, vector<128x32xf32>,
    %c2_i32 = arith.constant 2 : i32
    %96 = arith.index_cast %c2_i32 : i32 to index
    %c0_62 = arith.constant 0 : index
    %c0_63 = arith.constant 0 : index
    %97 = vector.load %arg15[%96, %c0_62, %c0_63] : memref<4x128x8xbf16, #tpu.memory_space<vmem>>, vector<1x128x8xbf16>
    %98 = vector.shape_cast %97 : vector<1x128x8xbf16> to vector<128x8xbf16>
    %c0_64 = arith.constant 0 : index
    %99 = arith.index_cast %c2_i32 : i32 to index
    %c0_65 = arith.constant 0 : index
    %c0_66 = arith.constant 0 : index
    %100 = vector.load %arg5[%c0_64, %99, %c0_65, %c0_66] : memref<1x4x8x256xbf16, #tpu.memory_space<vmem>>, vector<1x1x8x256xbf16>
    %101 = vector.shape_cast %100 : vector<1x1x8x256xbf16> to vector<8x256xbf16>
    %cst_67 = arith.constant dense<0.000000e+00> : vector<128x256xf32>
    %102 = tpu.matmul %98, %101, %cst_67 {dimension_numbers = #tpu.dot_dimension_numbers<[1], [0], [0], [1], [0, 0, 1, 1], [], []>} : vector<128x8xbf16>, vector<8x256xbf16>, vector<128x256xf32> -> vector<128x256xf32>
    %103 = vector.broadcast %31 : vector<1x256xf32> to vector<128x256xf32>
    %104 = arith.addf %102, %103 : vector<128x256xf32>
    %cst_68 = arith.constant dense<0xFF800000> : vector<128xf32>
    %105 = vector.multi_reduction <maximumf>, %104, %cst_68 [1] : vector<128x256xf32> to vector<128xf32>
    %106 = vector.shape_cast %105 : vector<128xf32> to vector<128x1xf32>
    %107 = vector.broadcast %106 : vector<128x1xf32> to vector<128x256xf32>
    %108 = arith.subf %104, %107 : vector<128x256xf32>
    %109 = math.exp %108 : vector<128x256xf32>
    %cst_69 = arith.constant dense<0.000000e+00> : vector<128xf32>
    %110 = vector.multi_reduction <add>, %109, %cst_69 [1] : vector<128x256xf32> to vector<128xf32>
    %111 = vector.shape_cast %110 : vector<128xf32> to vector<128x1xf32>
    %112 = arith.truncf %109 : vector<128x256xf32> to vector<128x256xbf16>
    %c0_70 = arith.constant 0 : index
    %113 = arith.index_cast %c2_i32 : i32 to index
    %c0_71 = arith.constant 0 : index
    %c0_72 = arith.constant 0 : index
    %114 = vector.load %arg6[%c0_70, %113, %c0_71, %c0_72] : memref<1x4x256x8xbf16, #tpu.memory_space<vmem>>, vector<1x1x256x8xbf16>
    %115 = vector.shape_cast %114 : vector<1x1x256x8xbf16> to vector<256x8xbf16>
    %cst_73 = arith.constant dense<0.000000e+00> : vector<128x8xf32>
    %116 = tpu.matmul %112, %115, %cst_73 {dimension_numbers = #tpu.dot_dimension_numbers<[1], [0], [0], [1], [0, 0, 1, 1], [], []>} : vector<128x256xbf16>, vector<256x8xbf16>, vector<128x8xf32> -> vector<128x8xf32>
    %117 = tpu.reciprocal %111 {approx = true} : vector<128x1xf32> -> vector<128x1xf32>
    %118 = vector.broadcast %117 : vector<128x1xf32> to vector<128x8xf32>
    %119 = arith.mulf %116, %118 : vector<128x8xf32>
    %c0_74 = arith.constant 0 : index
    %c0_75 = arith.constant 0 : index
    %120 = vector.load %arg16[%c0_74, %c0_75] : memref<128x32xf32, #tpu.memory_space<vmem>>, vector<128x32xf32>
    %121 = arith.truncf %119 : vector<128x8xf32> to vector<128x8xbf16>
    %122 = arith.index_cast %c2_i32 : i32 to index
    %c0_76 = arith.constant 0 : index
    %c0_77 = arith.constant 0 : index
    %123 = vector.load %arg9[%122, %c0_76, %c0_77] : memref<4x8x32xbf16, #tpu.memory_space<vmem>>, vector<1x8x32xbf16>
    %124 = vector.shape_cast %123 : vector<1x8x32xbf16> to vector<8x32xbf16>
    %cst_78 = arith.constant dense<0.000000e+00> : vector<128x32xf32>
    %125 = tpu.matmul %121, %124, %cst_78 {dimension_numbers = #tpu.dot_dimension_numbers<[1], [0], [0], [1], [0, 0, 1, 1], [], []>} : vector<128x8xbf16>, vector<8x32xbf16>, vector<128x32xf32> -> vector<128x32xf32>
    %126 = arith.addf %120, %125 : vector<128x32xf32>
    %c0_79 = arith.constant 0 : index
    %c0_80 = arith.constant 0 : index
    %127 = vector.load %arg16[%c0_79, %c0_80] : memref<128x32xf32, #tpu.memory_space<vmem>>, vector<128x32xf32>
    tpu.vector_store %arg16[%c0_79, %c0_80], %126 {strides = array<i32>} : memref<128x32xf32, #tpu.memory_space<vmem>>, vector<128x32xf32>,
    %c3_i32 = arith.constant 3 : i32
    %128 = arith.index_cast %c3_i32 : i32 to index
    %c0_81 = arith.constant 0 : index
    %c0_82 = arith.constant 0 : index
    %129 = vector.load %arg15[%128, %c0_81, %c0_82] : memref<4x128x8xbf16, #tpu.memory_space<vmem>>, vector<1x128x8xbf16>
    %130 = vector.shape_cast %129 : vector<1x128x8xbf16> to vector<128x8xbf16>
    %c0_83 = arith.constant 0 : index
    %131 = arith.index_cast %c3_i32 : i32 to index
    %c0_84 = arith.constant 0 : index
    %c0_85 = arith.constant 0 : index
    %132 = vector.load %arg5[%c0_83, %131, %c0_84, %c0_85] : memref<1x4x8x256xbf16, #tpu.memory_space<vmem>>, vector<1x1x8x256xbf16>
    %133 = vector.shape_cast %132 : vector<1x1x8x256xbf16> to vector<8x256xbf16>
    %cst_86 = arith.constant dense<0.000000e+00> : vector<128x256xf32>
    %134 = tpu.matmul %130, %133, %cst_86 {dimension_numbers = #tpu.dot_dimension_numbers<[1], [0], [0], [1], [0, 0, 1, 1], [], []>} : vector<128x8xbf16>, vector<8x256xbf16>, vector<128x256xf32> -> vector<128x256xf32>
    %135 = vector.broadcast %31 : vector<1x256xf32> to vector<128x256xf32>
    %136 = arith.addf %134, %135 : vector<128x256xf32>
    %cst_87 = arith.constant dense<0xFF800000> : vector<128xf32>
    %137 = vector.multi_reduction <maximumf>, %136, %cst_87 [1] : vector<128x256xf32> to vector<128xf32>
    %138 = vector.shape_cast %137 : vector<128xf32> to vector<128x1xf32>
    %139 = vector.broadcast %138 : vector<128x1xf32> to vector<128x256xf32>
    %140 = arith.subf %136, %139 : vector<128x256xf32>
    %141 = math.exp %140 : vector<128x256xf32>
    %cst_88 = arith.constant dense<0.000000e+00> : vector<128xf32>
    %142 = vector.multi_reduction <add>, %141, %cst_88 [1] : vector<128x256xf32> to vector<128xf32>
    %143 = vector.shape_cast %142 : vector<128xf32> to vector<128x1xf32>
    %144 = arith.truncf %141 : vector<128x256xf32> to vector<128x256xbf16>
    %c0_89 = arith.constant 0 : index
    %145 = arith.index_cast %c3_i32 : i32 to index
    %c0_90 = arith.constant 0 : index
    %c0_91 = arith.constant 0 : index
    %146 = vector.load %arg6[%c0_89, %145, %c0_90, %c0_91] : memref<1x4x256x8xbf16, #tpu.memory_space<vmem>>, vector<1x1x256x8xbf16>
    %147 = vector.shape_cast %146 : vector<1x1x256x8xbf16> to vector<256x8xbf16>
    %cst_92 = arith.constant dense<0.000000e+00> : vector<128x8xf32>
    %148 = tpu.matmul %144, %147, %cst_92 {dimension_numbers = #tpu.dot_dimension_numbers<[1], [0], [0], [1], [0, 0, 1, 1], [], []>} : vector<128x256xbf16>, vector<256x8xbf16>, vector<128x8xf32> -> vector<128x8xf32>
    %149 = tpu.reciprocal %143 {approx = true} : vector<128x1xf32> -> vector<128x1xf32>
    %150 = vector.broadcast %149 : vector<128x1xf32> to vector<128x8xf32>
    %151 = arith.mulf %148, %150 : vector<128x8xf32>
    %c0_93 = arith.constant 0 : index
    %c0_94 = arith.constant 0 : index
    %152 = vector.load %arg16[%c0_93, %c0_94] : memref<128x32xf32, #tpu.memory_space<vmem>>, vector<128x32xf32>
    %153 = arith.truncf %151 : vector<128x8xf32> to vector<128x8xbf16>
    %154 = arith.index_cast %c3_i32 : i32 to index
    %c0_95 = arith.constant 0 : index
    %c0_96 = arith.constant 0 : index
    %155 = vector.load %arg9[%154, %c0_95, %c0_96] : memref<4x8x32xbf16, #tpu.memory_space<vmem>>, vector<1x8x32xbf16>
    %156 = vector.shape_cast %155 : vector<1x8x32xbf16> to vector<8x32xbf16>
    %cst_97 = arith.constant dense<0.000000e+00> : vector<128x32xf32>
    %157 = tpu.matmul %153, %156, %cst_97 {dimension_numbers = #tpu.dot_dimension_numbers<[1], [0], [0], [1], [0, 0, 1, 1], [], []>} : vector<128x8xbf16>, vector<8x32xbf16>, vector<128x32xf32> -> vector<128x32xf32>
    %158 = arith.addf %152, %157 : vector<128x32xf32>
    %c0_98 = arith.constant 0 : index
    %c0_99 = arith.constant 0 : index
    %159 = vector.load %arg16[%c0_98, %c0_99] : memref<128x32xf32, #tpu.memory_space<vmem>>, vector<128x32xf32>
    tpu.vector_store %arg16[%c0_98, %c0_99], %158 {strides = array<i32>} : memref<128x32xf32, #tpu.memory_space<vmem>>, vector<128x32xf32>,
    %c4_i32 = arith.constant 4 : i32
    %c0_100 = arith.constant 0 : index
    %c0_101 = arith.constant 0 : index
    %160 = vector.load %arg16[%c0_100, %c0_101] : memref<128x32xf32, #tpu.memory_space<vmem>>, vector<128x32xf32>
    %161 = arith.addf %1, %160 : vector<128x32xf32>
    %c0_102 = arith.constant 0 : index
    %c0_103 = arith.constant 0 : index
    %162 = vector.load %arg13[%c0_102, %c0_103] : memref<8x32xf32, #tpu.memory_space<vmem>>, vector<1x32xf32>
    %163 = vector.broadcast %162 : vector<1x32xf32> to vector<128x32xf32>
    %164 = arith.addf %161, %163 : vector<128x32xf32>
    %cst_104 = arith.constant dense<0.000000e+00> : vector<128xf32>
    %165 = vector.multi_reduction <add>, %164, %cst_104 [1] : vector<128x32xf32> to vector<128xf32>
    %166 = vector.shape_cast %165 : vector<128xf32> to vector<128x1xf32>
    %cst_105 = arith.constant 3.200000e+01 : f32
    %167 = vector.broadcast %cst_105 : f32 to vector<128x1xf32>
    %168 = arith.divf %166, %167 : vector<128x1xf32>
    %169 = vector.broadcast %168 : vector<128x1xf32> to vector<128x32xf32>
    %170 = arith.subf %164, %169 : vector<128x32xf32>
    %171 = arith.mulf %170, %170 : vector<128x32xf32>
    %cst_106 = arith.constant dense<0.000000e+00> : vector<128xf32>
    %172 = vector.multi_reduction <add>, %171, %cst_106 [1] : vector<128x32xf32> to vector<128xf32>
    %173 = vector.shape_cast %172 : vector<128xf32> to vector<128x1xf32>
    %cst_107 = arith.constant 3.200000e+01 : f32
    %174 = vector.broadcast %cst_107 : f32 to vector<128x1xf32>
    %175 = arith.divf %173, %174 : vector<128x1xf32>
    %176 = vector.broadcast %168 : vector<128x1xf32> to vector<128x32xf32>
    %177 = arith.subf %164, %176 : vector<128x32xf32>
    %cst_108 = arith.constant 9.99999974E-6 : f32
    %178 = vector.broadcast %cst_108 : f32 to vector<128x1xf32>
    %179 = arith.addf %175, %178 : vector<128x1xf32>
    %180 = math.rsqrt %179 : vector<128x1xf32>
    %181 = vector.broadcast %180 : vector<128x1xf32> to vector<128x32xf32>
    %182 = arith.mulf %177, %181 : vector<128x32xf32>
    %c1_109 = arith.constant 1 : index
    %c0_110 = arith.constant 0 : index
    %183 = vector.load %arg13[%c1_109, %c0_110] : memref<8x32xf32, #tpu.memory_space<vmem>>, vector<1x32xf32>
    %184 = vector.broadcast %183 : vector<1x32xf32> to vector<128x32xf32>
    %185 = arith.mulf %182, %184 : vector<128x32xf32>
    %c2_111 = arith.constant 2 : index
    %c0_112 = arith.constant 0 : index
    %186 = vector.load %arg13[%c2_111, %c0_112] : memref<8x32xf32, #tpu.memory_space<vmem>>, vector<1x32xf32>
    %187 = vector.broadcast %186 : vector<1x32xf32> to vector<128x32xf32>
    %188 = arith.addf %185, %187 : vector<128x32xf32>
    %189 = arith.truncf %188 : vector<128x32xf32> to vector<128x32xbf16>
    %c0_113 = arith.constant 0 : index
    %c0_114 = arith.constant 0 : index
    %190 = vector.load %arg10[%c0_113, %c0_114] : memref<32x64xbf16, #tpu.memory_space<vmem>>, vector<32x64xbf16>
    %cst_115 = arith.constant dense<0.000000e+00> : vector<128x64xf32>
    %191 = tpu.matmul %189, %190, %cst_115 {dimension_numbers = #tpu.dot_dimension_numbers<[1], [0], [0], [1], [0, 0, 1, 1], [], []>} : vector<128x32xbf16>, vector<32x64xbf16>, vector<128x64xf32> -> vector<128x64xf32>
    %c0_116 = arith.constant 0 : index
    %c0_117 = arith.constant 0 : index
    %192 = vector.load %arg11[%c0_116, %c0_117] : memref<1x64xf32, #tpu.memory_space<vmem>>, vector<1x64xf32>
    %193 = vector.broadcast %192 : vector<1x64xf32> to vector<128x64xf32>
    %194 = arith.addf %191, %193 : vector<128x64xf32>
    %cst_118 = arith.constant 0.000000e+00 : f32
    %195 = vector.broadcast %cst_118 : f32 to vector<128x64xf32>
    %196 = arith.maximumf %194, %195 : vector<128x64xf32>
    %197 = arith.truncf %196 : vector<128x64xf32> to vector<128x64xbf16>
    %c0_119 = arith.constant 0 : index
    %c0_120 = arith.constant 0 : index
    %198 = vector.load %arg12[%c0_119, %c0_120] : memref<64x32xbf16, #tpu.memory_space<vmem>>, vector<64x32xbf16>
    %cst_121 = arith.constant dense<0.000000e+00> : vector<128x32xf32>
    %199 = tpu.matmul %197, %198, %cst_121 {dimension_numbers = #tpu.dot_dimension_numbers<[1], [0], [0], [1], [0, 0, 1, 1], [], []>} : vector<128x64xbf16>, vector<64x32xbf16>, vector<128x32xf32> -> vector<128x32xf32>
    %c3_122 = arith.constant 3 : index
    %c0_123 = arith.constant 0 : index
    %200 = vector.load %arg13[%c3_122, %c0_123] : memref<8x32xf32, #tpu.memory_space<vmem>>, vector<1x32xf32>
    %201 = vector.broadcast %200 : vector<1x32xf32> to vector<128x32xf32>
    %202 = arith.addf %199, %201 : vector<128x32xf32>
    %203 = arith.addf %188, %202 : vector<128x32xf32>
    %cst_124 = arith.constant dense<0.000000e+00> : vector<128xf32>
    %204 = vector.multi_reduction <add>, %203, %cst_124 [1] : vector<128x32xf32> to vector<128xf32>
    %205 = vector.shape_cast %204 : vector<128xf32> to vector<128x1xf32>
    %cst_125 = arith.constant 3.200000e+01 : f32
    %206 = vector.broadcast %cst_125 : f32 to vector<128x1xf32>
    %207 = arith.divf %205, %206 : vector<128x1xf32>
    %208 = vector.broadcast %207 : vector<128x1xf32> to vector<128x32xf32>
    %209 = arith.subf %203, %208 : vector<128x32xf32>
    %210 = arith.mulf %209, %209 : vector<128x32xf32>
    %cst_126 = arith.constant dense<0.000000e+00> : vector<128xf32>
    %211 = vector.multi_reduction <add>, %210, %cst_126 [1] : vector<128x32xf32> to vector<128xf32>
    %212 = vector.shape_cast %211 : vector<128xf32> to vector<128x1xf32>
    %cst_127 = arith.constant 3.200000e+01 : f32
    %213 = vector.broadcast %cst_127 : f32 to vector<128x1xf32>
    %214 = arith.divf %212, %213 : vector<128x1xf32>
    %215 = vector.broadcast %207 : vector<128x1xf32> to vector<128x32xf32>
    %216 = arith.subf %203, %215 : vector<128x32xf32>
    %cst_128 = arith.constant 9.99999974E-6 : f32
    %217 = vector.broadcast %cst_128 : f32 to vector<128x1xf32>
    %218 = arith.addf %214, %217 : vector<128x1xf32>
    %219 = math.rsqrt %218 : vector<128x1xf32>
    %220 = vector.broadcast %219 : vector<128x1xf32> to vector<128x32xf32>
    %221 = arith.mulf %216, %220 : vector<128x32xf32>
    %c4 = arith.constant 4 : index
    %c0_129 = arith.constant 0 : index
    %222 = vector.load %arg13[%c4, %c0_129] : memref<8x32xf32, #tpu.memory_space<vmem>>, vector<1x32xf32>
    %223 = vector.broadcast %222 : vector<1x32xf32> to vector<128x32xf32>
    %224 = arith.mulf %221, %223 : vector<128x32xf32>
    %c5 = arith.constant 5 : index
    %c0_130 = arith.constant 0 : index
    %225 = vector.load %arg13[%c5, %c0_130] : memref<8x32xf32, #tpu.memory_space<vmem>>, vector<1x32xf32>
    %226 = vector.broadcast %225 : vector<1x32xf32> to vector<128x32xf32>
    %227 = arith.addf %224, %226 : vector<128x32xf32>
    %c0_131 = arith.constant 0 : index
    %c0_132 = arith.constant 0 : index
    %c0_133 = arith.constant 0 : index
    %228 = vector.load %arg14[%c0_131, %c0_132, %c0_133] : memref<1x128x32xf32, #tpu.memory_space<vmem>>, vector<1x128x32xf32>
    %229 = vector.shape_cast %228 : vector<1x128x32xf32> to vector<128x32xf32>
    %230 = vector.shape_cast %227 : vector<128x32xf32> to vector<1x128x32xf32>
    tpu.vector_store %arg14[%c0_131, %c0_132, %c0_133], %230 {strides = array<i32>} : memref<1x128x32xf32, #tpu.memory_space<vmem>>, vector<1x128x32xf32>,
    return
  }
  func.func @transform_0(%arg0: i32, %arg1: i32) -> (i32, i32, i32) {
    %c0_i32 = arith.constant 0 : i32
    %c0_i32_0 = arith.constant 0 : i32
    return %arg0, %arg1, %c0_i32 : i32, i32, i32
  }
  func.func @transform_1(%arg0: i32, %arg1: i32) -> (i32, i32, i32) {
    %c0_i32 = arith.constant 0 : i32
    %c0_i32_0 = arith.constant 0 : i32
    return %arg0, %arg1, %c0_i32 : i32, i32, i32
  }
  func.func @transform_2(%arg0: i32, %arg1: i32) -> (i32, i32, i32) {
    %c0_i32 = arith.constant 0 : i32
    %c0_i32_0 = arith.constant 0 : i32
    %c0_i32_1 = arith.constant 0 : i32
    return %arg0, %c0_i32, %c0_i32_0 : i32, i32, i32
  }
  func.func @transform_3(%arg0: i32, %arg1: i32) -> (i32, i32, i32, i32) {
    %c0_i32 = arith.constant 0 : i32
    %c0_i32_0 = arith.constant 0 : i32
    %c0_i32_1 = arith.constant 0 : i32
    %c0_i32_2 = arith.constant 0 : i32
    return %arg0, %c0_i32, %c0_i32_0, %c0_i32_1 : i32, i32, i32, i32
  }
  func.func @transform_4(%arg0: i32, %arg1: i32) -> (i32, i32, i32, i32) {
    %c0_i32 = arith.constant 0 : i32
    %c0_i32_0 = arith.constant 0 : i32
    %c0_i32_1 = arith.constant 0 : i32
    %c0_i32_2 = arith.constant 0 : i32
    return %arg0, %c0_i32, %c0_i32_0, %c0_i32_1 : i32, i32, i32, i32
  }
  func.func @transform_5(%arg0: i32, %arg1: i32) -> (i32, i32) {
    %c0_i32 = arith.constant 0 : i32
    %c0_i32_0 = arith.constant 0 : i32
    %c0_i32_1 = arith.constant 0 : i32
    return %c0_i32, %c0_i32_0 : i32, i32
  }
  func.func @transform_6(%arg0: i32, %arg1: i32) -> (i32, i32) {
    %c0_i32 = arith.constant 0 : i32
    %c0_i32_0 = arith.constant 0 : i32
    %c0_i32_1 = arith.constant 0 : i32
    return %c0_i32, %c0_i32_0 : i32, i32
  }
  func.func @transform_7(%arg0: i32, %arg1: i32) -> (i32, i32, i32) {
    %c0_i32 = arith.constant 0 : i32
    %c0_i32_0 = arith.constant 0 : i32
    %c0_i32_1 = arith.constant 0 : i32
    %c0_i32_2 = arith.constant 0 : i32
    return %c0_i32, %c0_i32_0, %c0_i32_1 : i32, i32, i32
  }
  func.func @transform_8(%arg0: i32, %arg1: i32) -> (i32, i32) {
    %c0_i32 = arith.constant 0 : i32
    %c0_i32_0 = arith.constant 0 : i32
    %c0_i32_1 = arith.constant 0 : i32
    return %c0_i32, %c0_i32_0 : i32, i32
  }
  func.func @transform_9(%arg0: i32, %arg1: i32) -> (i32, i32) {
    %c0_i32 = arith.constant 0 : i32
    %c0_i32_0 = arith.constant 0 : i32
    %c0_i32_1 = arith.constant 0 : i32
    return %c0_i32, %c0_i32_0 : i32, i32
  }
  func.func @transform_10(%arg0: i32, %arg1: i32) -> (i32, i32) {
    %c0_i32 = arith.constant 0 : i32
    %c0_i32_0 = arith.constant 0 : i32
    %c0_i32_1 = arith.constant 0 : i32
    return %c0_i32, %c0_i32_0 : i32, i32
  }
  func.func @transform_11(%arg0: i32, %arg1: i32) -> (i32, i32) {
    %c0_i32 = arith.constant 0 : i32
    %c0_i32_0 = arith.constant 0 : i32
    %c0_i32_1 = arith.constant 0 : i32
    return %c0_i32, %c0_i32_0 : i32, i32
  }
  func.func @transform_12(%arg0: i32, %arg1: i32) -> (i32, i32, i32) {
    %c0_i32 = arith.constant 0 : i32
    %c0_i32_0 = arith.constant 0 : i32
    return %arg0, %arg1, %c0_i32 : i32, i32, i32
  }
}

</mosaic_0001>

<llo_original>
// kernel: tpu_custom_call.1
$region0: #{tpu_custom_call.1}
  #allocation0 [shape = 'u32[]', space=smem, size = 0x4, offset = 0x4, fixed_abs, tag = 'smem constant byte address 0x4 - core index']
  #allocation1 [shape = 'u32[144,128]{1,0:T(1,128)}', space=vmem, size = 0x12000, scoped, tag = 'internal scratch']
  #allocation2 [shape = 'bf16[4,128,8]{2,1,0:T(16,128)(2,1)}', space=vmem, size = 0x20000, scoped, tag = 'scratch operand']
  #allocation3 [shape = 'f32[128,32]{1,0:T(8,128)}', space=vmem, size = 0x10000, scoped, tag = 'scratch operand']
  %s0 = inlined_call_operand.vmem [shape: f32[2,256,32], index: 0, kind: input, shape index: {}]
  %s1 = inlined_call_operand.vmem [shape: f32[2,256,32], index: 1, kind: input, shape index: {}]
  %s2 = inlined_call_operand.vmem [shape: f32[2,1,256], index: 2, kind: input, shape index: {}]
  %s3 = inlined_call_operand.vmem [shape: bf16[2,4,8,256], index: 3, kind: input, shape index: {}]
  %s4 = inlined_call_operand.vmem [shape: bf16[2,4,256,8], index: 4, kind: input, shape index: {}]
  %s5 = inlined_call_operand.vmem [shape: bf16[32,32], index: 5, kind: input, shape index: {}]
  %s6 = inlined_call_operand.vmem [shape: f32[1,32], index: 6, kind: input, shape index: {}]
  %s7 = inlined_call_operand.vmem [shape: bf16[4,8,32], index: 7, kind: input, shape index: {}]
  %s8 = inlined_call_operand.vmem [shape: bf16[32,64], index: 8, kind: input, shape index: {}]
  %s9 = inlined_call_operand.vmem [shape: f32[1,64], index: 9, kind: input, shape index: {}]
  %s10 = inlined_call_operand.vmem [shape: bf16[64,32], index: 10, kind: input, shape index: {}]
  %s11 = inlined_call_operand.vmem [shape: f32[8,32], index: 11, kind: input, shape index: {}]
  %s12 = inlined_call_operand.vmem [shape: f32[2,256,32], index: 12, kind: output, shape index: {}]
  %s13 = sld [smem:[#allocation0]]
  $region81: #{tpu_custom_call.1} parent=0
    _
  %s15 = ssub.s32 1, %s13
  %s16 = scalar_select 0, %s15, %s13
  loop: start=0, step=1, limit=6
  $region2: #{tpu_custom_call.1} parent=0 // loop_pre_header
    _
  $region3: #{tpu_custom_call.1} parent=0 // loop_header
    %s18 = sphi 0, %s22
    %p19 = scmp.ge.s32.totalorder %s18, 6
    %s25 = sphi 0, %s37
    %s26 = sphi 0, %s33
    %s27 = sphi 0, %s25
    %s28 = sphi 0, %s26
    %s29 = sphi 0, %s27
    %s30 = sphi 0, %s28
    %s42 = sphi 0, %s44
    %s45 = sphi 0, %s42
    %s46 = sphi 0, %s45
    %s62 = sphi 0, %s46
    %s70 = sphi 0, %s72
    %s73 = sphi 0, %s70
    %s74 = sphi 0, %s73
    %s90 = sphi 0, %s74
    %s96 = sphi 0, %s98
    %s99 = sphi 0, %s96
    %s100 = sphi 0, %s99
    %s116 = sphi 0, %s100
    %s122 = sphi 0, %s124
    %s125 = sphi 0, %s122
    %s126 = sphi 0, %s125
    %s142 = sphi 0, %s126
    %s148 = sphi 0, %s150
    %s151 = sphi 0, %s148
    %s152 = sphi 0, %s151
    %s168 = sphi 0, %s152
    %s172 = sphi 0, %s172
    %s174 = sphi 0, %s172
    %s175 = sphi 0, %s174
    %s189 = sphi 0, %s175
    %s193 = sphi 0, %s193
    %s195 = sphi 0, %s193
    %s196 = sphi 0, %s195
    %s210 = sphi 0, %s196
    %s214 = sphi 0, %s214
    %s216 = sphi 0, %s214
    %s217 = sphi 0, %s216
    %s231 = sphi 0, %s217
    %s235 = sphi 0, %s235
    %s237 = sphi 0, %s235
    %s238 = sphi 0, %s237
    %s252 = sphi 0, %s238
    %s256 = sphi 0, %s256
    %s258 = sphi 0, %s256
    %s259 = sphi 0, %s258
    %s273 = sphi 0, %s259
    %s277 = sphi 0, %s277
    %s279 = sphi 0, %s277
    %s280 = sphi 0, %s279
    %s294 = sphi 0, %s280
    %s298 = sphi 0, %s298
    %s300 = sphi 0, %s298
    %s301 = sphi 0, %s300
    %s315 = sphi 0, %s301
    %s323 = sphi 0, %s325
    %s326 = sphi 0, %s323
    %s327 = sphi 0, %s326
    %s343 = sphi 0, %s327
  $region4: #{tpu_custom_call.1} parent=0 // loop_header_branch
    %21 = sbr.rel (%p19) target = $region8
  $region5: #{tpu_custom_call.1} parent=0 // loop_body
    %s23 = ssub.s32 %s18, 1
    %s24 = ssub.s32 %s18, 2
    %s31 = sadd.s32 1, %s26
    %p32 = scmp.ge.s32.totalorder %s31, 2
    %s33 = scalar_select %p32, 0, %s31
    %s34 = sadd.s32 1, %s25
    %s35 = scalar_select %p32, %s34, %s25
    %p36 = scmp.ge.s32.totalorder %s35, 2
    %s37 = scalar_select %p36, 0, %s35
    %s38 = ssub.s32 %s25, %s37
    %s39 = ssub.s32 %s26, %s33
    %s40 = sor.u32 %s38, %s39
    %p41 = scmp.eq.s32.totalorder %s40, 0
    %s43 = sadd.s32 %s42, 1
    %s44 = scalar_select %p41, %s42, %s43
    %p47 = pneg %p41
    %p48 = scmp.eq.s32.totalorder %s18, 3
    %p49 = por %p47, %p48
    %p50 = scmp.ne.s32.totalorder %s42, %s45
    %p51 = scmp.eq.s32.totalorder %s18, 0
    %p52 = por %p50, %p51
    %p53 = scmp.ne.s32.totalorder %s42, %s45
    %p54 = scmp.eq.s32.totalorder %s23, 3
    %p55 = por %p53, %p54
    %p56 = scmp.ne.s32.totalorder %s45, %s46
    %p57 = scmp.eq.s32.totalorder %s23, 0
    %p58 = por %p56, %p57
    %p59 = scmp.ne.s32.totalorder %s45, %s46
    %p60 = scmp.eq.s32.totalorder %s24, 3
    %p61 = por %p59, %p60
    %p63 = scmp.ne.s32.totalorder %s46, %s62
    %p64 = scmp.eq.s32.totalorder %s24, 0
    %p65 = por %p63, %p64
    %s66 = ssub.s32 %s25, %s37
    %s67 = ssub.s32 %s26, %s33
    %s68 = sor.u32 %s66, %s67
    %p69 = scmp.eq.s32.totalorder %s68, 0
    %s71 = sadd.s32 %s70, 1
    %s72 = scalar_select %p69, %s70, %s71
    %p75 = pneg %p69
    %p76 = scmp.eq.s32.totalorder %s18, 3
    %p77 = por %p75, %p76
    %p78 = scmp.ne.s32.totalorder %s70, %s73
    %p79 = scmp.eq.s32.totalorder %s18, 0
    %p80 = por %p78, %p79
    %p81 = scmp.ne.s32.totalorder %s70, %s73
    %p82 = scmp.eq.s32.totalorder %s23, 3
    %p83 = por %p81, %p82
    %p84 = scmp.ne.s32.totalorder %s73, %s74
    %p85 = scmp.eq.s32.totalorder %s23, 0
    %p86 = por %p84, %p85
    %p87 = scmp.ne.s32.totalorder %s73, %s74
    %p88 = scmp.eq.s32.totalorder %s24, 3
    %p89 = por %p87, %p88
    %p91 = scmp.ne.s32.totalorder %s74, %s90
    %p92 = scmp.eq.s32.totalorder %s24, 0
    %p93 = por %p91, %p92
    %s94 = ssub.s32 %s25, %s37
    %p95 = scmp.eq.s32.totalorder %s94, 0
    %s97 = sadd.s32 %s96, 1
    %s98 = scalar_select %p95, %s96, %s97
    %p101 = pneg %p95
    %p102 = scmp.eq.s32.totalorder %s18, 3
    %p103 = por %p101, %p102
    %p104 = scmp.ne.s32.totalorder %s96, %s99
    %p105 = scmp.eq.s32.totalorder %s18, 0
    %p106 = por %p104, %p105
    %p107 = scmp.ne.s32.totalorder %s96, %s99
    %p108 = scmp.eq.s32.totalorder %s23, 3
    %p109 = por %p107, %p108
    %p110 = scmp.ne.s32.totalorder %s99, %s100
    %p111 = scmp.eq.s32.totalorder %s23, 0
    %p112 = por %p110, %p111
    %p113 = scmp.ne.s32.totalorder %s99, %s100
    %p114 = scmp.eq.s32.totalorder %s24, 3
    %p115 = por %p113, %p114
    %p117 = scmp.ne.s32.totalorder %s100, %s116
    %p118 = scmp.eq.s32.totalorder %s24, 0
    %p119 = por %p117, %p118
    %s120 = ssub.s32 %s25, %s37
    %p121 = scmp.eq.s32.totalorder %s120, 0
    %s123 = sadd.s32 %s122, 1
    %s124 = scalar_select %p121, %s122, %s123
    %p127 = pneg %p121
    %p128 = scmp.eq.s32.totalorder %s18, 3
    %p129 = por %p127, %p128
    %p130 = scmp.ne.s32.totalorder %s122, %s125
    %p131 = scmp.eq.s32.totalorder %s18, 0
    %p132 = por %p130, %p131
    %p133 = scmp.ne.s32.totalorder %s122, %s125
    %p134 = scmp.eq.s32.totalorder %s23, 3
    %p135 = por %p133, %p134
    %p136 = scmp.ne.s32.totalorder %s125, %s126
    %p137 = scmp.eq.s32.totalorder %s23, 0
    %p138 = por %p136, %p137
    %p139 = scmp.ne.s32.totalorder %s125, %s126
    %p140 = scmp.eq.s32.totalorder %s24, 3
    %p141 = por %p139, %p140
    %p143 = scmp.ne.s32.totalorder %s126, %s142
    %p144 = scmp.eq.s32.totalorder %s24, 0
    %p145 = por %p143, %p144
    %s146 = ssub.s32 %s25, %s37
    %p147 = scmp.eq.s32.totalorder %s146, 0
    %s149 = sadd.s32 %s148, 1
    %s150 = scalar_select %p147, %s148, %s149
    %p153 = pneg %p147
    %p154 = scmp.eq.s32.totalorder %s18, 3
    %p155 = por %p153, %p154
    %p156 = scmp.ne.s32.totalorder %s148, %s151
    %p157 = scmp.eq.s32.totalorder %s18, 0
    %p158 = por %p156, %p157
    %p159 = scmp.ne.s32.totalorder %s148, %s151
    %p160 = scmp.eq.s32.totalorder %s23, 3
    %p161 = por %p159, %p160
    %p162 = scmp.ne.s32.totalorder %s151, %s152
    %p163 = scmp.eq.s32.totalorder %s23, 0
    %p164 = por %p162, %p163
    %p165 = scmp.ne.s32.totalorder %s151, %s152
    %p166 = scmp.eq.s32.totalorder %s24, 3
    %p167 = por %p165, %p166
    %p169 = scmp.ne.s32.totalorder %s152, %s168
    %p170 = scmp.eq.s32.totalorder %s24, 0
    %p171 = por %p169, %p170
    %s173 = sadd.s32 %s172, 1
    %p176 = scmp.eq.s32.totalorder %s18, 3
    %p177 = scmp.ne.s32.totalorder %s172, %s174
    %p178 = scmp.eq.s32.totalorder %s18, 0
    %p179 = por %p177, %p178
    %p180 = scmp.ne.s32.totalorder %s172, %s174
    %p181 = scmp.eq.s32.totalorder %s23, 3
    %p182 = por %p180, %p181
    %p183 = scmp.ne.s32.totalorder %s174, %s175
    %p184 = scmp.eq.s32.totalorder %s23, 0
    %p185 = por %p183, %p184
    %p186 = scmp.ne.s32.totalorder %s174, %s175
    %p187 = scmp.eq.s32.totalorder %s24, 3
    %p188 = por %p186, %p187
    %p190 = scmp.ne.s32.totalorder %s175, %s189
    %p191 = scmp.eq.s32.totalorder %s24, 0
    %p192 = por %p190, %p191
    %s194 = sadd.s32 %s193, 1
    %p197 = scmp.eq.s32.totalorder %s18, 3
    %p198 = scmp.ne.s32.totalorder %s193, %s195
    %p199 = scmp.eq.s32.totalorder %s18, 0
    %p200 = por %p198, %p199
    %p201 = scmp.ne.s32.totalorder %s193, %s195
    %p202 = scmp.eq.s32.totalorder %s23, 3
    %p203 = por %p201, %p202
    %p204 = scmp.ne.s32.totalorder %s195, %s196
    %p205 = scmp.eq.s32.totalorder %s23, 0
    %p206 = por %p204, %p205
    %p207 = scmp.ne.s32.totalorder %s195, %s196
    %p208 = scmp.eq.s32.totalorder %s24, 3
    %p209 = por %p207, %p208
    %p211 = scmp.ne.s32.totalorder %s196, %s210
    %p212 = scmp.eq.s32.totalorder %s24, 0
    %p213 = por %p211, %p212
    %s215 = sadd.s32 %s214, 1
    %p218 = scmp.eq.s32.totalorder %s18, 3
    %p219 = scmp.ne.s32.totalorder %s214, %s216
    %p220 = scmp.eq.s32.totalorder %s18, 0
    %p221 = por %p219, %p220
    %p222 = scmp.ne.s32.totalorder %s214, %s216
    %p223 = scmp.eq.s32.totalorder %s23, 3
    %p224 = por %p222, %p223
    %p225 = scmp.ne.s32.totalorder %s216, %s217
    %p226 = scmp.eq.s32.totalorder %s23, 0
    %p227 = por %p225, %p226
    %p228 = scmp.ne.s32.totalorder %s216, %s217
    %p229 = scmp.eq.s32.totalorder %s24, 3
    %p230 = por %p228, %p229
    %p232 = scmp.ne.s32.totalorder %s217, %s231
    %p233 = scmp.eq.s32.totalorder %s24, 0
    %p234 = por %p232, %p233
    %s236 = sadd.s32 %s235, 1
    %p239 = scmp.eq.s32.totalorder %s18, 3
    %p240 = scmp.ne.s32.totalorder %s235, %s237
    %p241 = scmp.eq.s32.totalorder %s18, 0
    %p242 = por %p240, %p241
    %p243 = scmp.ne.s32.totalorder %s235, %s237
    %p244 = scmp.eq.s32.totalorder %s23, 3
    %p245 = por %p243, %p244
    %p246 = scmp.ne.s32.totalorder %s237, %s238
    %p247 = scmp.eq.s32.totalorder %s23, 0
    %p248 = por %p246, %p247
    %p249 = scmp.ne.s32.totalorder %s237, %s238
    %p250 = scmp.eq.s32.totalorder %s24, 3
    %p251 = por %p249, %p250
    %p253 = scmp.ne.s32.totalorder %s238, %s252
    %p254 = scmp.eq.s32.totalorder %s24, 0
    %p255 = por %p253, %p254
    %s257 = sadd.s32 %s256, 1
    %p260 = scmp.eq.s32.totalorder %s18, 3
    %p261 = scmp.ne.s32.totalorder %s256, %s258
    %p262 = scmp.eq.s32.totalorder %s18, 0
    %p263 = por %p261, %p262
    %p264 = scmp.ne.s32.totalorder %s256, %s258
    %p265 = scmp.eq.s32.totalorder %s23, 3
    %p266 = por %p264, %p265
    %p267 = scmp.ne.s32.totalorder %s258, %s259
    %p268 = scmp.eq.s32.totalorder %s23, 0
    %p269 = por %p267, %p268
    %p270 = scmp.ne.s32.totalorder %s258, %s259
    %p271 = scmp.eq.s32.totalorder %s24, 3
    %p272 = por %p270, %p271
    %p274 = scmp.ne.s32.totalorder %s259, %s273
    %p275 = scmp.eq.s32.totalorder %s24, 0
    %p276 = por %p274, %p275
    %s278 = sadd.s32 %s277, 1
    %p281 = scmp.eq.s32.totalorder %s18, 3
    %p282 = scmp.ne.s32.totalorder %s277, %s279
    %p283 = scmp.eq.s32.totalorder %s18, 0
    %p284 = por %p282, %p283
    %p285 = scmp.ne.s32.totalorder %s277, %s279
    %p286 = scmp.eq.s32.totalorder %s23, 3
    %p287 = por %p285, %p286
    %p288 = scmp.ne.s32.totalorder %s279, %s280
    %p289 = scmp.eq.s32.totalorder %s23, 0
    %p290 = por %p288, %p289
    %p291 = scmp.ne.s32.totalorder %s279, %s280
    %p292 = scmp.eq.s32.totalorder %s24, 3
    %p293 = por %p291, %p292
    %p295 = scmp.ne.s32.totalorder %s280, %s294
    %p296 = scmp.eq.s32.totalorder %s24, 0
    %p297 = por %p295, %p296
    %s299 = sadd.s32 %s298, 1
    %p302 = scmp.eq.s32.totalorder %s18, 3
    %p303 = scmp.ne.s32.totalorder %s298, %s300
    %p304 = scmp.eq.s32.totalorder %s18, 0
    %p305 = por %p303, %p304
    %p306 = scmp.ne.s32.totalorder %s298, %s300
    %p307 = scmp.eq.s32.totalorder %s23, 3
    %p308 = por %p306, %p307
    %p309 = scmp.ne.s32.totalorder %s300, %s301
    %p310 = scmp.eq.s32.totalorder %s23, 0
    %p311 = por %p309, %p310
    %p312 = scmp.ne.s32.totalorder %s300, %s301
    %p313 = scmp.eq.s32.totalorder %s24, 3
    %p314 = por %p312, %p313
    %p316 = scmp.ne.s32.totalorder %s301, %s315
    %p317 = scmp.eq.s32.totalorder %s24, 0
    %p318 = por %p316, %p317
    %s319 = ssub.s32 %s25, %s37
    %s320 = ssub.s32 %s26, %s33
    %s321 = sor.u32 %s319, %s320
    %p322 = scmp.eq.s32.totalorder %s321, 0
    %s324 = sadd.s32 %s323, 1
    %s325 = scalar_select %p322, %s323, %s324
    %p328 = pneg %p322
    %p329 = scmp.eq.s32.totalorder %s18, 3
    %p330 = por %p328, %p329
    %p331 = scmp.ne.s32.totalorder %s323, %s326
    %p332 = scmp.eq.s32.totalorder %s18, 0
    %p333 = por %p331, %p332
    %p334 = scmp.ne.s32.totalorder %s323, %s326
    %p335 = scmp.eq.s32.totalorder %s23, 3
    %p336 = por %p334, %p335
    %p337 = scmp.ne.s32.totalorder %s326, %s327
    %p338 = scmp.eq.s32.totalorder %s23, 0
    %p339 = por %p337, %p338
    %p340 = scmp.ne.s32.totalorder %s326, %s327
    %p341 = scmp.eq.s32.totalorder %s24, 3
    %p342 = por %p340, %p341
    %p344 = scmp.ne.s32.totalorder %s327, %s343
    %p345 = scmp.eq.s32.totalorder %s24, 0
    %p346 = por %p344, %p345
    %p347 = scmp.le.s32.totalorder 1, %s18
    %p348 = scmp.lt.s32.totalorder %s18, 5
    %p349 = pnand %p347, %p348
    %p350 = pneg %p349
    // Predicated region
    $region9: #{tpu_custom_call.1} parent=5 // pred_check
      _
    $region10: #{tpu_custom_call.1} parent=5 // pred_check_branch
      %352 = sbr.rel (%p349) target = $region12
    $region11: #{tpu_custom_call.1} parent=5 // pred_region
      %s353 = ssub.s32 %s18, 1
      // Predicated region
      $region13: #{tpu_custom_call.1} parent=11 // pred_check
        %p354 = pneg %p185
      $region14: #{tpu_custom_call.1} parent=11 // pred_check_branch
        %356 = sbr.rel (%p354) target = $region16
      $region15: #{tpu_custom_call.1} parent=11 // pred_region
        _
      $region16: #{tpu_custom_call.1} parent=11 // pred_fallthru
        _
      // Predicated region
      $region17: #{tpu_custom_call.1} parent=11 // pred_check
        %p357 = pneg %p206
      $region18: #{tpu_custom_call.1} parent=11 // pred_check_branch
        %359 = sbr.rel (%p357) target = $region20
      $region19: #{tpu_custom_call.1} parent=11 // pred_region
        _
      $region20: #{tpu_custom_call.1} parent=11 // pred_fallthru
        _
      // Predicated region
      $region21: #{tpu_custom_call.1} parent=11 // pred_check
        %p360 = pneg %p227
      $region22: #{tpu_custom_call.1} parent=11 // pred_check_branch
        %362 = sbr.rel (%p360) target = $region24
      $region23: #{tpu_custom_call.1} parent=11 // pred_region
        _
      $region24: #{tpu_custom_call.1} parent=11 // pred_fallthru
        _
      // Predicated region
      $region25: #{tpu_custom_call.1} parent=11 // pred_check
        %p363 = pneg %p248
      $region26: #{tpu_custom_call.1} parent=11 // pred_check_branch
        %365 = sbr.rel (%p363) target = $region28
      $region27: #{tpu_custom_call.1} parent=11 // pred_region
        _
      $region28: #{tpu_custom_call.1} parent=11 // pred_fallthru
        _
      // Predicated region
      $region29: #{tpu_custom_call.1} parent=11 // pred_check
        %p366 = pneg %p269
      $region30: #{tpu_custom_call.1} parent=11 // pred_check_branch
        %368 = sbr.rel (%p366) target = $region32
      $region31: #{tpu_custom_call.1} parent=11 // pred_region
        _
      $region32: #{tpu_custom_call.1} parent=11 // pred_fallthru
        _
      // Predicated region
      $region33: #{tpu_custom_call.1} parent=11 // pred_check
        %p369 = pneg %p290
      $region34: #{tpu_custom_call.1} parent=11 // pred_check_branch
        %371 = sbr.rel (%p369) target = $region36
      $region35: #{tpu_custom_call.1} parent=11 // pred_region
        _
      $region36: #{tpu_custom_call.1} parent=11 // pred_fallthru
        _
      // Predicated region
      $region37: #{tpu_custom_call.1} parent=11 // pred_check
        %p372 = pneg %p311
      $region38: #{tpu_custom_call.1} parent=11 // pred_check_branch
        %374 = sbr.rel (%p372) target = $region40
      $region39: #{tpu_custom_call.1} parent=11 // pred_region
        _
      $region40: #{tpu_custom_call.1} parent=11 // pred_fallthru
        _
    $region12: #{tpu_custom_call.1} parent=5 // pred_fallthru
      _
    %p375 = scmp.lt.s32.totalorder %s18, 4
    // Predicated region
    $region41: #{tpu_custom_call.1} parent=5 // pred_check
      %p376 = pneg %p375
    $region42: #{tpu_custom_call.1} parent=5 // pred_check_branch
      %378 = sbr.rel (%p376) target = $region44
    $region43: #{tpu_custom_call.1} parent=5 // pred_region
      // Predicated region
      $region45: #{tpu_custom_call.1} parent=43 // pred_check
        %p379 = pneg %p52
      $region46: #{tpu_custom_call.1} parent=43 // pred_check_branch
        %381 = sbr.rel (%p379) target = $region48
      $region47: #{tpu_custom_call.1} parent=43 // pred_region
        %s382 = smul.u32 16, %s26
        %p383 = scmp.lt.s32.totalorder %s25, 1
        %s384 = scalar_select %p383, %s25, 1
        %p385 = scmp.lt.s32.totalorder %s382, 31
        %s386 = scalar_select %p385, %s382, 31
        %s387 = smul.addr %s384, 32
        %s388 = sadd.s32 %s386, %s387
        %s389 = smul.addr %s388, 8
        %s390 = scalar_lea.vmem %s0, %s389
        %s391 = smul.u32 16, %s26
      $region48: #{tpu_custom_call.1} parent=43 // pred_fallthru
        _
      // Predicated region
      $region49: #{tpu_custom_call.1} parent=43 // pred_check
        %p392 = pneg %p80
      $region50: #{tpu_custom_call.1} parent=43 // pred_check_branch
        %394 = sbr.rel (%p392) target = $region52
      $region51: #{tpu_custom_call.1} parent=43 // pred_region
        %s395 = smul.u32 16, %s26
        %p396 = scmp.lt.s32.totalorder %s25, 1
        %s397 = scalar_select %p396, %s25, 1
        %p398 = scmp.lt.s32.totalorder %s395, 31
        %s399 = scalar_select %p398, %s395, 31
        %s400 = smul.addr %s397, 32
        %s401 = sadd.s32 %s399, %s400
        %s402 = smul.addr %s401, 8
        %s403 = scalar_lea.vmem %s1, %s402
        %s404 = smul.u32 16, %s26
      $region52: #{tpu_custom_call.1} parent=43 // pred_fallthru
        _
      // Predicated region
      $region53: #{tpu_custom_call.1} parent=43 // pred_check
        %p405 = pneg %p106
      $region54: #{tpu_custom_call.1} parent=43 // pred_check_branch
        %407 = sbr.rel (%p405) target = $region56
      $region55: #{tpu_custom_call.1} parent=43 // pred_region
        %p408 = scmp.lt.s32.totalorder %s25, 1
        %s409 = scalar_select %p408, %s25, 1
        %s410 = smul.addr %s409, 2
        %s411 = scalar_lea.vmem %s2, %s410
      $region56: #{tpu_custom_call.1} parent=43 // pred_fallthru
        _
      // Predicated region
      $region57: #{tpu_custom_call.1} parent=43 // pred_check
        %p412 = pneg %p132
      $region58: #{tpu_custom_call.1} parent=43 // pred_check_branch
        %414 = sbr.rel (%p412) target = $region60
      $region59: #{tpu_custom_call.1} parent=43 // pred_region
        %p415 = scmp.lt.s32.totalorder %s25, 1
        %s416 = scalar_select %p415, %s25, 1
        %s417 = smul.addr %s416, 8
        %s418 = smul.addr %s417, 4
        %s419 = scalar_lea.vmem %s3, %s418
      $region60: #{tpu_custom_call.1} parent=43 // pred_fallthru
        _
      // Predicated region
      $region61: #{tpu_custom_call.1} parent=43 // pred_check
        %p420 = pneg %p158
      $region62: #{tpu_custom_call.1} parent=43 // pred_check_branch
        %422 = sbr.rel (%p420) target = $region64
      $region63: #{tpu_custom_call.1} parent=43 // pred_region
        %p423 = scmp.lt.s32.totalorder %s25, 1
        %s424 = scalar_select %p423, %s25, 1
        %s425 = smul.addr %s424, 128
        %s426 = smul.addr %s425, 4
        %s427 = scalar_lea.vmem %s4, %s426
      $region64: #{tpu_custom_call.1} parent=43 // pred_fallthru
        _
    $region44: #{tpu_custom_call.1} parent=5 // pred_fallthru
      _
    %p428 = scmp.le.s32.totalorder 1, %s18
    %p429 = scmp.lt.s32.totalorder %s18, 5
    %p430 = pnand %p428, %p429
    %p431 = pneg %p430
    // Predicated region
    $region65: #{tpu_custom_call.1} parent=5 // pred_check
      _
    $region66: #{tpu_custom_call.1} parent=5 // pred_check_branch
      %433 = sbr.rel (%p430) target = $region68
    $region67: #{tpu_custom_call.1} parent=5 // pred_region
      %s434 = ssub.s32 %s18, 1
      %s435 = smul.u32 16, %s28
      %p436 = scmp.lt.s32.totalorder %s27, 1
      %s437 = scalar_select %p436, %s27, 1
      %p438 = scmp.lt.s32.totalorder %s435, 31
      %s439 = scalar_select %p438, %s435, 31
      %s440 = smul.addr %s437, 32
      %s441 = sadd.s32 %s439, %s440
      %s442 = smul.addr %s441, 8
      %s443 = scalar_lea.vmem %s0, %s442
      %p444 = pneg %p58
      %p445 = pneg %p55
      %s446 = smul.u32 16, %s28
      %p447 = scmp.lt.s32.totalorder %s27, 1
      %s448 = scalar_select %p447, %s27, 1
      %p449 = scmp.lt.s32.totalorder %s446, 31
      %s450 = scalar_select %p449, %s446, 31
      %s451 = smul.addr %s448, 32
      %s452 = sadd.s32 %s450, %s451
      %s453 = smul.addr %s452, 8
      %s454 = scalar_lea.vmem %s1, %s453
      %p455 = pneg %p86
      %p456 = pneg %p83
      %p457 = scmp.lt.s32.totalorder %s27, 1
      %s458 = scalar_select %p457, %s27, 1
      %s459 = smul.addr %s458, 2
      %s460 = scalar_lea.vmem %s2, %s459
      %p461 = pneg %p112
      %p462 = pneg %p109
      %p463 = scmp.lt.s32.totalorder %s27, 1
      %s464 = scalar_select %p463, %s27, 1
      %s465 = smul.addr %s464, 8
      %s466 = smul.addr %s465, 4
      %s467 = scalar_lea.vmem %s3, %s466
      %p468 = pneg %p138
      %p469 = pneg %p135
      %p470 = scmp.lt.s32.totalorder %s27, 1
      %s471 = scalar_select %p470, %s27, 1
      %s472 = smul.addr %s471, 128
      %s473 = smul.addr %s472, 4
      %s474 = scalar_lea.vmem %s4, %s473
      %p475 = pneg %p164
      %p476 = pneg %p161
      %p477 = pneg %p185
      %p478 = pneg %p182
      %p479 = pneg %p206
      %p480 = pneg %p203
      %p481 = pneg %p227
      %p482 = pneg %p224
      %p483 = pneg %p248
      %p484 = pneg %p245
      %p485 = pneg %p269
      %p486 = pneg %p266
      %p487 = pneg %p290
      %p488 = pneg %p287
      %p489 = pneg %p311
      %p490 = pneg %p308
      %p491 = pneg %p339
      %p492 = pneg %p336
      %s493 = smul.u32 16, %s28
      %p494 = scmp.lt.s32.totalorder %s27, 1
      %s495 = scalar_select %p494, %s27, 1
      %p496 = scmp.lt.s32.totalorder %s493, 31
      %s497 = scalar_select %p496, %s493, 31
      %s498 = smul.addr %s495, 32
      %s499 = sadd.s32 %s497, %s498
      %s500 = smul.addr %s499, 8
      %s501 = scalar_lea.vmem %s12, %s500
      %s502 = smul.u32 16, %s28
      %p503 = scmp.lt.s32.totalorder %s27, 1
      %s504 = scalar_select %p503, %s27, 1
      %p505 = scmp.lt.s32.totalorder %s502, 31
      %s506 = scalar_select %p505, %s502, 31
      %s507 = smul.addr %s504, 32
      %s508 = sadd.s32 %s506, %s507
      %s509 = smul.addr %s508, 8
      %s510 = scalar_lea.vmem %s0, %s509
      %s511 = smul.u32 16, %s28
      %s512 = smul.u32 16, %s28
      %p513 = scmp.lt.s32.totalorder %s27, 1
      %s514 = scalar_select %p513, %s27, 1
      %p515 = scmp.lt.s32.totalorder %s512, 31
      %s516 = scalar_select %p515, %s512, 31
      %s517 = smul.addr %s514, 32
      %s518 = sadd.s32 %s516, %s517
      %s519 = smul.addr %s518, 8
      %s520 = scalar_lea.vmem %s1, %s519
      %s521 = smul.u32 16, %s28
      %p522 = scmp.lt.s32.totalorder %s27, 1
      %s523 = scalar_select %p522, %s27, 1
      %s524 = smul.addr %s523, 2
      %s525 = scalar_lea.vmem %s2, %s524
      %p526 = scmp.lt.s32.totalorder %s27, 1
      %s527 = scalar_select %p526, %s27, 1
      %s528 = smul.addr %s527, 8
      %s529 = smul.addr %s528, 4
      %s530 = scalar_lea.vmem %s3, %s529
      %p531 = scmp.lt.s32.totalorder %s27, 1
      %s532 = scalar_select %p531, %s27, 1
      %s533 = smul.addr %s532, 128
      %s534 = smul.addr %s533, 4
      %s535 = scalar_lea.vmem %s4, %s534
      %s536 = smul.u32 16, %s28
      %p537 = scmp.lt.s32.totalorder %s27, 1
      %s538 = scalar_select %p537, %s27, 1
      %p539 = scmp.lt.s32.totalorder %s536, 31
      %s540 = scalar_select %p539, %s536, 31
      %s541 = smul.addr %s538, 32
      %s542 = sadd.s32 %s540, %s541
      %s543 = smul.addr %s542, 8
      %s544 = scalar_lea.vmem %s12, %s543
      %s545 = smul.u32 16, %s28
      %v547 = vld [vmem:[%s510] sm:$0xff]
      %v548 = vld [vmem:[%s510 + $0x8] sm:$0xff]
      %v549 = vld [vmem:[%s510 + $0x10] sm:$0xff]
      %v550 = vld [vmem:[%s510 + $0x18] sm:$0xff]
      %v551 = vld [vmem:[%s510 + $0x20] sm:$0xff]
      %v552 = vld [vmem:[%s510 + $0x28] sm:$0xff]
      %v553 = vld [vmem:[%s510 + $0x30] sm:$0xff]
      %v554 = vld [vmem:[%s510 + $0x38] sm:$0xff]
      %v555 = vld [vmem:[%s510 + $0x40] sm:$0xff]
      %v556 = vld [vmem:[%s510 + $0x48] sm:$0xff]
      %v557 = vld [vmem:[%s510 + $0x50] sm:$0xff]
      %v558 = vld [vmem:[%s510 + $0x58] sm:$0xff]
      %v559 = vld [vmem:[%s510 + $0x60] sm:$0xff]
      %v560 = vld [vmem:[%s510 + $0x68] sm:$0xff]
      %v561 = vld [vmem:[%s510 + $0x70] sm:$0xff]
      %v562 = vld [vmem:[%s510 + $0x78] sm:$0xff]
      %v563 = vld [vmem:[%s520] sm:$0xff]
      %v564 = vld [vmem:[%s520 + $0x8] sm:$0xff]
      %v565 = vld [vmem:[%s520 + $0x10] sm:$0xff]
      %v566 = vld [vmem:[%s520 + $0x18] sm:$0xff]
      %v567 = vld [vmem:[%s520 + $0x20] sm:$0xff]
      %v568 = vld [vmem:[%s520 + $0x28] sm:$0xff]
      %v569 = vld [vmem:[%s520 + $0x30] sm:$0xff]
      %v570 = vld [vmem:[%s520 + $0x38] sm:$0xff]
      %v571 = vld [vmem:[%s520 + $0x40] sm:$0xff]
      %v572 = vld [vmem:[%s520 + $0x48] sm:$0xff]
      %v573 = vld [vmem:[%s520 + $0x50] sm:$0xff]
      %v574 = vld [vmem:[%s520 + $0x58] sm:$0xff]
      %v575 = vld [vmem:[%s520 + $0x60] sm:$0xff]
      %v576 = vld [vmem:[%s520 + $0x68] sm:$0xff]
      %v577 = vld [vmem:[%s520 + $0x70] sm:$0xff]
      %v578 = vld [vmem:[%s520 + $0x78] sm:$0xff]
      %v579 = vadd.f32 %v547, %v563
      %v580 = vadd.f32 %v548, %v564
      %v581 = vadd.f32 %v549, %v565
      %v582 = vadd.f32 %v550, %v566
      %v583 = vadd.f32 %v551, %v567
      %v584 = vadd.f32 %v552, %v568
      %v585 = vadd.f32 %v553, %v569
      %v586 = vadd.f32 %v554, %v570
      %v587 = vadd.f32 %v555, %v571
      %v588 = vadd.f32 %v556, %v572
      %v589 = vadd.f32 %v557, %v573
      %v590 = vadd.f32 %v558, %v574
      %v591 = vadd.f32 %v559, %v575
      %v592 = vadd.f32 %v560, %v576
      %v593 = vadd.f32 %v561, %v577
      %v594 = vadd.f32 %v562, %v578
      %v595 = vpack.c.bf16 %v580, %v579
      %v596 = vpack.c.bf16 %v582, %v581
      %v597 = vpack.c.bf16 %v584, %v583
      %v598 = vpack.c.bf16 %v586, %v585
      %v599 = vpack.c.bf16 %v588, %v587
      %v600 = vpack.c.bf16 %v590, %v589
      %v601 = vpack.c.bf16 %v592, %v591
      %v602 = vpack.c.bf16 %v594, %v593
      %v603 = vld [vmem:[%s5] sm:$0xf]
      %v604 = vld [vmem:[%s5 + $0x4] sm:$0xf]
      %v605 = vld [vmem:[%s5 + $0x8] sm:$0xf]
      %v606 = vld [vmem:[%s5 + $0xc] sm:$0xf]
      %v607 = vld [vmem:[%s6] sm:$0x1]
      %v609 = vlaneseq
      %v610 = vshrl.u32 %v609, 7
      %v611 = vsub.s32 0, %v610
      %v612 = vrot.slane %v607, %v611
      %v618 = vunpack.c.l.b16 %v603
      %v619 = vunpack.c.l.b16 %v604
      %v620 = vunpack.c.l.b16 %v605
      %v621 = vunpack.c.l.b16 %v606
      %v622 = vpack.c.b16 %v619, %v618
      %v623 = vpack.c.b16 %v621, %v620
      %vm626 = vcmask 261120
      %v628 = vsel %vm626, %v595, 0
      %v631 = vsel %vm626, %v596, 0
      %v634 = vsel %vm626, %v597, 0
      %v637 = vsel %vm626, %v598, 0
      %v640 = vsel %vm626, %v599, 0
      %v643 = vsel %vm626, %v600, 0
      %v646 = vsel %vm626, %v601, 0
      %v649 = vsel %vm626, %v602, 0
      %651 = vmatprep.subr.bf16.mxu0 0
      %652 = vmatpush1.bf16.msra.mxu0 %v622
      %653 = vmatprep.subr.bf16.mxu0 0
      %654 = vmatpush1.bf16.msra.mxu0 %v623
      %655 = vmatprep.subr.bf16.mxu0 0
      %656 = vmatpush1.bf16.msra.mxu0 0
      %657 = vmatprep.subr.bf16.mxu0 0
      %658 = vmatpush1.bf16.msra.mxu0 0
      %659 = vmatprep.subr.bf16.mxu0 0
      %660 = vmatpush1.bf16.msra.mxu0 0
      %661 = vmatprep.subr.bf16.mxu0 0
      %662 = vmatpush1.bf16.msra.mxu0 0
      %663 = vmatprep.subr.bf16.mxu0 0
      %664 = vmatpush1.bf16.msra.mxu0 0
      %665 = vmatprep.subr.bf16.mxu0 0
      %666 = vmatpush1.bf16.msra.mxu0 0
      %667 = vmatprep.subr.bf16.mxu0 0
      %668 = vmatpush1.bf16.msra.mxu0 0
      %669 = vmatprep.subr.bf16.mxu0 0
      %670 = vmatpush1.bf16.msra.mxu0 0
      %671 = vmatprep.subr.bf16.mxu0 0
      %672 = vmatpush1.bf16.msra.mxu0 0
      %673 = vmatprep.subr.bf16.mxu0 0
      %674 = vmatpush1.bf16.msra.mxu0 0
      %675 = vmatprep.subr.bf16.mxu0 0
      %676 = vmatpush1.bf16.msra.mxu0 0
      %677 = vmatprep.subr.bf16.mxu0 0
      %678 = vmatpush1.bf16.msra.mxu0 0
      %679 = vmatprep.subr.bf16.mxu0 0
      %680 = vmatpush1.bf16.msra.mxu0 0
      %681 = vmatprep.subr.bf16.mxu0 0
      %682 = vmatpush1.bf16.msra.mxu0 0
      %683 = vmatprep.mubr.bf16.mxu0 0
      %684 = vmatmul.mubr.bf16.gmra.mrb[0].mxu0 %v628
      %v685 = vpop.f32.mrb[0].mxu0
      %v686 = vadd.f32 %v612, %v685
      %v687 = vpop.f32.mrb[0].mxu0
      %v688 = vpop.f32.mrb[0].mxu0
      %v689 = vadd.f32 %v612, %v688
      %v690 = vpop.f32.mrb[0].mxu0
      %691 = vmatprep.mubr.bf16.mxu0 0
      %692 = vmatmul.mubr.bf16.gmra.mrb[0].mxu0 %v631
      %v693 = vpop.f32.mrb[0].mxu0
      %v694 = vadd.f32 %v612, %v693
      %v695 = vpop.f32.mrb[0].mxu0
      %v696 = vpop.f32.mrb[0].mxu0
      %v697 = vadd.f32 %v612, %v696
      %v698 = vpop.f32.mrb[0].mxu0
      %699 = vmatprep.mubr.bf16.mxu0 0
      %700 = vmatmul.mubr.bf16.gmra.mrb[0].mxu0 %v634
      %v701 = vpop.f32.mrb[0].mxu0
      %v702 = vadd.f32 %v612, %v701
      %v703 = vpop.f32.mrb[0].mxu0
      %v704 = vpop.f32.mrb[0].mxu0
      %v705 = vadd.f32 %v612, %v704
      %v706 = vpop.f32.mrb[0].mxu0
      %707 = vmatprep.mubr.bf16.mxu0 0
      %708 = vmatmul.mubr.bf16.gmra.mrb[0].mxu0 %v637
      %v709 = vpop.f32.mrb[0].mxu0
      %v710 = vadd.f32 %v612, %v709
      %v711 = vpop.f32.mrb[0].mxu0
      %v712 = vpop.f32.mrb[0].mxu0
      %v713 = vadd.f32 %v612, %v712
      %v714 = vpop.f32.mrb[0].mxu0
      %715 = vmatprep.mubr.bf16.mxu0 0
      %716 = vmatmul.mubr.bf16.gmra.mrb[0].mxu0 %v640
      %v717 = vpop.f32.mrb[0].mxu0
      %v718 = vadd.f32 %v612, %v717
      %v719 = vpop.f32.mrb[0].mxu0
      %v720 = vpop.f32.mrb[0].mxu0
      %v721 = vadd.f32 %v612, %v720
      %v722 = vpop.f32.mrb[0].mxu0
      %723 = vmatprep.mubr.bf16.mxu0 0
      %724 = vmatmul.mubr.bf16.gmra.mrb[0].mxu0 %v643
      %v725 = vpop.f32.mrb[0].mxu0
      %v726 = vadd.f32 %v612, %v725
      %v727 = vpop.f32.mrb[0].mxu0
      %v728 = vpop.f32.mrb[0].mxu0
      %v729 = vadd.f32 %v612, %v728
      %v730 = vpop.f32.mrb[0].mxu0
      %731 = vmatprep.mubr.bf16.mxu0 0
      %732 = vmatmul.mubr.bf16.gmra.mrb[0].mxu0 %v646
      %v733 = vpop.f32.mrb[0].mxu0
      %v734 = vadd.f32 %v612, %v733
      %v735 = vpop.f32.mrb[0].mxu0
      %v736 = vpop.f32.mrb[0].mxu0
      %v737 = vadd.f32 %v612, %v736
      %v738 = vpop.f32.mrb[0].mxu0
      %739 = vmatprep.mubr.bf16.mxu0 0
      %740 = vmatmul.mubr.bf16.gmra.mrb[0].mxu0 %v649
      %v741 = vpop.f32.mrb[0].mxu0
      %v742 = vadd.f32 %v612, %v741
      %v743 = vpop.f32.mrb[0].mxu0
      %v744 = vpop.f32.mrb[0].mxu0
      %v745 = vadd.f32 %v612, %v744
      %v746 = vpop.f32.mrb[0].mxu0
      %747 = vdwg.mxu0
      %v748 = vpack.c.bf16 %v689, %v686
      %v749 = vpack.c.bf16 %v697, %v694
      %v750 = vpack.c.bf16 %v705, %v702
      %v751 = vpack.c.bf16 %v713, %v710
      %v752 = vpack.c.bf16 %v721, %v718
      %v753 = vpack.c.bf16 %v729, %v726
      %v754 = vpack.c.bf16 %v737, %v734
      %v755 = vpack.c.bf16 %v745, %v742
      %vm756 = vcmask 64512
      %757 = vst.msk [vmem:[#allocation2] sm:$0xff] %vm756, %v748
      %758 = vst.msk [vmem:[#allocation2 + $0x8] sm:$0xff] %vm756, %v749
      %759 = vst.msk [vmem:[#allocation2 + $0x10] sm:$0xff] %vm756, %v750
      %760 = vst.msk [vmem:[#allocation2 + $0x18] sm:$0xff] %vm756, %v751
      %761 = vst.msk [vmem:[#allocation2 + $0x20] sm:$0xff] %vm756, %v752
      %762 = vst.msk [vmem:[#allocation2 + $0x28] sm:$0xff] %vm756, %v753
      %763 = vst.msk [vmem:[#allocation2 + $0x30] sm:$0xff] %vm756, %v754
      %764 = vst.msk [vmem:[#allocation2 + $0x38] sm:$0xff] %vm756, %v755
      %773 = vrot.lane.b32.xlu0 %v748, 120
      %v774 = vpop.permute.xlu0 %773
      %775 = vrot.lane.b32.xlu0 %v749, 120
      %v776 = vpop.permute.xlu0 %775
      %777 = vrot.lane.b32.xlu0 %v750, 120
      %v778 = vpop.permute.xlu0 %777
      %779 = vrot.lane.b32.xlu0 %v751, 120
      %v780 = vpop.permute.xlu0 %779
      %781 = vrot.lane.b32.xlu0 %v752, 120
      %v782 = vpop.permute.xlu0 %781
      %783 = vrot.lane.b32.xlu0 %v753, 120
      %v784 = vpop.permute.xlu0 %783
      %785 = vrot.lane.b32.xlu0 %v754, 120
      %v786 = vpop.permute.xlu0 %785
      %787 = vrot.lane.b32.xlu0 %v755, 120
      %v788 = vpop.permute.xlu0 %787
      %s797 = scalar_lea.vmem [#allocation2], 64
      %798 = vst.msk [vmem:[%s797] sm:$0xff] %vm756, %v774
      %799 = vst.msk [vmem:[%s797 + $0x8] sm:$0xff] %vm756, %v776
      %800 = vst.msk [vmem:[%s797 + $0x10] sm:$0xff] %vm756, %v778
      %801 = vst.msk [vmem:[%s797 + $0x18] sm:$0xff] %vm756, %v780
      %802 = vst.msk [vmem:[%s797 + $0x20] sm:$0xff] %vm756, %v782
      %803 = vst.msk [vmem:[%s797 + $0x28] sm:$0xff] %vm756, %v784
      %804 = vst.msk [vmem:[%s797 + $0x30] sm:$0xff] %vm756, %v786
      %805 = vst.msk [vmem:[%s797 + $0x38] sm:$0xff] %vm756, %v788
      %806 = vrot.lane.b32.xlu0 %v748, 112
      %v807 = vpop.permute.xlu0 %806
      %808 = vrot.lane.b32.xlu0 %v749, 112
      %v809 = vpop.permute.xlu0 %808
      %810 = vrot.lane.b32.xlu0 %v750, 112
      %v811 = vpop.permute.xlu0 %810
      %812 = vrot.lane.b32.xlu0 %v751, 112
      %v813 = vpop.permute.xlu0 %812
      %814 = vrot.lane.b32.xlu0 %v752, 112
      %v815 = vpop.permute.xlu0 %814
      %816 = vrot.lane.b32.xlu0 %v753, 112
      %v817 = vpop.permute.xlu0 %816
      %818 = vrot.lane.b32.xlu0 %v754, 112
      %v819 = vpop.permute.xlu0 %818
      %820 = vrot.lane.b32.xlu0 %v755, 112
      %v821 = vpop.permute.xlu0 %820
      %s830 = scalar_lea.vmem [#allocation2], 128
      %831 = vst.msk [vmem:[%s830] sm:$0xff] %vm756, %v807
      %832 = vst.msk [vmem:[%s830 + $0x8] sm:$0xff] %vm756, %v809
      %833 = vst.msk [vmem:[%s830 + $0x10] sm:$0xff] %vm756, %v811
      %834 = vst.msk [vmem:[%s830 + $0x18] sm:$0xff] %vm756, %v813
      %835 = vst.msk [vmem:[%s830 + $0x20] sm:$0xff] %vm756, %v815
      %836 = vst.msk [vmem:[%s830 + $0x28] sm:$0xff] %vm756, %v817
      %837 = vst.msk [vmem:[%s830 + $0x30] sm:$0xff] %vm756, %v819
      %838 = vst.msk [vmem:[%s830 + $0x38] sm:$0xff] %vm756, %v821
      %839 = vrot.lane.b32.xlu0 %v748, 104
      %v840 = vpop.permute.xlu0 %839
      %841 = vrot.lane.b32.xlu0 %v749, 104
      %v842 = vpop.permute.xlu0 %841
      %843 = vrot.lane.b32.xlu0 %v750, 104
      %v844 = vpop.permute.xlu0 %843
      %845 = vrot.lane.b32.xlu0 %v751, 104
      %v846 = vpop.permute.xlu0 %845
      %847 = vrot.lane.b32.xlu0 %v752, 104
      %v848 = vpop.permute.xlu0 %847
      %849 = vrot.lane.b32.xlu0 %v753, 104
      %v850 = vpop.permute.xlu0 %849
      %851 = vrot.lane.b32.xlu0 %v754, 104
      %v852 = vpop.permute.xlu0 %851
      %853 = vrot.lane.b32.xlu0 %v755, 104
      %v854 = vpop.permute.xlu0 %853
      %s863 = scalar_lea.vmem [#allocation2], 192
      %864 = vst.msk [vmem:[%s863] sm:$0xff] %vm756, %v840
      %865 = vst.msk [vmem:[%s863 + $0x8] sm:$0xff] %vm756, %v842
      %866 = vst.msk [vmem:[%s863 + $0x10] sm:$0xff] %vm756, %v844
      %867 = vst.msk [vmem:[%s863 + $0x18] sm:$0xff] %vm756, %v846
      %868 = vst.msk [vmem:[%s863 + $0x20] sm:$0xff] %vm756, %v848
      %869 = vst.msk [vmem:[%s863 + $0x28] sm:$0xff] %vm756, %v850
      %870 = vst.msk [vmem:[%s863 + $0x30] sm:$0xff] %vm756, %v852
      %871 = vst.msk [vmem:[%s863 + $0x38] sm:$0xff] %vm756, %v854
      %872 = vst.msk [vmem:[#allocation3] sm:$0xff] %vm626, 0.0
      %873 = vst.msk [vmem:[#allocation3 + $0x8] sm:$0xff] %vm626, 0.0
      %874 = vst.msk [vmem:[#allocation3 + $0x10] sm:$0xff] %vm626, 0.0
      %875 = vst.msk [vmem:[#allocation3 + $0x18] sm:$0xff] %vm626, 0.0
      %876 = vst.msk [vmem:[#allocation3 + $0x20] sm:$0xff] %vm626, 0.0
      %877 = vst.msk [vmem:[#allocation3 + $0x28] sm:$0xff] %vm626, 0.0
      %878 = vst.msk [vmem:[#allocation3 + $0x30] sm:$0xff] %vm626, 0.0
      %879 = vst.msk [vmem:[#allocation3 + $0x38] sm:$0xff] %vm626, 0.0
      %880 = vst.msk [vmem:[#allocation3 + $0x40] sm:$0xff] %vm626, 0.0
      %881 = vst.msk [vmem:[#allocation3 + $0x48] sm:$0xff] %vm626, 0.0
      %882 = vst.msk [vmem:[#allocation3 + $0x50] sm:$0xff] %vm626, 0.0
      %883 = vst.msk [vmem:[#allocation3 + $0x58] sm:$0xff] %vm626, 0.0
      %884 = vst.msk [vmem:[#allocation3 + $0x60] sm:$0xff] %vm626, 0.0
      %885 = vst.msk [vmem:[#allocation3 + $0x68] sm:$0xff] %vm626, 0.0
      %886 = vst.msk [vmem:[#allocation3 + $0x70] sm:$0xff] %vm626, 0.0
      %887 = vst.msk [vmem:[#allocation3 + $0x78] sm:$0xff] %vm626, 0.0
      %v888 = vld [vmem:[%s525] sm:$0x3]
      %v889 = vld [vmem:[#allocation2] sm:$0xff]
      %v890 = vld [vmem:[#allocation2 + $0x8] sm:$0xff]
      %v891 = vld [vmem:[#allocation2 + $0x10] sm:$0xff]
      %v892 = vld [vmem:[#allocation2 + $0x18] sm:$0xff]
      %v893 = vld [vmem:[#allocation2 + $0x20] sm:$0xff]
      %v894 = vld [vmem:[#allocation2 + $0x28] sm:$0xff]
      %v895 = vld [vmem:[#allocation2 + $0x30] sm:$0xff]
      %v896 = vld [vmem:[#allocation2 + $0x38] sm:$0xff]
      %v897 = vld [vmem:[%s530] sm:$0xff]
      %v899 = vlaneseq
      %v900 = vshrl.u32 %v899, 7
      %v901 = vsub.s32 0, %v900
      %v902 = vrot.slane %v888, %v901
      %v903 = vlaneseq
      %v904 = vshrl.u32 %v903, 7
      %v905 = vsub.s32 1, %v904
      %v906 = vrot.slane %v888, %v905
      %v910 = vunpack.c.l.b16 %v897
      %v911 = vunpack.c.h.b16 %v897
      %v912 = vpack.c.b16 %v910, %v910
      %v913 = vpack.c.b16 %v911, %v911
      %v915 = vsel %vm756, %v889, 0
      %v918 = vsel %vm756, %v890, 0
      %v921 = vsel %vm756, %v891, 0
      %v924 = vsel %vm756, %v892, 0
      %v927 = vsel %vm756, %v893, 0
      %v930 = vsel %vm756, %v894, 0
      %v933 = vsel %vm756, %v895, 0
      %v936 = vsel %vm756, %v896, 0
      %vm938 = vcmask 1043456
      %v940 = vsel %vm938, %v912, 0
      %v943 = vsel %vm938, %v913, 0
      %945 = vmatprep.subr.bf16.mxu0 %v943
      %946 = vmatpush1.bf16.msra.mxu0 %v940
      %947 = vmatprep.subr.bf16.mxu0 0
      %948 = vmatpush1.bf16.msra.mxu0 0
      %949 = vmatprep.subr.bf16.mxu0 0
      %950 = vmatpush1.bf16.msra.mxu0 0
      %951 = vmatprep.subr.bf16.mxu0 0
      %952 = vmatpush1.bf16.msra.mxu0 0
      %953 = vmatprep.subr.bf16.mxu0 0
      %954 = vmatpush1.bf16.msra.mxu0 0
      %955 = vmatprep.subr.bf16.mxu0 0
      %956 = vmatpush1.bf16.msra.mxu0 0
      %957 = vmatprep.subr.bf16.mxu0 0
      %958 = vmatpush1.bf16.msra.mxu0 0
      %959 = vmatprep.subr.bf16.mxu0 0
      %960 = vmatpush1.bf16.msra.mxu0 0
      %961 = vmatprep.subr.bf16.mxu0 0
      %962 = vmatpush1.bf16.msra.mxu0 0
      %963 = vmatprep.subr.bf16.mxu0 0
      %964 = vmatpush1.bf16.msra.mxu0 0
      %965 = vmatprep.subr.bf16.mxu0 0
      %966 = vmatpush1.bf16.msra.mxu0 0
      %967 = vmatprep.subr.bf16.mxu0 0
      %968 = vmatpush1.bf16.msra.mxu0 0
      %969 = vmatprep.subr.bf16.mxu0 0
      %970 = vmatpush1.bf16.msra.mxu0 0
      %971 = vmatprep.subr.bf16.mxu0 0
      %972 = vmatpush1.bf16.msra.mxu0 0
      %973 = vmatprep.subr.bf16.mxu0 0
      %974 = vmatpush1.bf16.msra.mxu0 0
      %975 = vmatprep.subr.bf16.mxu0 0
      %976 = vmatpush1.bf16.msra.mxu0 0
      %977 = vmatprep.mubr.bf16.mxu0 0
      %978 = vmatmul.mubr.bf16.gmra.mrb[0].mxu0 %v915
      %v979 = vpop.f32.mrb[0].mxu0
      %v980 = vadd.f32 %v902, %v979
      %v981 = vpop.f32.mrb[0].mxu0
      %v982 = vadd.f32 %v906, %v981
      %v983 = vpop.f32.mrb[0].mxu0
      %v984 = vadd.f32 %v902, %v983
      %v985 = vpop.f32.mrb[0].mxu0
      %v986 = vadd.f32 %v906, %v985
      %987 = vmatprep.mubr.bf16.mxu0 0
      %988 = vmatmul.mubr.bf16.gmra.mrb[0].mxu0 %v918
      %v989 = vpop.f32.mrb[0].mxu0
      %v990 = vadd.f32 %v902, %v989
      %v991 = vpop.f32.mrb[0].mxu0
      %v992 = vadd.f32 %v906, %v991
      %v993 = vpop.f32.mrb[0].mxu0
      %v994 = vadd.f32 %v902, %v993
      %v995 = vpop.f32.mrb[0].mxu0
      %v996 = vadd.f32 %v906, %v995
      %997 = vmatprep.mubr.bf16.mxu0 0
      %998 = vmatmul.mubr.bf16.gmra.mrb[0].mxu0 %v921
      %v999 = vpop.f32.mrb[0].mxu0
      %v1000 = vadd.f32 %v902, %v999
      %v1001 = vpop.f32.mrb[0].mxu0
      %v1002 = vadd.f32 %v906, %v1001
      %v1003 = vpop.f32.mrb[0].mxu0
      %v1004 = vadd.f32 %v902, %v1003
      %v1005 = vpop.f32.mrb[0].mxu0
      %v1006 = vadd.f32 %v906, %v1005
      %1007 = vmatprep.mubr.bf16.mxu0 0
      %1008 = vmatmul.mubr.bf16.gmra.mrb[0].mxu0 %v924
      %v1009 = vpop.f32.mrb[0].mxu0
      %v1010 = vadd.f32 %v902, %v1009
      %v1011 = vpop.f32.mrb[0].mxu0
      %v1012 = vadd.f32 %v906, %v1011
      %v1013 = vpop.f32.mrb[0].mxu0
      %v1014 = vadd.f32 %v902, %v1013
      %v1015 = vpop.f32.mrb[0].mxu0
      %v1016 = vadd.f32 %v906, %v1015
      %1017 = vmatprep.mubr.bf16.mxu0 0
      %1018 = vmatmul.mubr.bf16.gmra.mrb[0].mxu0 %v927
      %v1019 = vpop.f32.mrb[0].mxu0
      %v1020 = vadd.f32 %v902, %v1019
      %v1021 = vpop.f32.mrb[0].mxu0
      %v1022 = vadd.f32 %v906, %v1021
      %v1023 = vpop.f32.mrb[0].mxu0
      %v1024 = vadd.f32 %v902, %v1023
      %v1025 = vpop.f32.mrb[0].mxu0
      %v1026 = vadd.f32 %v906, %v1025
      %1027 = vmatprep.mubr.bf16.mxu0 0
      %1028 = vmatmul.mubr.bf16.gmra.mrb[0].mxu0 %v930
      %v1029 = vpop.f32.mrb[0].mxu0
      %v1030 = vadd.f32 %v902, %v1029
      %v1031 = vpop.f32.mrb[0].mxu0
      %v1032 = vadd.f32 %v906, %v1031
      %v1033 = vpop.f32.mrb[0].mxu0
      %v1034 = vadd.f32 %v902, %v1033
      %v1035 = vpop.f32.mrb[0].mxu0
      %v1036 = vadd.f32 %v906, %v1035
      %1037 = vmatprep.mubr.bf16.mxu0 0
      %1038 = vmatmul.mubr.bf16.gmra.mrb[0].mxu0 %v933
      %v1039 = vpop.f32.mrb[0].mxu0
      %v1040 = vadd.f32 %v902, %v1039
      %v1041 = vpop.f32.mrb[0].mxu0
      %v1042 = vadd.f32 %v906, %v1041
      %v1043 = vpop.f32.mrb[0].mxu0
      %v1044 = vadd.f32 %v902, %v1043
      %v1045 = vpop.f32.mrb[0].mxu0
      %v1046 = vadd.f32 %v906, %v1045
      %1047 = vmatprep.mubr.bf16.mxu0 0
      %1048 = vmatmul.mubr.bf16.gmra.mrb[0].mxu0 %v936
      %v1049 = vpop.f32.mrb[0].mxu0
      %v1050 = vadd.f32 %v902, %v1049
      %v1051 = vpop.f32.mrb[0].mxu0
      %v1052 = vadd.f32 %v906, %v1051
      %v1053 = vpop.f32.mrb[0].mxu0
      %v1054 = vadd.f32 %v902, %v1053
      %v1055 = vpop.f32.mrb[0].mxu0
      %v1056 = vadd.f32 %v906, %v1055
      %1057 = vdwg.mxu0
      %v1058 = vmax.f32 %v980, %v982
      %1059 = vmax.xlane.f32.xlu0 %v1058
      %v1060 = vpop.xlane.xlu0 %1059
      %v1061 = vmax.f32 %v984, %v986
      %1062 = vmax.xlane.f32.xlu0 %v1061
      %v1063 = vpop.xlane.xlu0 %1062
      %v1064 = vmax.f32 %v990, %v992
      %1065 = vmax.xlane.f32.xlu0 %v1064
      %v1066 = vpop.xlane.xlu0 %1065
      %v1067 = vmax.f32 %v994, %v996
      %1068 = vmax.xlane.f32.xlu0 %v1067
      %v1069 = vpop.xlane.xlu0 %1068
      %v1070 = vmax.f32 %v1000, %v1002
      %1071 = vmax.xlane.f32.xlu0 %v1070
      %v1072 = vpop.xlane.xlu0 %1071
      %v1073 = vmax.f32 %v1004, %v1006
      %1074 = vmax.xlane.f32.xlu0 %v1073
      %v1075 = vpop.xlane.xlu0 %1074
      %v1076 = vmax.f32 %v1010, %v1012
      %1077 = vmax.xlane.f32.xlu0 %v1076
      %v1078 = vpop.xlane.xlu0 %1077
      %v1079 = vmax.f32 %v1014, %v1016
      %1080 = vmax.xlane.f32.xlu0 %v1079
      %v1081 = vpop.xlane.xlu0 %1080
      %v1082 = vmax.f32 %v1020, %v1022
      %1083 = vmax.xlane.f32.xlu0 %v1082
      %v1084 = vpop.xlane.xlu0 %1083
      %v1085 = vmax.f32 %v1024, %v1026
      %1086 = vmax.xlane.f32.xlu0 %v1085
      %v1087 = vpop.xlane.xlu0 %1086
      %v1088 = vmax.f32 %v1030, %v1032
      %1089 = vmax.xlane.f32.xlu0 %v1088
      %v1090 = vpop.xlane.xlu0 %1089
      %v1091 = vmax.f32 %v1034, %v1036
      %1092 = vmax.xlane.f32.xlu0 %v1091
      %v1093 = vpop.xlane.xlu0 %1092
      %v1094 = vmax.f32 %v1040, %v1042
      %1095 = vmax.xlane.f32.xlu0 %v1094
      %v1096 = vpop.xlane.xlu0 %1095
      %v1097 = vmax.f32 %v1044, %v1046
      %1098 = vmax.xlane.f32.xlu0 %v1097
      %v1099 = vpop.xlane.xlu0 %1098
      %v1100 = vmax.f32 %v1050, %v1052
      %1101 = vmax.xlane.f32.xlu0 %v1100
      %v1102 = vpop.xlane.xlu0 %1101
      %v1103 = vmax.f32 %v1054, %v1056
      %1104 = vmax.xlane.f32.xlu0 %v1103
      %v1105 = vpop.xlane.xlu0 %1104
      %v1106 = vsub.f32 %v980, %v1060
      %v1107 = vsub.f32 %v982, %v1060
      %v1108 = vsub.f32 %v984, %v1063
      %v1109 = vsub.f32 %v986, %v1063
      %v1110 = vsub.f32 %v990, %v1066
      %v1111 = vsub.f32 %v992, %v1066
      %v1112 = vsub.f32 %v994, %v1069
      %v1113 = vsub.f32 %v996, %v1069
      %v1114 = vsub.f32 %v1000, %v1072
      %v1115 = vsub.f32 %v1002, %v1072
      %v1116 = vsub.f32 %v1004, %v1075
      %v1117 = vsub.f32 %v1006, %v1075
      %v1118 = vsub.f32 %v1010, %v1078
      %v1119 = vsub.f32 %v1012, %v1078
      %v1120 = vsub.f32 %v1014, %v1081
      %v1121 = vsub.f32 %v1016, %v1081
      %v1122 = vsub.f32 %v1020, %v1084
      %v1123 = vsub.f32 %v1022, %v1084
      %v1124 = vsub.f32 %v1024, %v1087
      %v1125 = vsub.f32 %v1026, %v1087
      %v1126 = vsub.f32 %v1030, %v1090
      %v1127 = vsub.f32 %v1032, %v1090
      %v1128 = vsub.f32 %v1034, %v1093
      %v1129 = vsub.f32 %v1036, %v1093
      %v1130 = vsub.f32 %v1040, %v1096
      %v1131 = vsub.f32 %v1042, %v1096
      %v1132 = vsub.f32 %v1044, %v1099
      %v1133 = vsub.f32 %v1046, %v1099
      %v1134 = vsub.f32 %v1050, %v1102
      %v1135 = vsub.f32 %v1052, %v1102
      %v1136 = vsub.f32 %v1054, %v1105
      %v1137 = vsub.f32 %v1056, %v1105
      %v1138 = vmul.f32 %v1106, 1.442695
      %v1139 = vpow.pop %v1138
      %v1140 = vmul.f32 %v1107, 1.442695
      %v1141 = vpow.pop %v1140
      %v1142 = vmul.f32 %v1108, 1.442695
      %v1143 = vpow.pop %v1142
      %v1144 = vmul.f32 %v1109, 1.442695
      %v1145 = vpow.pop %v1144
      %v1146 = vmul.f32 %v1110, 1.442695
      %v1147 = vpow.pop %v1146
      %v1148 = vmul.f32 %v1111, 1.442695
      %v1149 = vpow.pop %v1148
      %v1150 = vmul.f32 %v1112, 1.442695
      %v1151 = vpow.pop %v1150
      %v1152 = vmul.f32 %v1113, 1.442695
      %v1153 = vpow.pop %v1152
      %v1154 = vmul.f32 %v1114, 1.442695
      %v1155 = vpow.pop %v1154
      %v1156 = vmul.f32 %v1115, 1.442695
      %v1157 = vpow.pop %v1156
      %v1158 = vmul.f32 %v1116, 1.442695
      %v1159 = vpow.pop %v1158
      %v1160 = vmul.f32 %v1117, 1.442695
      %v1161 = vpow.pop %v1160
      %v1162 = vmul.f32 %v1118, 1.442695
      %v1163 = vpow.pop %v1162
      %v1164 = vmul.f32 %v1119, 1.442695
      %v1165 = vpow.pop %v1164
      %v1166 = vmul.f32 %v1120, 1.442695
      %v1167 = vpow.pop %v1166
      %v1168 = vmul.f32 %v1121, 1.442695
      %v1169 = vpow.pop %v1168
      %v1170 = vmul.f32 %v1122, 1.442695
      %v1171 = vpow.pop %v1170
      %v1172 = vmul.f32 %v1123, 1.442695
      %v1173 = vpow.pop %v1172
      %v1174 = vmul.f32 %v1124, 1.442695
      %v1175 = vpow.pop %v1174
      %v1176 = vmul.f32 %v1125, 1.442695
      %v1177 = vpow.pop %v1176
      %v1178 = vmul.f32 %v1126, 1.442695
      %v1179 = vpow.pop %v1178
      %v1180 = vmul.f32 %v1127, 1.442695
      %v1181 = vpow.pop %v1180
      %v1182 = vmul.f32 %v1128, 1.442695
      %v1183 = vpow.pop %v1182
      %v1184 = vmul.f32 %v1129, 1.442695
      %v1185 = vpow.pop %v1184
      %v1186 = vmul.f32 %v1130, 1.442695
      %v1187 = vpow.pop %v1186
      %v1188 = vmul.f32 %v1131, 1.442695
      %v1189 = vpow.pop %v1188
      %v1190 = vmul.f32 %v1132, 1.442695
      %v1191 = vpow.pop %v1190
      %v1192 = vmul.f32 %v1133, 1.442695
      %v1193 = vpow.pop %v1192
      %v1194 = vmul.f32 %v1134, 1.442695
      %v1195 = vpow.pop %v1194
      %v1196 = vmul.f32 %v1135, 1.442695
      %v1197 = vpow.pop %v1196
      %v1198 = vmul.f32 %v1136, 1.442695
      %v1199 = vpow.pop %v1198
      %v1200 = vmul.f32 %v1137, 1.442695
      %v1201 = vpow.pop %v1200
      %v1202 = vadd.f32 %v1139, %v1141
      %1203 = vadd.xlane.f32.xlu0 %v1202
      %v1204 = vpop.xlane.xlu0 %1203
      %v1205 = vadd.f32 %v1143, %v1145
      %1206 = vadd.xlane.f32.xlu0 %v1205
      %v1207 = vpop.xlane.xlu0 %1206
      %v1208 = vadd.f32 %v1147, %v1149
      %1209 = vadd.xlane.f32.xlu0 %v1208
      %v1210 = vpop.xlane.xlu0 %1209
      %v1211 = vadd.f32 %v1151, %v1153
      %1212 = vadd.xlane.f32.xlu0 %v1211
      %v1213 = vpop.xlane.xlu0 %1212
      %v1214 = vadd.f32 %v1155, %v1157
      %1215 = vadd.xlane.f32.xlu0 %v1214
      %v1216 = vpop.xlane.xlu0 %1215
      %v1217 = vadd.f32 %v1159, %v1161
      %1218 = vadd.xlane.f32.xlu0 %v1217
      %v1219 = vpop.xlane.xlu0 %1218
      %v1220 = vadd.f32 %v1163, %v1165
      %1221 = vadd.xlane.f32.xlu0 %v1220
      %v1222 = vpop.xlane.xlu0 %1221
      %v1223 = vadd.f32 %v1167, %v1169
      %1224 = vadd.xlane.f32.xlu0 %v1223
      %v1225 = vpop.xlane.xlu0 %1224
      %v1226 = vadd.f32 %v1171, %v1173
      %1227 = vadd.xlane.f32.xlu0 %v1226
      %v1228 = vpop.xlane.xlu0 %1227
      %v1229 = vadd.f32 %v1175, %v1177
      %1230 = vadd.xlane.f32.xlu0 %v1229
      %v1231 = vpop.xlane.xlu0 %1230
      %v1232 = vadd.f32 %v1179, %v1181
      %1233 = vadd.xlane.f32.xlu0 %v1232
      %v1234 = vpop.xlane.xlu0 %1233
      %v1235 = vadd.f32 %v1183, %v1185
      %1236 = vadd.xlane.f32.xlu0 %v1235
      %v1237 = vpop.xlane.xlu0 %1236
      %v1238 = vadd.f32 %v1187, %v1189
      %1239 = vadd.xlane.f32.xlu0 %v1238
      %v1240 = vpop.xlane.xlu0 %1239
      %v1241 = vadd.f32 %v1191, %v1193
      %1242 = vadd.xlane.f32.xlu0 %v1241
      %v1243 = vpop.xlane.xlu0 %1242
      %v1244 = vadd.f32 %v1195, %v1197
      %1245 = vadd.xlane.f32.xlu0 %v1244
      %v1246 = vpop.xlane.xlu0 %1245
      %v1247 = vadd.f32 %v1199, %v1201
      %1248 = vadd.xlane.f32.xlu0 %v1247
      %v1249 = vpop.xlane.xlu0 %1248
      %v1250 = vpack.c.bf16 %v1143, %v1139
      %v1251 = vpack.c.bf16 %v1145, %v1141
      %v1252 = vpack.c.bf16 %v1151, %v1147
      %v1253 = vpack.c.bf16 %v1153, %v1149
      %v1254 = vpack.c.bf16 %v1159, %v1155
      %v1255 = vpack.c.bf16 %v1161, %v1157
      %v1256 = vpack.c.bf16 %v1167, %v1163
      %v1257 = vpack.c.bf16 %v1169, %v1165
      %v1258 = vpack.c.bf16 %v1175, %v1171
      %v1259 = vpack.c.bf16 %v1177, %v1173
      %v1260 = vpack.c.bf16 %v1183, %v1179
      %v1261 = vpack.c.bf16 %v1185, %v1181
      %v1262 = vpack.c.bf16 %v1191, %v1187
      %v1263 = vpack.c.bf16 %v1193, %v1189
      %v1264 = vpack.c.bf16 %v1199, %v1195
      %v1265 = vpack.c.bf16 %v1201, %v1197
      %v1266 = vld [vmem:[%s535] sm:$0xf]
      %v1267 = vld [vmem:[%s535 + $0x4] sm:$0xf]
      %v1268 = vld [vmem:[%s535 + $0x8] sm:$0xf]
      %v1269 = vld [vmem:[%s535 + $0xc] sm:$0xf]
      %v1270 = vld [vmem:[%s535 + $0x10] sm:$0xf]
      %v1271 = vld [vmem:[%s535 + $0x14] sm:$0xf]
      %v1272 = vld [vmem:[%s535 + $0x18] sm:$0xf]
      %v1273 = vld [vmem:[%s535 + $0x1c] sm:$0xf]
      %v1274 = vld [vmem:[%s535 + $0x20] sm:$0xf]
      %v1275 = vld [vmem:[%s535 + $0x24] sm:$0xf]
      %v1276 = vld [vmem:[%s535 + $0x28] sm:$0xf]
      %v1277 = vld [vmem:[%s535 + $0x2c] sm:$0xf]
      %v1278 = vld [vmem:[%s535 + $0x30] sm:$0xf]
      %v1279 = vld [vmem:[%s535 + $0x34] sm:$0xf]
      %v1280 = vld [vmem:[%s535 + $0x38] sm:$0xf]
      %v1281 = vld [vmem:[%s535 + $0x3c] sm:$0xf]
      %v1282 = vld [vmem:[%s535 + $0x40] sm:$0xf]
      %v1283 = vld [vmem:[%s535 + $0x44] sm:$0xf]
      %v1284 = vld [vmem:[%s535 + $0x48] sm:$0xf]
      %v1285 = vld [vmem:[%s535 + $0x4c] sm:$0xf]
      %v1286 = vld [vmem:[%s535 + $0x50] sm:$0xf]
      %v1287 = vld [vmem:[%s535 + $0x54] sm:$0xf]
      %v1288 = vld [vmem:[%s535 + $0x58] sm:$0xf]
      %v1289 = vld [vmem:[%s535 + $0x5c] sm:$0xf]
      %v1290 = vld [vmem:[%s535 + $0x60] sm:$0xf]
      %v1291 = vld [vmem:[%s535 + $0x64] sm:$0xf]
      %v1292 = vld [vmem:[%s535 + $0x68] sm:$0xf]
      %v1293 = vld [vmem:[%s535 + $0x6c] sm:$0xf]
      %v1294 = vld [vmem:[%s535 + $0x70] sm:$0xf]
      %v1295 = vld [vmem:[%s535 + $0x74] sm:$0xf]
      %v1296 = vld [vmem:[%s535 + $0x78] sm:$0xf]
      %v1297 = vld [vmem:[%s535 + $0x7c] sm:$0xf]
      %v1330 = vunpack.c.l.b16 %v1266
      %v1331 = vunpack.c.l.b16 %v1267
      %v1332 = vunpack.c.l.b16 %v1268
      %v1333 = vunpack.c.l.b16 %v1269
      %v1334 = vunpack.c.l.b16 %v1270
      %v1335 = vunpack.c.l.b16 %v1271
      %v1336 = vunpack.c.l.b16 %v1272
      %v1337 = vunpack.c.l.b16 %v1273
      %v1338 = vunpack.c.l.b16 %v1274
      %v1339 = vunpack.c.l.b16 %v1275
      %v1340 = vunpack.c.l.b16 %v1276
      %v1341 = vunpack.c.l.b16 %v1277
      %v1342 = vunpack.c.l.b16 %v1278
      %v1343 = vunpack.c.l.b16 %v1279
      %v1344 = vunpack.c.l.b16 %v1280
      %v1345 = vunpack.c.l.b16 %v1281
      %v1346 = vunpack.c.l.b16 %v1282
      %v1347 = vunpack.c.l.b16 %v1283
      %v1348 = vunpack.c.l.b16 %v1284
      %v1349 = vunpack.c.l.b16 %v1285
      %v1350 = vunpack.c.l.b16 %v1286
      %v1351 = vunpack.c.l.b16 %v1287
      %v1352 = vunpack.c.l.b16 %v1288
      %v1353 = vunpack.c.l.b16 %v1289
      %v1354 = vunpack.c.l.b16 %v1290
      %v1355 = vunpack.c.l.b16 %v1291
      %v1356 = vunpack.c.l.b16 %v1292
      %v1357 = vunpack.c.l.b16 %v1293
      %v1358 = vunpack.c.l.b16 %v1294
      %v1359 = vunpack.c.l.b16 %v1295
      %v1360 = vunpack.c.l.b16 %v1296
      %v1361 = vunpack.c.l.b16 %v1297
      %v1362 = vpack.c.b16 %v1331, %v1330
      %v1363 = vpack.c.b16 %v1333, %v1332
      %v1364 = vpack.c.b16 %v1335, %v1334
      %v1365 = vpack.c.b16 %v1337, %v1336
      %v1366 = vpack.c.b16 %v1339, %v1338
      %v1367 = vpack.c.b16 %v1341, %v1340
      %v1368 = vpack.c.b16 %v1343, %v1342
      %v1369 = vpack.c.b16 %v1345, %v1344
      %v1370 = vpack.c.b16 %v1347, %v1346
      %v1371 = vpack.c.b16 %v1349, %v1348
      %v1372 = vpack.c.b16 %v1351, %v1350
      %v1373 = vpack.c.b16 %v1353, %v1352
      %v1374 = vpack.c.b16 %v1355, %v1354
      %v1375 = vpack.c.b16 %v1357, %v1356
      %v1376 = vpack.c.b16 %v1359, %v1358
      %v1377 = vpack.c.b16 %v1361, %v1360
      %1394 = vmatprep.subr.bf16.mxu0 0
      %1395 = vmatpush1.bf16.msra.mxu0 %v1362
      %1396 = vmatprep.subr.bf16.mxu0 0
      %1397 = vmatpush1.bf16.msra.mxu0 %v1363
      %1398 = vmatprep.subr.bf16.mxu0 0
      %1399 = vmatpush1.bf16.msra.mxu0 %v1364
      %1400 = vmatprep.subr.bf16.mxu0 0
      %1401 = vmatpush1.bf16.msra.mxu0 %v1365
      %1402 = vmatprep.subr.bf16.mxu0 0
      %1403 = vmatpush1.bf16.msra.mxu0 %v1366
      %1404 = vmatprep.subr.bf16.mxu0 0
      %1405 = vmatpush1.bf16.msra.mxu0 %v1367
      %1406 = vmatprep.subr.bf16.mxu0 0
      %1407 = vmatpush1.bf16.msra.mxu0 %v1368
      %1408 = vmatprep.subr.bf16.mxu0 0
      %1409 = vmatpush1.bf16.msra.mxu0 %v1369
      %1410 = vmatprep.subr.bf16.mxu0 0
      %1411 = vmatpush1.bf16.msra.mxu0 %v1370
      %1412 = vmatprep.subr.bf16.mxu0 0
      %1413 = vmatpush1.bf16.msra.mxu0 %v1371
      %1414 = vmatprep.subr.bf16.mxu0 0
      %1415 = vmatpush1.bf16.msra.mxu0 %v1372
      %1416 = vmatprep.subr.bf16.mxu0 0
      %1417 = vmatpush1.bf16.msra.mxu0 %v1373
      %1418 = vmatprep.subr.bf16.mxu0 0
      %1419 = vmatpush1.bf16.msra.mxu0 %v1374
      %1420 = vmatprep.subr.bf16.mxu0 0
      %1421 = vmatpush1.bf16.msra.mxu0 %v1375
      %1422 = vmatprep.subr.bf16.mxu0 0
      %1423 = vmatpush1.bf16.msra.mxu0 %v1376
      %1424 = vmatprep.subr.bf16.mxu0 0
      %1425 = vmatpush1.bf16.msra.mxu0 %v1377
      %1426 = vmatprep.mubr.bf16.mxu0 %v1251
      %1427 = vmatmul.mubr.bf16.gmra.mrb[0].mxu0 %v1250
      %v1428 = vpop.f32.mrb[0].mxu0
      %v1429 = vadd.f32 0.0, %v1428
      %v1430 = vpop.f32.mrb[0].mxu0
      %v1431 = vpop.f32.mrb[0].mxu0
      %v1432 = vadd.f32 0.0, %v1431
      %v1433 = vpop.f32.mrb[0].mxu0
      %1434 = vmatprep.mubr.bf16.mxu0 %v1253
      %1435 = vmatmul.mubr.bf16.gmra.mrb[0].mxu0 %v1252
      %v1436 = vpop.f32.mrb[0].mxu0
      %v1437 = vadd.f32 0.0, %v1436
      %v1438 = vpop.f32.mrb[0].mxu0
      %v1439 = vpop.f32.mrb[0].mxu0
      %v1440 = vadd.f32 0.0, %v1439
      %v1441 = vpop.f32.mrb[0].mxu0
      %1442 = vmatprep.mubr.bf16.mxu0 %v1255
      %1443 = vmatmul.mubr.bf16.gmra.mrb[0].mxu0 %v1254
      %v1444 = vpop.f32.mrb[0].mxu0
      %v1445 = vadd.f32 0.0, %v1444
      %v1446 = vpop.f32.mrb[0].mxu0
      %v1447 = vpop.f32.mrb[0].mxu0
      %v1448 = vadd.f32 0.0, %v1447
      %v1449 = vpop.f32.mrb[0].mxu0
      %1450 = vmatprep.mubr.bf16.mxu0 %v1257
      %1451 = vmatmul.mubr.bf16.gmra.mrb[0].mxu0 %v1256
      %v1452 = vpop.f32.mrb[0].mxu0
      %v1453 = vadd.f32 0.0, %v1452
      %v1454 = vpop.f32.mrb[0].mxu0
      %v1455 = vpop.f32.mrb[0].mxu0
      %v1456 = vadd.f32 0.0, %v1455
      %v1457 = vpop.f32.mrb[0].mxu0
      %1458 = vmatprep.mubr.bf16.mxu0 %v1259
      %1459 = vmatmul.mubr.bf16.gmra.mrb[0].mxu0 %v1258
      %v1460 = vpop.f32.mrb[0].mxu0
      %v1461 = vadd.f32 0.0, %v1460
      %v1462 = vpop.f32.mrb[0].mxu0
      %v1463 = vpop.f32.mrb[0].mxu0
      %v1464 = vadd.f32 0.0, %v1463
      %v1465 = vpop.f32.mrb[0].mxu0
      %1466 = vmatprep.mubr.bf16.mxu0 %v1261
      %1467 = vmatmul.mubr.bf16.gmra.mrb[0].mxu0 %v1260
      %v1468 = vpop.f32.mrb[0].mxu0
      %v1469 = vadd.f32 0.0, %v1468
      %v1470 = vpop.f32.mrb[0].mxu0
      %v1471 = vpop.f32.mrb[0].mxu0
      %v1472 = vadd.f32 0.0, %v1471
      %v1473 = vpop.f32.mrb[0].mxu0
      %1474 = vmatprep.mubr.bf16.mxu0 %v1263
      %1475 = vmatmul.mubr.bf16.gmra.mrb[0].mxu0 %v1262
      %v1476 = vpop.f32.mrb[0].mxu0
      %v1477 = vadd.f32 0.0, %v1476
      %v1478 = vpop.f32.mrb[0].mxu0
      %v1479 = vpop.f32.mrb[0].mxu0
      %v1480 = vadd.f32 0.0, %v1479
      %v1481 = vpop.f32.mrb[0].mxu0
      %1482 = vmatprep.mubr.bf16.mxu0 %v1265
      %1483 = vmatmul.mubr.bf16.gmra.mrb[0].mxu0 %v1264
      %v1484 = vpop.f32.mrb[0].mxu0
      %v1485 = vadd.f32 0.0, %v1484
      %v1486 = vpop.f32.mrb[0].mxu0
      %v1487 = vpop.f32.mrb[0].mxu0
      %v1488 = vadd.f32 0.0, %v1487
      %v1489 = vpop.f32.mrb[0].mxu0
      %1490 = vdwg.mxu0
      %v1491 = vrcp.pop %v1204
      %v1492 = vrcp.pop %v1207
      %v1493 = vrcp.pop %v1210
      %v1494 = vrcp.pop %v1213
      %v1495 = vrcp.pop %v1216
      %v1496 = vrcp.pop %v1219
      %v1497 = vrcp.pop %v1222
      %v1498 = vrcp.pop %v1225
      %v1499 = vrcp.pop %v1228
      %v1500 = vrcp.pop %v1231
      %v1501 = vrcp.pop %v1234
      %v1502 = vrcp.pop %v1237
      %v1503 = vrcp.pop %v1240
      %v1504 = vrcp.pop %v1243
      %v1505 = vrcp.pop %v1246
      %v1506 = vrcp.pop %v1249
      %v1507 = vmul.f32 %v1429, %v1491
      %v1508 = vmul.f32 %v1432, %v1492
      %v1509 = vmul.f32 %v1437, %v1493
      %v1510 = vmul.f32 %v1440, %v1494
      %v1511 = vmul.f32 %v1445, %v1495
      %v1512 = vmul.f32 %v1448, %v1496
      %v1513 = vmul.f32 %v1453, %v1497
      %v1514 = vmul.f32 %v1456, %v1498
      %v1515 = vmul.f32 %v1461, %v1499
      %v1516 = vmul.f32 %v1464, %v1500
      %v1517 = vmul.f32 %v1469, %v1501
      %v1518 = vmul.f32 %v1472, %v1502
      %v1519 = vmul.f32 %v1477, %v1503
      %v1520 = vmul.f32 %v1480, %v1504
      %v1521 = vmul.f32 %v1485, %v1505
      %v1522 = vmul.f32 %v1488, %v1506
      %v1523 = vld [vmem:[#allocation3] sm:$0xff]
      %v1524 = vld [vmem:[#allocation3 + $0x8] sm:$0xff]
      %v1525 = vld [vmem:[#allocation3 + $0x10] sm:$0xff]
      %v1526 = vld [vmem:[#allocation3 + $0x18] sm:$0xff]
      %v1527 = vld [vmem:[#allocation3 + $0x20] sm:$0xff]
      %v1528 = vld [vmem:[#allocation3 + $0x28] sm:$0xff]
      %v1529 = vld [vmem:[#allocation3 + $0x30] sm:$0xff]
      %v1530 = vld [vmem:[#allocation3 + $0x38] sm:$0xff]
      %v1531 = vld [vmem:[#allocation3 + $0x40] sm:$0xff]
      %v1532 = vld [vmem:[#allocation3 + $0x48] sm:$0xff]
      %v1533 = vld [vmem:[#allocation3 + $0x50] sm:$0xff]
      %v1534 = vld [vmem:[#allocation3 + $0x58] sm:$0xff]
      %v1535 = vld [vmem:[#allocation3 + $0x60] sm:$0xff]
      %v1536 = vld [vmem:[#allocation3 + $0x68] sm:$0xff]
      %v1537 = vld [vmem:[#allocation3 + $0x70] sm:$0xff]
      %v1538 = vld [vmem:[#allocation3 + $0x78] sm:$0xff]
      %v1539 = vpack.c.bf16 %v1508, %v1507
      %v1540 = vpack.c.bf16 %v1510, %v1509
      %v1541 = vpack.c.bf16 %v1512, %v1511
      %v1542 = vpack.c.bf16 %v1514, %v1513
      %v1543 = vpack.c.bf16 %v1516, %v1515
      %v1544 = vpack.c.bf16 %v1518, %v1517
      %v1545 = vpack.c.bf16 %v1520, %v1519
      %v1546 = vpack.c.bf16 %v1522, %v1521
      %v1547 = vld [vmem:[%s7] sm:$0xf]
      %v1549 = vsel %vm756, %v1539, 0
      %v1552 = vsel %vm756, %v1540, 0
      %v1555 = vsel %vm756, %v1541, 0
      %v1558 = vsel %vm756, %v1542, 0
      %v1561 = vsel %vm756, %v1543, 0
      %v1564 = vsel %vm756, %v1544, 0
      %v1567 = vsel %vm756, %v1545, 0
      %v1570 = vsel %vm756, %v1546, 0
      %v1573 = vsel %vm938, %v1547, 0
      %1575 = vmatprep.subr.bf16.mxu0 0
      %1576 = vmatpush1.bf16.msra.mxu0 %v1573
      %1577 = vmatprep.subr.bf16.mxu0 0
      %1578 = vmatpush1.bf16.msra.mxu0 0
      %1579 = vmatprep.subr.bf16.mxu0 0
      %1580 = vmatpush1.bf16.msra.mxu0 0
      %1581 = vmatprep.subr.bf16.mxu0 0
      %1582 = vmatpush1.bf16.msra.mxu0 0
      %1583 = vmatprep.subr.bf16.mxu0 0
      %1584 = vmatpush1.bf16.msra.mxu0 0
      %1585 = vmatprep.subr.bf16.mxu0 0
      %1586 = vmatpush1.bf16.msra.mxu0 0
      %1587 = vmatprep.subr.bf16.mxu0 0
      %1588 = vmatpush1.bf16.msra.mxu0 0
      %1589 = vmatprep.subr.bf16.mxu0 0
      %1590 = vmatpush1.bf16.msra.mxu0 0
      %1591 = vmatprep.subr.bf16.mxu0 0
      %1592 = vmatpush1.bf16.msra.mxu0 0
      %1593 = vmatprep.subr.bf16.mxu0 0
      %1594 = vmatpush1.bf16.msra.mxu0 0
      %1595 = vmatprep.subr.bf16.mxu0 0
      %1596 = vmatpush1.bf16.msra.mxu0 0
      %1597 = vmatprep.subr.bf16.mxu0 0
      %1598 = vmatpush1.bf16.msra.mxu0 0
      %1599 = vmatprep.subr.bf16.mxu0 0
      %1600 = vmatpush1.bf16.msra.mxu0 0
      %1601 = vmatprep.subr.bf16.mxu0 0
      %1602 = vmatpush1.bf16.msra.mxu0 0
      %1603 = vmatprep.subr.bf16.mxu0 0
      %1604 = vmatpush1.bf16.msra.mxu0 0
      %1605 = vmatprep.subr.bf16.mxu0 0
      %1606 = vmatpush1.bf16.msra.mxu0 0
      %1607 = vmatprep.mubr.bf16.mxu0 0
      %1608 = vmatmul.mubr.bf16.gmra.mrb[0].mxu0 %v1549
      %v1609 = vpop.f32.mrb[0].mxu0
      %v1610 = vadd.f32 0.0, %v1609
      %v1611 = vpop.f32.mrb[0].mxu0
      %v1612 = vpop.f32.mrb[0].mxu0
      %v1613 = vadd.f32 0.0, %v1612
      %v1614 = vpop.f32.mrb[0].mxu0
      %1615 = vmatprep.mubr.bf16.mxu0 0
      %1616 = vmatmul.mubr.bf16.gmra.mrb[0].mxu0 %v1552
      %v1617 = vpop.f32.mrb[0].mxu0
      %v1618 = vadd.f32 0.0, %v1617
      %v1619 = vpop.f32.mrb[0].mxu0
      %v1620 = vpop.f32.mrb[0].mxu0
      %v1621 = vadd.f32 0.0, %v1620
      %v1622 = vpop.f32.mrb[0].mxu0
      %1623 = vmatprep.mubr.bf16.mxu0 0
      %1624 = vmatmul.mubr.bf16.gmra.mrb[0].mxu0 %v1555
      %v1625 = vpop.f32.mrb[0].mxu0
      %v1626 = vadd.f32 0.0, %v1625
      %v1627 = vpop.f32.mrb[0].mxu0
      %v1628 = vpop.f32.mrb[0].mxu0
      %v1629 = vadd.f32 0.0, %v1628
      %v1630 = vpop.f32.mrb[0].mxu0
      %1631 = vmatprep.mubr.bf16.mxu0 0
      %1632 = vmatmul.mubr.bf16.gmra.mrb[0].mxu0 %v1558
      %v1633 = vpop.f32.mrb[0].mxu0
      %v1634 = vadd.f32 0.0, %v1633
      %v1635 = vpop.f32.mrb[0].mxu0
      %v1636 = vpop.f32.mrb[0].mxu0
      %v1637 = vadd.f32 0.0, %v1636
      %v1638 = vpop.f32.mrb[0].mxu0
      %1639 = vmatprep.mubr.bf16.mxu0 0
      %1640 = vmatmul.mubr.bf16.gmra.mrb[0].mxu0 %v1561
      %v1641 = vpop.f32.mrb[0].mxu0
      %v1642 = vadd.f32 0.0, %v1641
      %v1643 = vpop.f32.mrb[0].mxu0
      %v1644 = vpop.f32.mrb[0].mxu0
      %v1645 = vadd.f32 0.0, %v1644
      %v1646 = vpop.f32.mrb[0].mxu0
      %1647 = vmatprep.mubr.bf16.mxu0 0
      %1648 = vmatmul.mubr.bf16.gmra.mrb[0].mxu0 %v1564
      %v1649 = vpop.f32.mrb[0].mxu0
      %v1650 = vadd.f32 0.0, %v1649
      %v1651 = vpop.f32.mrb[0].mxu0
      %v1652 = vpop.f32.mrb[0].mxu0
      %v1653 = vadd.f32 0.0, %v1652
      %v1654 = vpop.f32.mrb[0].mxu0
      %1655 = vmatprep.mubr.bf16.mxu0 0
      %1656 = vmatmul.mubr.bf16.gmra.mrb[0].mxu0 %v1567
      %v1657 = vpop.f32.mrb[0].mxu0
      %v1658 = vadd.f32 0.0, %v1657
      %v1659 = vpop.f32.mrb[0].mxu0
      %v1660 = vpop.f32.mrb[0].mxu0
      %v1661 = vadd.f32 0.0, %v1660
      %v1662 = vpop.f32.mrb[0].mxu0
      %1663 = vmatprep.mubr.bf16.mxu0 0
      %1664 = vmatmul.mubr.bf16.gmra.mrb[0].mxu0 %v1570
      %v1665 = vpop.f32.mrb[0].mxu0
      %v1666 = vadd.f32 0.0, %v1665
      %v1667 = vpop.f32.mrb[0].mxu0
      %v1668 = vpop.f32.mrb[0].mxu0
      %v1669 = vadd.f32 0.0, %v1668
      %v1670 = vpop.f32.mrb[0].mxu0
      %1671 = vdwg.mxu0
      %v1672 = vadd.f32 %v1523, %v1610
      %v1673 = vadd.f32 %v1524, %v1613
      %v1674 = vadd.f32 %v1525, %v1618
      %v1675 = vadd.f32 %v1526, %v1621
      %v1676 = vadd.f32 %v1527, %v1626
      %v1677 = vadd.f32 %v1528, %v1629
      %v1678 = vadd.f32 %v1529, %v1634
      %v1679 = vadd.f32 %v1530, %v1637
      %v1680 = vadd.f32 %v1531, %v1642
      %v1681 = vadd.f32 %v1532, %v1645
      %v1682 = vadd.f32 %v1533, %v1650
      %v1683 = vadd.f32 %v1534, %v1653
      %v1684 = vadd.f32 %v1535, %v1658
      %v1685 = vadd.f32 %v1536, %v1661
      %v1686 = vadd.f32 %v1537, %v1666
      %v1687 = vadd.f32 %v1538, %v1669
      %1688 = vst.msk [vmem:[#allocation3] sm:$0xff] %vm626, %v1672
      %1689 = vst.msk [vmem:[#allocation3 + $0x8] sm:$0xff] %vm626, %v1673
      %1690 = vst.msk [vmem:[#allocation3 + $0x10] sm:$0xff] %vm626, %v1674
      %1691 = vst.msk [vmem:[#allocation3 + $0x18] sm:$0xff] %vm626, %v1675
      %1692 = vst.msk [vmem:[#allocation3 + $0x20] sm:$0xff] %vm626, %v1676
      %1693 = vst.msk [vmem:[#allocation3 + $0x28] sm:$0xff] %vm626, %v1677
      %1694 = vst.msk [vmem:[#allocation3 + $0x30] sm:$0xff] %vm626, %v1678
      %1695 = vst.msk [vmem:[#allocation3 + $0x38] sm:$0xff] %vm626, %v1679
      %1696 = vst.msk [vmem:[#allocation3 + $0x40] sm:$0xff] %vm626, %v1680
      %1697 = vst.msk [vmem:[#allocation3 + $0x48] sm:$0xff] %vm626, %v1681
      %1698 = vst.msk [vmem:[#allocation3 + $0x50] sm:$0xff] %vm626, %v1682
      %1699 = vst.msk [vmem:[#allocation3 + $0x58] sm:$0xff] %vm626, %v1683
      %1700 = vst.msk [vmem:[#allocation3 + $0x60] sm:$0xff] %vm626, %v1684
      %1701 = vst.msk [vmem:[#allocation3 + $0x68] sm:$0xff] %vm626, %v1685
      %1702 = vst.msk [vmem:[#allocation3 + $0x70] sm:$0xff] %vm626, %v1686
      %1703 = vst.msk [vmem:[#allocation3 + $0x78] sm:$0xff] %vm626, %v1687
      %v1704 = vld [vmem:[%s797] sm:$0xff]
      %v1705 = vld [vmem:[%s797 + $0x8] sm:$0xff]
      %v1706 = vld [vmem:[%s797 + $0x10] sm:$0xff]
      %v1707 = vld [vmem:[%s797 + $0x18] sm:$0xff]
      %v1708 = vld [vmem:[%s797 + $0x20] sm:$0xff]
      %v1709 = vld [vmem:[%s797 + $0x28] sm:$0xff]
      %v1710 = vld [vmem:[%s797 + $0x30] sm:$0xff]
      %v1711 = vld [vmem:[%s797 + $0x38] sm:$0xff]
      %s1712 = scalar_lea.vmem %s530, 8
      %v1713 = vld [vmem:[%s1712] sm:$0xff]
      %v1715 = vunpack.c.l.b16 %v1713
      %v1716 = vunpack.c.h.b16 %v1713
      %v1717 = vpack.c.b16 %v1715, %v1715
      %v1718 = vpack.c.b16 %v1716, %v1716
      %v1720 = vsel %vm756, %v1704, 0
      %v1723 = vsel %vm756, %v1705, 0
      %v1726 = vsel %vm756, %v1706, 0
      %v1729 = vsel %vm756, %v1707, 0
      %v1732 = vsel %vm756, %v1708, 0
      %v1735 = vsel %vm756, %v1709, 0
      %v1738 = vsel %vm756, %v1710, 0
      %v1741 = vsel %vm756, %v1711, 0
      %v1744 = vsel %vm938, %v1717, 0
      %v1747 = vsel %vm938, %v1718, 0
      %1749 = vmatprep.subr.bf16.mxu0 %v1747
      %1750 = vmatpush1.bf16.msra.mxu0 %v1744
      %1751 = vmatprep.subr.bf16.mxu0 0
      %1752 = vmatpush1.bf16.msra.mxu0 0
      %1753 = vmatprep.subr.bf16.mxu0 0
      %1754 = vmatpush1.bf16.msra.mxu0 0
      %1755 = vmatprep.subr.bf16.mxu0 0
      %1756 = vmatpush1.bf16.msra.mxu0 0
      %1757 = vmatprep.subr.bf16.mxu0 0
      %1758 = vmatpush1.bf16.msra.mxu0 0
      %1759 = vmatprep.subr.bf16.mxu0 0
      %1760 = vmatpush1.bf16.msra.mxu0 0
      %1761 = vmatprep.subr.bf16.mxu0 0
      %1762 = vmatpush1.bf16.msra.mxu0 0
      %1763 = vmatprep.subr.bf16.mxu0 0
      %1764 = vmatpush1.bf16.msra.mxu0 0
      %1765 = vmatprep.subr.bf16.mxu0 0
      %1766 = vmatpush1.bf16.msra.mxu0 0
      %1767 = vmatprep.subr.bf16.mxu0 0
      %1768 = vmatpush1.bf16.msra.mxu0 0
      %1769 = vmatprep.subr.bf16.mxu0 0
      %1770 = vmatpush1.bf16.msra.mxu0 0
      %1771 = vmatprep.subr.bf16.mxu0 0
      %1772 = vmatpush1.bf16.msra.mxu0 0
      %1773 = vmatprep.subr.bf16.mxu0 0
      %1774 = vmatpush1.bf16.msra.mxu0 0
      %1775 = vmatprep.subr.bf16.mxu0 0
      %1776 = vmatpush1.bf16.msra.mxu0 0
      %1777 = vmatprep.subr.bf16.mxu0 0
      %1778 = vmatpush1.bf16.msra.mxu0 0
      %1779 = vmatprep.subr.bf16.mxu0 0
      %1780 = vmatpush1.bf16.msra.mxu0 0
      %1781 = vmatprep.mubr.bf16.mxu0 0
      %1782 = vmatmul.mubr.bf16.gmra.mrb[0].mxu0 %v1720
      %v1783 = vpop.f32.mrb[0].mxu0
      %v1784 = vadd.f32 %v902, %v1783
      %v1785 = vpop.f32.mrb[0].mxu0
      %v1786 = vadd.f32 %v906, %v1785
      %v1787 = vpop.f32.mrb[0].mxu0
      %v1788 = vadd.f32 %v902, %v1787
      %v1789 = vpop.f32.mrb[0].mxu0
      %v1790 = vadd.f32 %v906, %v1789
      %1791 = vmatprep.mubr.bf16.mxu0 0
      %1792 = vmatmul.mubr.bf16.gmra.mrb[0].mxu0 %v1723
      %v1793 = vpop.f32.mrb[0].mxu0
      %v1794 = vadd.f32 %v902, %v1793
      %v1795 = vpop.f32.mrb[0].mxu0
      %v1796 = vadd.f32 %v906, %v1795
      %v1797 = vpop.f32.mrb[0].mxu0
      %v1798 = vadd.f32 %v902, %v1797
      %v1799 = vpop.f32.mrb[0].mxu0
      %v1800 = vadd.f32 %v906, %v1799
      %1801 = vmatprep.mubr.bf16.mxu0 0
      %1802 = vmatmul.mubr.bf16.gmra.mrb[0].mxu0 %v1726
      %v1803 = vpop.f32.mrb[0].mxu0
      %v1804 = vadd.f32 %v902, %v1803
      %v1805 = vpop.f32.mrb[0].mxu0
      %v1806 = vadd.f32 %v906, %v1805
      %v1807 = vpop.f32.mrb[0].mxu0
      %v1808 = vadd.f32 %v902, %v1807
      %v1809 = vpop.f32.mrb[0].mxu0
      %v1810 = vadd.f32 %v906, %v1809
      %1811 = vmatprep.mubr.bf16.mxu0 0
      %1812 = vmatmul.mubr.bf16.gmra.mrb[0].mxu0 %v1729
      %v1813 = vpop.f32.mrb[0].mxu0
      %v1814 = vadd.f32 %v902, %v1813
      %v1815 = vpop.f32.mrb[0].mxu0
      %v1816 = vadd.f32 %v906, %v1815
      %v1817 = vpop.f32.mrb[0].mxu0
      %v1818 = vadd.f32 %v902, %v1817
      %v1819 = vpop.f32.mrb[0].mxu0
      %v1820 = vadd.f32 %v906, %v1819
      %1821 = vmatprep.mubr.bf16.mxu0 0
      %1822 = vmatmul.mubr.bf16.gmra.mrb[0].mxu0 %v1732
      %v1823 = vpop.f32.mrb[0].mxu0
      %v1824 = vadd.f32 %v902, %v1823
      %v1825 = vpop.f32.mrb[0].mxu0
      %v1826 = vadd.f32 %v906, %v1825
      %v1827 = vpop.f32.mrb[0].mxu0
      %v1828 = vadd.f32 %v902, %v1827
      %v1829 = vpop.f32.mrb[0].mxu0
      %v1830 = vadd.f32 %v906, %v1829
      %1831 = vmatprep.mubr.bf16.mxu0 0
      %1832 = vmatmul.mubr.bf16.gmra.mrb[0].mxu0 %v1735
      %v1833 = vpop.f32.mrb[0].mxu0
      %v1834 = vadd.f32 %v902, %v1833
      %v1835 = vpop.f32.mrb[0].mxu0
      %v1836 = vadd.f32 %v906, %v1835
      %v1837 = vpop.f32.mrb[0].mxu0
      %v1838 = vadd.f32 %v902, %v1837
      %v1839 = vpop.f32.mrb[0].mxu0
      %v1840 = vadd.f32 %v906, %v1839
      %1841 = vmatprep.mubr.bf16.mxu0 0
      %1842 = vmatmul.mubr.bf16.gmra.mrb[0].mxu0 %v1738
      %v1843 = vpop.f32.mrb[0].mxu0
      %v1844 = vadd.f32 %v902, %v1843
      %v1845 = vpop.f32.mrb[0].mxu0
      %v1846 = vadd.f32 %v906, %v1845
      %v1847 = vpop.f32.mrb[0].mxu0
      %v1848 = vadd.f32 %v902, %v1847
      %v1849 = vpop.f32.mrb[0].mxu0
      %v1850 = vadd.f32 %v906, %v1849
      %1851 = vmatprep.mubr.bf16.mxu0 0
      %1852 = vmatmul.mubr.bf16.gmra.mrb[0].mxu0 %v1741
      %v1853 = vpop.f32.mrb[0].mxu0
      %v1854 = vadd.f32 %v902, %v1853
      %v1855 = vpop.f32.mrb[0].mxu0
      %v1856 = vadd.f32 %v906, %v1855
      %v1857 = vpop.f32.mrb[0].mxu0
      %v1858 = vadd.f32 %v902, %v1857
      %v1859 = vpop.f32.mrb[0].mxu0
      %v1860 = vadd.f32 %v906, %v1859
      %1861 = vdwg.mxu0
      %v1862 = vmax.f32 %v1784, %v1786
      %1863 = vmax.xlane.f32.xlu0 %v1862
      %v1864 = vpop.xlane.xlu0 %1863
      %v1865 = vmax.f32 %v1788, %v1790
      %1866 = vmax.xlane.f32.xlu0 %v1865
      %v1867 = vpop.xlane.xlu0 %1866
      %v1868 = vmax.f32 %v1794, %v1796
      %1869 = vmax.xlane.f32.xlu0 %v1868
      %v1870 = vpop.xlane.xlu0 %1869
      %v1871 = vmax.f32 %v1798, %v1800
      %1872 = vmax.xlane.f32.xlu0 %v1871
      %v1873 = vpop.xlane.xlu0 %1872
      %v1874 = vmax.f32 %v1804, %v1806
      %1875 = vmax.xlane.f32.xlu0 %v1874
      %v1876 = vpop.xlane.xlu0 %1875
      %v1877 = vmax.f32 %v1808, %v1810
      %1878 = vmax.xlane.f32.xlu0 %v1877
      %v1879 = vpop.xlane.xlu0 %1878
      %v1880 = vmax.f32 %v1814, %v1816
      %1881 = vmax.xlane.f32.xlu0 %v1880
      %v1882 = vpop.xlane.xlu0 %1881
      %v1883 = vmax.f32 %v1818, %v1820
      %1884 = vmax.xlane.f32.xlu0 %v1883
      %v1885 = vpop.xlane.xlu0 %1884
      %v1886 = vmax.f32 %v1824, %v1826
      %1887 = vmax.xlane.f32.xlu0 %v1886
      %v1888 = vpop.xlane.xlu0 %1887
      %v1889 = vmax.f32 %v1828, %v1830
      %1890 = vmax.xlane.f32.xlu0 %v1889
      %v1891 = vpop.xlane.xlu0 %1890
      %v1892 = vmax.f32 %v1834, %v1836
      %1893 = vmax.xlane.f32.xlu0 %v1892
      %v1894 = vpop.xlane.xlu0 %1893
      %v1895 = vmax.f32 %v1838, %v1840
      %1896 = vmax.xlane.f32.xlu0 %v1895
      %v1897 = vpop.xlane.xlu0 %1896
      %v1898 = vmax.f32 %v1844, %v1846
      %1899 = vmax.xlane.f32.xlu0 %v1898
      %v1900 = vpop.xlane.xlu0 %1899
      %v1901 = vmax.f32 %v1848, %v1850
      %1902 = vmax.xlane.f32.xlu0 %v1901
      %v1903 = vpop.xlane.xlu0 %1902
      %v1904 = vmax.f32 %v1854, %v1856
      %1905 = vmax.xlane.f32.xlu0 %v1904
      %v1906 = vpop.xlane.xlu0 %1905
      %v1907 = vmax.f32 %v1858, %v1860
      %1908 = vmax.xlane.f32.xlu0 %v1907
      %v1909 = vpop.xlane.xlu0 %1908
      %v1910 = vsub.f32 %v1784, %v1864
      %v1911 = vsub.f32 %v1786, %v1864
      %v1912 = vsub.f32 %v1788, %v1867
      %v1913 = vsub.f32 %v1790, %v1867
      %v1914 = vsub.f32 %v1794, %v1870
      %v1915 = vsub.f32 %v1796, %v1870
      %v1916 = vsub.f32 %v1798, %v1873
      %v1917 = vsub.f32 %v1800, %v1873
      %v1918 = vsub.f32 %v1804, %v1876
      %v1919 = vsub.f32 %v1806, %v1876
      %v1920 = vsub.f32 %v1808, %v1879
      %v1921 = vsub.f32 %v1810, %v1879
      %v1922 = vsub.f32 %v1814, %v1882
      %v1923 = vsub.f32 %v1816, %v1882
      %v1924 = vsub.f32 %v1818, %v1885
      %v1925 = vsub.f32 %v1820, %v1885
      %v1926 = vsub.f32 %v1824, %v1888
      %v1927 = vsub.f32 %v1826, %v1888
      %v1928 = vsub.f32 %v1828, %v1891
      %v1929 = vsub.f32 %v1830, %v1891
      %v1930 = vsub.f32 %v1834, %v1894
      %v1931 = vsub.f32 %v1836, %v1894
      %v1932 = vsub.f32 %v1838, %v1897
      %v1933 = vsub.f32 %v1840, %v1897
      %v1934 = vsub.f32 %v1844, %v1900
      %v1935 = vsub.f32 %v1846, %v1900
      %v1936 = vsub.f32 %v1848, %v1903
      %v1937 = vsub.f32 %v1850, %v1903
      %v1938 = vsub.f32 %v1854, %v1906
      %v1939 = vsub.f32 %v1856, %v1906
      %v1940 = vsub.f32 %v1858, %v1909
      %v1941 = vsub.f32 %v1860, %v1909
      %v1942 = vmul.f32 %v1910, 1.442695
      %v1943 = vpow.pop %v1942
      %v1944 = vmul.f32 %v1911, 1.442695
      %v1945 = vpow.pop %v1944
      %v1946 = vmul.f32 %v1912, 1.442695
      %v1947 = vpow.pop %v1946
      %v1948 = vmul.f32 %v1913, 1.442695
      %v1949 = vpow.pop %v1948
      %v1950 = vmul.f32 %v1914, 1.442695
      %v1951 = vpow.pop %v1950
      %v1952 = vmul.f32 %v1915, 1.442695
      %v1953 = vpow.pop %v1952
      %v1954 = vmul.f32 %v1916, 1.442695
      %v1955 = vpow.pop %v1954
      %v1956 = vmul.f32 %v1917, 1.442695
      %v1957 = vpow.pop %v1956
      %v1958 = vmul.f32 %v1918, 1.442695
      %v1959 = vpow.pop %v1958
      %v1960 = vmul.f32 %v1919, 1.442695
      %v1961 = vpow.pop %v1960
      %v1962 = vmul.f32 %v1920, 1.442695
      %v1963 = vpow.pop %v1962
      %v1964 = vmul.f32 %v1921, 1.442695
      %v1965 = vpow.pop %v1964
      %v1966 = vmul.f32 %v1922, 1.442695
      %v1967 = vpow.pop %v1966
      %v1968 = vmul.f32 %v1923, 1.442695
      %v1969 = vpow.pop %v1968
      %v1970 = vmul.f32 %v1924, 1.442695
      %v1971 = vpow.pop %v1970
      %v1972 = vmul.f32 %v1925, 1.442695
      %v1973 = vpow.pop %v1972
      %v1974 = vmul.f32 %v1926, 1.442695
      %v1975 = vpow.pop %v1974
      %v1976 = vmul.f32 %v1927, 1.442695
      %v1977 = vpow.pop %v1976
      %v1978 = vmul.f32 %v1928, 1.442695
      %v1979 = vpow.pop %v1978
      %v1980 = vmul.f32 %v1929, 1.442695
      %v1981 = vpow.pop %v1980
      %v1982 = vmul.f32 %v1930, 1.442695
      %v1983 = vpow.pop %v1982
      %v1984 = vmul.f32 %v1931, 1.442695
      %v1985 = vpow.pop %v1984
      %v1986 = vmul.f32 %v1932, 1.442695
      %v1987 = vpow.pop %v1986
      %v1988 = vmul.f32 %v1933, 1.442695
      %v1989 = vpow.pop %v1988
      %v1990 = vmul.f32 %v1934, 1.442695
      %v1991 = vpow.pop %v1990
      %v1992 = vmul.f32 %v1935, 1.442695
      %v1993 = vpow.pop %v1992
      %v1994 = vmul.f32 %v1936, 1.442695
      %v1995 = vpow.pop %v1994
      %v1996 = vmul.f32 %v1937, 1.442695
      %v1997 = vpow.pop %v1996
      %v1998 = vmul.f32 %v1938, 1.442695
      %v1999 = vpow.pop %v1998
      %v2000 = vmul.f32 %v1939, 1.442695
      %v2001 = vpow.pop %v2000
      %v2002 = vmul.f32 %v1940, 1.442695
      %v2003 = vpow.pop %v2002
      %v2004 = vmul.f32 %v1941, 1.442695
      %v2005 = vpow.pop %v2004
      %v2006 = vadd.f32 %v1943, %v1945
      %2007 = vadd.xlane.f32.xlu0 %v2006
      %v2008 = vpop.xlane.xlu0 %2007
      %v2009 = vadd.f32 %v1947, %v1949
      %2010 = vadd.xlane.f32.xlu0 %v2009
      %v2011 = vpop.xlane.xlu0 %2010
      %v2012 = vadd.f32 %v1951, %v1953
      %2013 = vadd.xlane.f32.xlu0 %v2012
      %v2014 = vpop.xlane.xlu0 %2013
      %v2015 = vadd.f32 %v1955, %v1957
      %2016 = vadd.xlane.f32.xlu0 %v2015
      %v2017 = vpop.xlane.xlu0 %2016
      %v2018 = vadd.f32 %v1959, %v1961
      %2019 = vadd.xlane.f32.xlu0 %v2018
      %v2020 = vpop.xlane.xlu0 %2019
      %v2021 = vadd.f32 %v1963, %v1965
      %2022 = vadd.xlane.f32.xlu0 %v2021
      %v2023 = vpop.xlane.xlu0 %2022
      %v2024 = vadd.f32 %v1967, %v1969
      %2025 = vadd.xlane.f32.xlu0 %v2024
      %v2026 = vpop.xlane.xlu0 %2025
      %v2027 = vadd.f32 %v1971, %v1973
      %2028 = vadd.xlane.f32.xlu0 %v2027
      %v2029 = vpop.xlane.xlu0 %2028
      %v2030 = vadd.f32 %v1975, %v1977
      %2031 = vadd.xlane.f32.xlu0 %v2030
      %v2032 = vpop.xlane.xlu0 %2031
      %v2033 = vadd.f32 %v1979, %v1981
      %2034 = vadd.xlane.f32.xlu0 %v2033
      %v2035 = vpop.xlane.xlu0 %2034
      %v2036 = vadd.f32 %v1983, %v1985
      %2037 = vadd.xlane.f32.xlu0 %v2036
      %v2038 = vpop.xlane.xlu0 %2037
      %v2039 = vadd.f32 %v1987, %v1989
      %2040 = vadd.xlane.f32.xlu0 %v2039
      %v2041 = vpop.xlane.xlu0 %2040
      %v2042 = vadd.f32 %v1991, %v1993
      %2043 = vadd.xlane.f32.xlu0 %v2042
      %v2044 = vpop.xlane.xlu0 %2043
      %v2045 = vadd.f32 %v1995, %v1997
      %2046 = vadd.xlane.f32.xlu0 %v2045
      %v2047 = vpop.xlane.xlu0 %2046
      %v2048 = vadd.f32 %v1999, %v2001
      %2049 = vadd.xlane.f32.xlu0 %v2048
      %v2050 = vpop.xlane.xlu0 %2049
      %v2051 = vadd.f32 %v2003, %v2005
      %2052 = vadd.xlane.f32.xlu0 %v2051
      %v2053 = vpop.xlane.xlu0 %2052
      %v2054 = vpack.c.bf16 %v1947, %v1943
      %v2055 = vpack.c.bf16 %v1949, %v1945
      %v2056 = vpack.c.bf16 %v1955, %v1951
      %v2057 = vpack.c.bf16 %v1957, %v1953
      %v2058 = vpack.c.bf16 %v1963, %v1959
      %v2059 = vpack.c.bf16 %v1965, %v1961
      %v2060 = vpack.c.bf16 %v1971, %v1967
      %v2061 = vpack.c.bf16 %v1973, %v1969
      %v2062 = vpack.c.bf16 %v1979, %v1975
      %v2063 = vpack.c.bf16 %v1981, %v1977
      %v2064 = vpack.c.bf16 %v1987, %v1983
      %v2065 = vpack.c.bf16 %v1989, %v1985
      %v2066 = vpack.c.bf16 %v1995, %v1991
      %v2067 = vpack.c.bf16 %v1997, %v1993
      %v2068 = vpack.c.bf16 %v2003, %v1999
      %v2069 = vpack.c.bf16 %v2005, %v2001
      %s2070 = scalar_lea.vmem %s535, 128
      %v2071 = vld [vmem:[%s2070] sm:$0xf]
      %v2072 = vld [vmem:[%s2070 + $0x4] sm:$0xf]
      %v2073 = vld [vmem:[%s2070 + $0x8] sm:$0xf]
      %v2074 = vld [vmem:[%s2070 + $0xc] sm:$0xf]
      %v2075 = vld [vmem:[%s2070 + $0x10] sm:$0xf]
      %v2076 = vld [vmem:[%s2070 + $0x14] sm:$0xf]
      %v2077 = vld [vmem:[%s2070 + $0x18] sm:$0xf]
      %v2078 = vld [vmem:[%s2070 + $0x1c] sm:$0xf]
      %v2079 = vld [vmem:[%s2070 + $0x20] sm:$0xf]
      %v2080 = vld [vmem:[%s2070 + $0x24] sm:$0xf]
      %v2081 = vld [vmem:[%s2070 + $0x28] sm:$0xf]
      %v2082 = vld [vmem:[%s2070 + $0x2c] sm:$0xf]
      %v2083 = vld [vmem:[%s2070 + $0x30] sm:$0xf]
      %v2084 = vld [vmem:[%s2070 + $0x34] sm:$0xf]
      %v2085 = vld [vmem:[%s2070 + $0x38] sm:$0xf]
      %v2086 = vld [vmem:[%s2070 + $0x3c] sm:$0xf]
      %v2087 = vld [vmem:[%s2070 + $0x40] sm:$0xf]
      %v2088 = vld [vmem:[%s2070 + $0x44] sm:$0xf]
      %v2089 = vld [vmem:[%s2070 + $0x48] sm:$0xf]
      %v2090 = vld [vmem:[%s2070 + $0x4c] sm:$0xf]
      %v2091 = vld [vmem:[%s2070 + $0x50] sm:$0xf]
      %v2092 = vld [vmem:[%s2070 + $0x54] sm:$0xf]
      %v2093 = vld [vmem:[%s2070 + $0x58] sm:$0xf]
      %v2094 = vld [vmem:[%s2070 + $0x5c] sm:$0xf]
      %v2095 = vld [vmem:[%s2070 + $0x60] sm:$0xf]
      %v2096 = vld [vmem:[%s2070 + $0x64] sm:$0xf]
      %v2097 = vld [vmem:[%s2070 + $0x68] sm:$0xf]
      %v2098 = vld [vmem:[%s2070 + $0x6c] sm:$0xf]
      %v2099 = vld [vmem:[%s2070 + $0x70] sm:$0xf]
      %v2100 = vld [vmem:[%s2070 + $0x74] sm:$0xf]
      %v2101 = vld [vmem:[%s2070 + $0x78] sm:$0xf]
      %v2102 = vld [vmem:[%s2070 + $0x7c] sm:$0xf]
      %v2135 = vunpack.c.l.b16 %v2071
      %v2136 = vunpack.c.l.b16 %v2072
      %v2137 = vunpack.c.l.b16 %v2073
      %v2138 = vunpack.c.l.b16 %v2074
      %v2139 = vunpack.c.l.b16 %v2075
      %v2140 = vunpack.c.l.b16 %v2076
      %v2141 = vunpack.c.l.b16 %v2077
      %v2142 = vunpack.c.l.b16 %v2078
      %v2143 = vunpack.c.l.b16 %v2079
      %v2144 = vunpack.c.l.b16 %v2080
      %v2145 = vunpack.c.l.b16 %v2081
      %v2146 = vunpack.c.l.b16 %v2082
      %v2147 = vunpack.c.l.b16 %v2083
      %v2148 = vunpack.c.l.b16 %v2084
      %v2149 = vunpack.c.l.b16 %v2085
      %v2150 = vunpack.c.l.b16 %v2086
      %v2151 = vunpack.c.l.b16 %v2087
      %v2152 = vunpack.c.l.b16 %v2088
      %v2153 = vunpack.c.l.b16 %v2089
      %v2154 = vunpack.c.l.b16 %v2090
      %v2155 = vunpack.c.l.b16 %v2091
      %v2156 = vunpack.c.l.b16 %v2092
      %v2157 = vunpack.c.l.b16 %v2093
      %v2158 = vunpack.c.l.b16 %v2094
      %v2159 = vunpack.c.l.b16 %v2095
      %v2160 = vunpack.c.l.b16 %v2096
      %v2161 = vunpack.c.l.b16 %v2097
      %v2162 = vunpack.c.l.b16 %v2098
      %v2163 = vunpack.c.l.b16 %v2099
      %v2164 = vunpack.c.l.b16 %v2100
      %v2165 = vunpack.c.l.b16 %v2101
      %v2166 = vunpack.c.l.b16 %v2102
      %v2167 = vpack.c.b16 %v2136, %v2135
      %v2168 = vpack.c.b16 %v2138, %v2137
      %v2169 = vpack.c.b16 %v2140, %v2139
      %v2170 = vpack.c.b16 %v2142, %v2141
      %v2171 = vpack.c.b16 %v2144, %v2143
      %v2172 = vpack.c.b16 %v2146, %v2145
      %v2173 = vpack.c.b16 %v2148, %v2147
      %v2174 = vpack.c.b16 %v2150, %v2149
      %v2175 = vpack.c.b16 %v2152, %v2151
      %v2176 = vpack.c.b16 %v2154, %v2153
      %v2177 = vpack.c.b16 %v2156, %v2155
      %v2178 = vpack.c.b16 %v2158, %v2157
      %v2179 = vpack.c.b16 %v2160, %v2159
      %v2180 = vpack.c.b16 %v2162, %v2161
      %v2181 = vpack.c.b16 %v2164, %v2163
      %v2182 = vpack.c.b16 %v2166, %v2165
      %2199 = vmatprep.subr.bf16.mxu0 0
      %2200 = vmatpush1.bf16.msra.mxu0 %v2167
      %2201 = vmatprep.subr.bf16.mxu0 0
      %2202 = vmatpush1.bf16.msra.mxu0 %v2168
      %2203 = vmatprep.subr.bf16.mxu0 0
      %2204 = vmatpush1.bf16.msra.mxu0 %v2169
      %2205 = vmatprep.subr.bf16.mxu0 0
      %2206 = vmatpush1.bf16.msra.mxu0 %v2170
      %2207 = vmatprep.subr.bf16.mxu0 0
      %2208 = vmatpush1.bf16.msra.mxu0 %v2171
      %2209 = vmatprep.subr.bf16.mxu0 0
      %2210 = vmatpush1.bf16.msra.mxu0 %v2172
      %2211 = vmatprep.subr.bf16.mxu0 0
      %2212 = vmatpush1.bf16.msra.mxu0 %v2173
      %2213 = vmatprep.subr.bf16.mxu0 0
      %2214 = vmatpush1.bf16.msra.mxu0 %v2174
      %2215 = vmatprep.subr.bf16.mxu0 0
      %2216 = vmatpush1.bf16.msra.mxu0 %v2175
      %2217 = vmatprep.subr.bf16.mxu0 0
      %2218 = vmatpush1.bf16.msra.mxu0 %v2176
      %2219 = vmatprep.subr.bf16.mxu0 0
      %2220 = vmatpush1.bf16.msra.mxu0 %v2177
      %2221 = vmatprep.subr.bf16.mxu0 0
      %2222 = vmatpush1.bf16.msra.mxu0 %v2178
      %2223 = vmatprep.subr.bf16.mxu0 0
      %2224 = vmatpush1.bf16.msra.mxu0 %v2179
      %2225 = vmatprep.subr.bf16.mxu0 0
      %2226 = vmatpush1.bf16.msra.mxu0 %v2180
      %2227 = vmatprep.subr.bf16.mxu0 0
      %2228 = vmatpush1.bf16.msra.mxu0 %v2181
      %2229 = vmatprep.subr.bf16.mxu0 0
      %2230 = vmatpush1.bf16.msra.mxu0 %v2182
      %2231 = vmatprep.mubr.bf16.mxu0 %v2055
      %2232 = vmatmul.mubr.bf16.gmra.mrb[0].mxu0 %v2054
      %v2233 = vpop.f32.mrb[0].mxu0
      %v2234 = vadd.f32 0.0, %v2233
      %v2235 = vpop.f32.mrb[0].mxu0
      %v2236 = vpop.f32.mrb[0].mxu0
      %v2237 = vadd.f32 0.0, %v2236
      %v2238 = vpop.f32.mrb[0].mxu0
      %2239 = vmatprep.mubr.bf16.mxu0 %v2057
      %2240 = vmatmul.mubr.bf16.gmra.mrb[0].mxu0 %v2056
      %v2241 = vpop.f32.mrb[0].mxu0
      %v2242 = vadd.f32 0.0, %v2241
      %v2243 = vpop.f32.mrb[0].mxu0
      %v2244 = vpop.f32.mrb[0].mxu0
      %v2245 = vadd.f32 0.0, %v2244
      %v2246 = vpop.f32.mrb[0].mxu0
      %2247 = vmatprep.mubr.bf16.mxu0 %v2059
      %2248 = vmatmul.mubr.bf16.gmra.mrb[0].mxu0 %v2058
      %v2249 = vpop.f32.mrb[0].mxu0
      %v2250 = vadd.f32 0.0, %v2249
      %v2251 = vpop.f32.mrb[0].mxu0
      %v2252 = vpop.f32.mrb[0].mxu0
      %v2253 = vadd.f32 0.0, %v2252
      %v2254 = vpop.f32.mrb[0].mxu0
      %2255 = vmatprep.mubr.bf16.mxu0 %v2061
      %2256 = vmatmul.mubr.bf16.gmra.mrb[0].mxu0 %v2060
      %v2257 = vpop.f32.mrb[0].mxu0
      %v2258 = vadd.f32 0.0, %v2257
      %v2259 = vpop.f32.mrb[0].mxu0
      %v2260 = vpop.f32.mrb[0].mxu0
      %v2261 = vadd.f32 0.0, %v2260
      %v2262 = vpop.f32.mrb[0].mxu0
      %2263 = vmatprep.mubr.bf16.mxu0 %v2063
      %2264 = vmatmul.mubr.bf16.gmra.mrb[0].mxu0 %v2062
      %v2265 = vpop.f32.mrb[0].mxu0
      %v2266 = vadd.f32 0.0, %v2265
      %v2267 = vpop.f32.mrb[0].mxu0
      %v2268 = vpop.f32.mrb[0].mxu0
      %v2269 = vadd.f32 0.0, %v2268
      %v2270 = vpop.f32.mrb[0].mxu0
      %2271 = vmatprep.mubr.bf16.mxu0 %v2065
      %2272 = vmatmul.mubr.bf16.gmra.mrb[0].mxu0 %v2064
      %v2273 = vpop.f32.mrb[0].mxu0
      %v2274 = vadd.f32 0.0, %v2273
      %v2275 = vpop.f32.mrb[0].mxu0
      %v2276 = vpop.f32.mrb[0].mxu0
      %v2277 = vadd.f32 0.0, %v2276
      %v2278 = vpop.f32.mrb[0].mxu0
      %2279 = vmatprep.mubr.bf16.mxu0 %v2067
      %2280 = vmatmul.mubr.bf16.gmra.mrb[0].mxu0 %v2066
      %v2281 = vpop.f32.mrb[0].mxu0
      %v2282 = vadd.f32 0.0, %v2281
      %v2283 = vpop.f32.mrb[0].mxu0
      %v2284 = vpop.f32.mrb[0].mxu0
      %v2285 = vadd.f32 0.0, %v2284
      %v2286 = vpop.f32.mrb[0].mxu0
      %2287 = vmatprep.mubr.bf16.mxu0 %v2069
      %2288 = vmatmul.mubr.bf16.gmra.mrb[0].mxu0 %v2068
      %v2289 = vpop.f32.mrb[0].mxu0
      %v2290 = vadd.f32 0.0, %v2289
      %v2291 = vpop.f32.mrb[0].mxu0
      %v2292 = vpop.f32.mrb[0].mxu0
      %v2293 = vadd.f32 0.0, %v2292
      %v2294 = vpop.f32.mrb[0].mxu0
      %2295 = vdwg.mxu0
      %v2296 = vrcp.pop %v2008
      %v2297 = vrcp.pop %v2011
      %v2298 = vrcp.pop %v2014
      %v2299 = vrcp.pop %v2017
      %v2300 = vrcp.pop %v2020
      %v2301 = vrcp.pop %v2023
      %v2302 = vrcp.pop %v2026
      %v2303 = vrcp.pop %v2029
      %v2304 = vrcp.pop %v2032
      %v2305 = vrcp.pop %v2035
      %v2306 = vrcp.pop %v2038
      %v2307 = vrcp.pop %v2041
      %v2308 = vrcp.pop %v2044
      %v2309 = vrcp.pop %v2047
      %v2310 = vrcp.pop %v2050
      %v2311 = vrcp.pop %v2053
      %v2312 = vmul.f32 %v2234, %v2296
      %v2313 = vmul.f32 %v2237, %v2297
      %v2314 = vmul.f32 %v2242, %v2298
      %v2315 = vmul.f32 %v2245, %v2299
      %v2316 = vmul.f32 %v2250, %v2300
      %v2317 = vmul.f32 %v2253, %v2301
      %v2318 = vmul.f32 %v2258, %v2302
      %v2319 = vmul.f32 %v2261, %v2303
      %v2320 = vmul.f32 %v2266, %v2304
      %v2321 = vmul.f32 %v2269, %v2305
      %v2322 = vmul.f32 %v2274, %v2306
      %v2323 = vmul.f32 %v2277, %v2307
      %v2324 = vmul.f32 %v2282, %v2308
      %v2325 = vmul.f32 %v2285, %v2309
      %v2326 = vmul.f32 %v2290, %v2310
      %v2327 = vmul.f32 %v2293, %v2311
      %v2328 = vld [vmem:[#allocation3] sm:$0xff]
      %v2329 = vld [vmem:[#allocation3 + $0x8] sm:$0xff]
      %v2330 = vld [vmem:[#allocation3 + $0x10] sm:$0xff]
      %v2331 = vld [vmem:[#allocation3 + $0x18] sm:$0xff]
      %v2332 = vld [vmem:[#allocation3 + $0x20] sm:$0xff]
      %v2333 = vld [vmem:[#allocation3 + $0x28] sm:$0xff]
      %v2334 = vld [vmem:[#allocation3 + $0x30] sm:$0xff]
      %v2335 = vld [vmem:[#allocation3 + $0x38] sm:$0xff]
      %v2336 = vld [vmem:[#allocation3 + $0x40] sm:$0xff]
      %v2337 = vld [vmem:[#allocation3 + $0x48] sm:$0xff]
      %v2338 = vld [vmem:[#allocation3 + $0x50] sm:$0xff]
      %v2339 = vld [vmem:[#allocation3 + $0x58] sm:$0xff]
      %v2340 = vld [vmem:[#allocation3 + $0x60] sm:$0xff]
      %v2341 = vld [vmem:[#allocation3 + $0x68] sm:$0xff]
      %v2342 = vld [vmem:[#allocation3 + $0x70] sm:$0xff]
      %v2343 = vld [vmem:[#allocation3 + $0x78] sm:$0xff]
      %v2344 = vpack.c.bf16 %v2313, %v2312
      %v2345 = vpack.c.bf16 %v2315, %v2314
      %v2346 = vpack.c.bf16 %v2317, %v2316
      %v2347 = vpack.c.bf16 %v2319, %v2318
      %v2348 = vpack.c.bf16 %v2321, %v2320
      %v2349 = vpack.c.bf16 %v2323, %v2322
      %v2350 = vpack.c.bf16 %v2325, %v2324
      %v2351 = vpack.c.bf16 %v2327, %v2326
      %s2352 = scalar_lea.vmem %s7, 4
      %v2353 = vld [vmem:[%s2352] sm:$0xf]
      %v2355 = vsel %vm756, %v2344, 0
      %v2358 = vsel %vm756, %v2345, 0
      %v2361 = vsel %vm756, %v2346, 0
      %v2364 = vsel %vm756, %v2347, 0
      %v2367 = vsel %vm756, %v2348, 0
      %v2370 = vsel %vm756, %v2349, 0
      %v2373 = vsel %vm756, %v2350, 0
      %v2376 = vsel %vm756, %v2351, 0
      %v2379 = vsel %vm938, %v2353, 0
      %2381 = vmatprep.subr.bf16.mxu0 0
      %2382 = vmatpush1.bf16.msra.mxu0 %v2379
      %2383 = vmatprep.subr.bf16.mxu0 0
      %2384 = vmatpush1.bf16.msra.mxu0 0
      %2385 = vmatprep.subr.bf16.mxu0 0
      %2386 = vmatpush1.bf16.msra.mxu0 0
      %2387 = vmatprep.subr.bf16.mxu0 0
      %2388 = vmatpush1.bf16.msra.mxu0 0
      %2389 = vmatprep.subr.bf16.mxu0 0
      %2390 = vmatpush1.bf16.msra.mxu0 0
      %2391 = vmatprep.subr.bf16.mxu0 0
      %2392 = vmatpush1.bf16.msra.mxu0 0
      %2393 = vmatprep.subr.bf16.mxu0 0
      %2394 = vmatpush1.bf16.msra.mxu0 0
      %2395 = vmatprep.subr.bf16.mxu0 0
      %2396 = vmatpush1.bf16.msra.mxu0 0
      %2397 = vmatprep.subr.bf16.mxu0 0
      %2398 = vmatpush1.bf16.msra.mxu0 0
      %2399 = vmatprep.subr.bf16.mxu0 0
      %2400 = vmatpush1.bf16.msra.mxu0 0
      %2401 = vmatprep.subr.bf16.mxu0 0
      %2402 = vmatpush1.bf16.msra.mxu0 0
      %2403 = vmatprep.subr.bf16.mxu0 0
      %2404 = vmatpush1.bf16.msra.mxu0 0
      %2405 = vmatprep.subr.bf16.mxu0 0
      %2406 = vmatpush1.bf16.msra.mxu0 0
      %2407 = vmatprep.subr.bf16.mxu0 0
      %2408 = vmatpush1.bf16.msra.mxu0 0
      %2409 = vmatprep.subr.bf16.mxu0 0
      %2410 = vmatpush1.bf16.msra.mxu0 0
      %2411 = vmatprep.subr.bf16.mxu0 0
      %2412 = vmatpush1.bf16.msra.mxu0 0
      %2413 = vmatprep.mubr.bf16.mxu0 0
      %2414 = vmatmul.mubr.bf16.gmra.mrb[0].mxu0 %v2355
      %v2415 = vpop.f32.mrb[0].mxu0
      %v2416 = vadd.f32 0.0, %v2415
      %v2417 = vpop.f32.mrb[0].mxu0
      %v2418 = vpop.f32.mrb[0].mxu0
      %v2419 = vadd.f32 0.0, %v2418
      %v2420 = vpop.f32.mrb[0].mxu0
      %2421 = vmatprep.mubr.bf16.mxu0 0
      %2422 = vmatmul.mubr.bf16.gmra.mrb[0].mxu0 %v2358
      %v2423 = vpop.f32.mrb[0].mxu0
      %v2424 = vadd.f32 0.0, %v2423
      %v2425 = vpop.f32.mrb[0].mxu0
      %v2426 = vpop.f32.mrb[0].mxu0
      %v2427 = vadd.f32 0.0, %v2426
      %v2428 = vpop.f32.mrb[0].mxu0
      %2429 = vmatprep.mubr.bf16.mxu0 0
      %2430 = vmatmul.mubr.bf16.gmra.mrb[0].mxu0 %v2361
      %v2431 = vpop.f32.mrb[0].mxu0
      %v2432 = vadd.f32 0.0, %v2431
      %v2433 = vpop.f32.mrb[0].mxu0
      %v2434 = vpop.f32.mrb[0].mxu0
      %v2435 = vadd.f32 0.0, %v2434
      %v2436 = vpop.f32.mrb[0].mxu0
      %2437 = vmatprep.mubr.bf16.mxu0 0
      %2438 = vmatmul.mubr.bf16.gmra.mrb[0].mxu0 %v2364
      %v2439 = vpop.f32.mrb[0].mxu0
      %v2440 = vadd.f32 0.0, %v2439
      %v2441 = vpop.f32.mrb[0].mxu0
      %v2442 = vpop.f32.mrb[0].mxu0
      %v2443 = vadd.f32 0.0, %v2442
      %v2444 = vpop.f32.mrb[0].mxu0
      %2445 = vmatprep.mubr.bf16.mxu0 0
      %2446 = vmatmul.mubr.bf16.gmra.mrb[0].mxu0 %v2367
      %v2447 = vpop.f32.mrb[0].mxu0
      %v2448 = vadd.f32 0.0, %v2447
      %v2449 = vpop.f32.mrb[0].mxu0
      %v2450 = vpop.f32.mrb[0].mxu0
      %v2451 = vadd.f32 0.0, %v2450
      %v2452 = vpop.f32.mrb[0].mxu0
      %2453 = vmatprep.mubr.bf16.mxu0 0
      %2454 = vmatmul.mubr.bf16.gmra.mrb[0].mxu0 %v2370
      %v2455 = vpop.f32.mrb[0].mxu0
      %v2456 = vadd.f32 0.0, %v2455
      %v2457 = vpop.f32.mrb[0].mxu0
      %v2458 = vpop.f32.mrb[0].mxu0
      %v2459 = vadd.f32 0.0, %v2458
      %v2460 = vpop.f32.mrb[0].mxu0
      %2461 = vmatprep.mubr.bf16.mxu0 0
      %2462 = vmatmul.mubr.bf16.gmra.mrb[0].mxu0 %v2373
      %v2463 = vpop.f32.mrb[0].mxu0
      %v2464 = vadd.f32 0.0, %v2463
      %v2465 = vpop.f32.mrb[0].mxu0
      %v2466 = vpop.f32.mrb[0].mxu0
      %v2467 = vadd.f32 0.0, %v2466
      %v2468 = vpop.f32.mrb[0].mxu0
      %2469 = vmatprep.mubr.bf16.mxu0 0
      %2470 = vmatmul.mubr.bf16.gmra.mrb[0].mxu0 %v2376
      %v2471 = vpop.f32.mrb[0].mxu0
      %v2472 = vadd.f32 0.0, %v2471
      %v2473 = vpop.f32.mrb[0].mxu0
      %v2474 = vpop.f32.mrb[0].mxu0
      %v2475 = vadd.f32 0.0, %v2474
      %v2476 = vpop.f32.mrb[0].mxu0
      %2477 = vdwg.mxu0
      %v2478 = vadd.f32 %v2328, %v2416
      %v2479 = vadd.f32 %v2329, %v2419
      %v2480 = vadd.f32 %v2330, %v2424
      %v2481 = vadd.f32 %v2331, %v2427
      %v2482 = vadd.f32 %v2332, %v2432
      %v2483 = vadd.f32 %v2333, %v2435
      %v2484 = vadd.f32 %v2334, %v2440
      %v2485 = vadd.f32 %v2335, %v2443
      %v2486 = vadd.f32 %v2336, %v2448
      %v2487 = vadd.f32 %v2337, %v2451
      %v2488 = vadd.f32 %v2338, %v2456
      %v2489 = vadd.f32 %v2339, %v2459
      %v2490 = vadd.f32 %v2340, %v2464
      %v2491 = vadd.f32 %v2341, %v2467
      %v2492 = vadd.f32 %v2342, %v2472
      %v2493 = vadd.f32 %v2343, %v2475
      %2494 = vst.msk [vmem:[#allocation3] sm:$0xff] %vm626, %v2478
      %2495 = vst.msk [vmem:[#allocation3 + $0x8] sm:$0xff] %vm626, %v2479
      %2496 = vst.msk [vmem:[#allocation3 + $0x10] sm:$0xff] %vm626, %v2480
      %2497 = vst.msk [vmem:[#allocation3 + $0x18] sm:$0xff] %vm626, %v2481
      %2498 = vst.msk [vmem:[#allocation3 + $0x20] sm:$0xff] %vm626, %v2482
      %2499 = vst.msk [vmem:[#allocation3 + $0x28] sm:$0xff] %vm626, %v2483
      %2500 = vst.msk [vmem:[#allocation3 + $0x30] sm:$0xff] %vm626, %v2484
      %2501 = vst.msk [vmem:[#allocation3 + $0x38] sm:$0xff] %vm626, %v2485
      %2502 = vst.msk [vmem:[#allocation3 + $0x40] sm:$0xff] %vm626, %v2486
      %2503 = vst.msk [vmem:[#allocation3 + $0x48] sm:$0xff] %vm626, %v2487
      %2504 = vst.msk [vmem:[#allocation3 + $0x50] sm:$0xff] %vm626, %v2488
      %2505 = vst.msk [vmem:[#allocation3 + $0x58] sm:$0xff] %vm626, %v2489
      %2506 = vst.msk [vmem:[#allocation3 + $0x60] sm:$0xff] %vm626, %v2490
      %2507 = vst.msk [vmem:[#allocation3 + $0x68] sm:$0xff] %vm626, %v2491
      %2508 = vst.msk [vmem:[#allocation3 + $0x70] sm:$0xff] %vm626, %v2492
      %2509 = vst.msk [vmem:[#allocation3 + $0x78] sm:$0xff] %vm626, %v2493
      %v2510 = vld [vmem:[%s830] sm:$0xff]
      %v2511 = vld [vmem:[%s830 + $0x8] sm:$0xff]
      %v2512 = vld [vmem:[%s830 + $0x10] sm:$0xff]
      %v2513 = vld [vmem:[%s830 + $0x18] sm:$0xff]
      %v2514 = vld [vmem:[%s830 + $0x20] sm:$0xff]
      %v2515 = vld [vmem:[%s830 + $0x28] sm:$0xff]
      %v2516 = vld [vmem:[%s830 + $0x30] sm:$0xff]
      %v2517 = vld [vmem:[%s830 + $0x38] sm:$0xff]
      %s2518 = scalar_lea.vmem %s530, 16
      %v2519 = vld [vmem:[%s2518] sm:$0xff]
      %v2521 = vunpack.c.l.b16 %v2519
      %v2522 = vunpack.c.h.b16 %v2519
      %v2523 = vpack.c.b16 %v2521, %v2521
      %v2524 = vpack.c.b16 %v2522, %v2522
      %v2526 = vsel %vm756, %v2510, 0
      %v2529 = vsel %vm756, %v2511, 0
      %v2532 = vsel %vm756, %v2512, 0
      %v2535 = vsel %vm756, %v2513, 0
      %v2538 = vsel %vm756, %v2514, 0
      %v2541 = vsel %vm756, %v2515, 0
      %v2544 = vsel %vm756, %v2516, 0
      %v2547 = vsel %vm756, %v2517, 0
      %v2550 = vsel %vm938, %v2523, 0
      %v2553 = vsel %vm938, %v2524, 0
      %2555 = vmatprep.subr.bf16.mxu0 %v2553
      %2556 = vmatpush1.bf16.msra.mxu0 %v2550
      %2557 = vmatprep.subr.bf16.mxu0 0
      %2558 = vmatpush1.bf16.msra.mxu0 0
      %2559 = vmatprep.subr.bf16.mxu0 0
      %2560 = vmatpush1.bf16.msra.mxu0 0
      %2561 = vmatprep.subr.bf16.mxu0 0
      %2562 = vmatpush1.bf16.msra.mxu0 0
      %2563 = vmatprep.subr.bf16.mxu0 0
      %2564 = vmatpush1.bf16.msra.mxu0 0
      %2565 = vmatprep.subr.bf16.mxu0 0
      %2566 = vmatpush1.bf16.msra.mxu0 0
      %2567 = vmatprep.subr.bf16.mxu0 0
      %2568 = vmatpush1.bf16.msra.mxu0 0
      %2569 = vmatprep.subr.bf16.mxu0 0
      %2570 = vmatpush1.bf16.msra.mxu0 0
      %2571 = vmatprep.subr.bf16.mxu0 0
      %2572 = vmatpush1.bf16.msra.mxu0 0
      %2573 = vmatprep.subr.bf16.mxu0 0
      %2574 = vmatpush1.bf16.msra.mxu0 0
      %2575 = vmatprep.subr.bf16.mxu0 0
      %2576 = vmatpush1.bf16.msra.mxu0 0
      %2577 = vmatprep.subr.bf16.mxu0 0
      %2578 = vmatpush1.bf16.msra.mxu0 0
      %2579 = vmatprep.subr.bf16.mxu0 0
      %2580 = vmatpush1.bf16.msra.mxu0 0
      %2581 = vmatprep.subr.bf16.mxu0 0
      %2582 = vmatpush1.bf16.msra.mxu0 0
      %2583 = vmatprep.subr.bf16.mxu0 0
      %2584 = vmatpush1.bf16.msra.mxu0 0
      %2585 = vmatprep.subr.bf16.mxu0 0
      %2586 = vmatpush1.bf16.msra.mxu0 0
      %2587 = vmatprep.mubr.bf16.mxu0 0
      %2588 = vmatmul.mubr.bf16.gmra.mrb[0].mxu0 %v2526
      %v2589 = vpop.f32.mrb[0].mxu0
      %v2590 = vadd.f32 %v902, %v2589
      %v2591 = vpop.f32.mrb[0].mxu0
      %v2592 = vadd.f32 %v906, %v2591
      %v2593 = vpop.f32.mrb[0].mxu0
      %v2594 = vadd.f32 %v902, %v2593
      %v2595 = vpop.f32.mrb[0].mxu0
      %v2596 = vadd.f32 %v906, %v2595
      %2597 = vmatprep.mubr.bf16.mxu0 0
      %2598 = vmatmul.mubr.bf16.gmra.mrb[0].mxu0 %v2529
      %v2599 = vpop.f32.mrb[0].mxu0
      %v2600 = vadd.f32 %v902, %v2599
      %v2601 = vpop.f32.mrb[0].mxu0
      %v2602 = vadd.f32 %v906, %v2601
      %v2603 = vpop.f32.mrb[0].mxu0
      %v2604 = vadd.f32 %v902, %v2603
      %v2605 = vpop.f32.mrb[0].mxu0
      %v2606 = vadd.f32 %v906, %v2605
      %2607 = vmatprep.mubr.bf16.mxu0 0
      %2608 = vmatmul.mubr.bf16.gmra.mrb[0].mxu0 %v2532
      %v2609 = vpop.f32.mrb[0].mxu0
      %v2610 = vadd.f32 %v902, %v2609
      %v2611 = vpop.f32.mrb[0].mxu0
      %v2612 = vadd.f32 %v906, %v2611
      %v2613 = vpop.f32.mrb[0].mxu0
      %v2614 = vadd.f32 %v902, %v2613
      %v2615 = vpop.f32.mrb[0].mxu0
      %v2616 = vadd.f32 %v906, %v2615
      %2617 = vmatprep.mubr.bf16.mxu0 0
      %2618 = vmatmul.mubr.bf16.gmra.mrb[0].mxu0 %v2535
      %v2619 = vpop.f32.mrb[0].mxu0
      %v2620 = vadd.f32 %v902, %v2619
      %v2621 = vpop.f32.mrb[0].mxu0
      %v2622 = vadd.f32 %v906, %v2621
      %v2623 = vpop.f32.mrb[0].mxu0
      %v2624 = vadd.f32 %v902, %v2623
      %v2625 = vpop.f32.mrb[0].mxu0
      %v2626 = vadd.f32 %v906, %v2625
      %2627 = vmatprep.mubr.bf16.mxu0 0
      %2628 = vmatmul.mubr.bf16.gmra.mrb[0].mxu0 %v2538
      %v2629 = vpop.f32.mrb[0].mxu0
      %v2630 = vadd.f32 %v902, %v2629
      %v2631 = vpop.f32.mrb[0].mxu0
      %v2632 = vadd.f32 %v906, %v2631
      %v2633 = vpop.f32.mrb[0].mxu0
      %v2634 = vadd.f32 %v902, %v2633
      %v2635 = vpop.f32.mrb[0].mxu0
      %v2636 = vadd.f32 %v906, %v2635
      %2637 = vmatprep.mubr.bf16.mxu0 0
      %2638 = vmatmul.mubr.bf16.gmra.mrb[0].mxu0 %v2541
      %v2639 = vpop.f32.mrb[0].mxu0
      %v2640 = vadd.f32 %v902, %v2639
      %v2641 = vpop.f32.mrb[0].mxu0
      %v2642 = vadd.f32 %v906, %v2641
      %v2643 = vpop.f32.mrb[0].mxu0
      %v2644 = vadd.f32 %v902, %v2643
      %v2645 = vpop.f32.mrb[0].mxu0
      %v2646 = vadd.f32 %v906, %v2645
      %2647 = vmatprep.mubr.bf16.mxu0 0
      %2648 = vmatmul.mubr.bf16.gmra.mrb[0].mxu0 %v2544
      %v2649 = vpop.f32.mrb[0].mxu0
      %v2650 = vadd.f32 %v902, %v2649
      %v2651 = vpop.f32.mrb[0].mxu0
      %v2652 = vadd.f32 %v906, %v2651
      %v2653 = vpop.f32.mrb[0].mxu0
      %v2654 = vadd.f32 %v902, %v2653
      %v2655 = vpop.f32.mrb[0].mxu0
      %v2656 = vadd.f32 %v906, %v2655
      %2657 = vmatprep.mubr.bf16.mxu0 0
      %2658 = vmatmul.mubr.bf16.gmra.mrb[0].mxu0 %v2547
      %v2659 = vpop.f32.mrb[0].mxu0
      %v2660 = vadd.f32 %v902, %v2659
      %v2661 = vpop.f32.mrb[0].mxu0
      %v2662 = vadd.f32 %v906, %v2661
      %v2663 = vpop.f32.mrb[0].mxu0
      %v2664 = vadd.f32 %v902, %v2663
      %v2665 = vpop.f32.mrb[0].mxu0
      %v2666 = vadd.f32 %v906, %v2665
      %2667 = vdwg.mxu0
      %v2668 = vmax.f32 %v2590, %v2592
      %2669 = vmax.xlane.f32.xlu0 %v2668
      %v2670 = vpop.xlane.xlu0 %2669
      %v2671 = vmax.f32 %v2594, %v2596
      %2672 = vmax.xlane.f32.xlu0 %v2671
      %v2673 = vpop.xlane.xlu0 %2672
      %v2674 = vmax.f32 %v2600, %v2602
      %2675 = vmax.xlane.f32.xlu0 %v2674
      %v2676 = vpop.xlane.xlu0 %2675
      %v2677 = vmax.f32 %v2604, %v2606
      %2678 = vmax.xlane.f32.xlu0 %v2677
      %v2679 = vpop.xlane.xlu0 %2678
      %v2680 = vmax.f32 %v2610, %v2612
      %2681 = vmax.xlane.f32.xlu0 %v2680
      %v2682 = vpop.xlane.xlu0 %2681
      %v2683 = vmax.f32 %v2614, %v2616
      %2684 = vmax.xlane.f32.xlu0 %v2683
      %v2685 = vpop.xlane.xlu0 %2684
      %v2686 = vmax.f32 %v2620, %v2622
      %2687 = vmax.xlane.f32.xlu0 %v2686
      %v2688 = vpop.xlane.xlu0 %2687
      %v2689 = vmax.f32 %v2624, %v2626
      %2690 = vmax.xlane.f32.xlu0 %v2689
      %v2691 = vpop.xlane.xlu0 %2690
      %v2692 = vmax.f32 %v2630, %v2632
      %2693 = vmax.xlane.f32.xlu0 %v2692
      %v2694 = vpop.xlane.xlu0 %2693
      %v2695 = vmax.f32 %v2634, %v2636
      %2696 = vmax.xlane.f32.xlu0 %v2695
      %v2697 = vpop.xlane.xlu0 %2696
      %v2698 = vmax.f32 %v2640, %v2642
      %2699 = vmax.xlane.f32.xlu0 %v2698
      %v2700 = vpop.xlane.xlu0 %2699
      %v2701 = vmax.f32 %v2644, %v2646
      %2702 = vmax.xlane.f32.xlu0 %v2701
      %v2703 = vpop.xlane.xlu0 %2702
      %v2704 = vmax.f32 %v2650, %v2652
      %2705 = vmax.xlane.f32.xlu0 %v2704
      %v2706 = vpop.xlane.xlu0 %2705
      %v2707 = vmax.f32 %v2654, %v2656
      %2708 = vmax.xlane.f32.xlu0 %v2707
      %v2709 = vpop.xlane.xlu0 %2708
      %v2710 = vmax.f32 %v2660, %v2662
      %2711 = vmax.xlane.f32.xlu0 %v2710
      %v2712 = vpop.xlane.xlu0 %2711
      %v2713 = vmax.f32 %v2664, %v2666
      %2714 = vmax.xlane.f32.xlu0 %v2713
      %v2715 = vpop.xlane.xlu0 %2714
      %v2716 = vsub.f32 %v2590, %v2670
      %v2717 = vsub.f32 %v2592, %v2670
      %v2718 = vsub.f32 %v2594, %v2673
      %v2719 = vsub.f32 %v2596, %v2673
      %v2720 = vsub.f32 %v2600, %v2676
      %v2721 = vsub.f32 %v2602, %v2676
      %v2722 = vsub.f32 %v2604, %v2679
      %v2723 = vsub.f32 %v2606, %v2679
      %v2724 = vsub.f32 %v2610, %v2682
      %v2725 = vsub.f32 %v2612, %v2682
      %v2726 = vsub.f32 %v2614, %v2685
      %v2727 = vsub.f32 %v2616, %v2685
      %v2728 = vsub.f32 %v2620, %v2688
      %v2729 = vsub.f32 %v2622, %v2688
      %v2730 = vsub.f32 %v2624, %v2691
      %v2731 = vsub.f32 %v2626, %v2691
      %v2732 = vsub.f32 %v2630, %v2694
      %v2733 = vsub.f32 %v2632, %v2694
      %v2734 = vsub.f32 %v2634, %v2697
      %v2735 = vsub.f32 %v2636, %v2697
      %v2736 = vsub.f32 %v2640, %v2700
      %v2737 = vsub.f32 %v2642, %v2700
      %v2738 = vsub.f32 %v2644, %v2703
      %v2739 = vsub.f32 %v2646, %v2703
      %v2740 = vsub.f32 %v2650, %v2706
      %v2741 = vsub.f32 %v2652, %v2706
      %v2742 = vsub.f32 %v2654, %v2709
      %v2743 = vsub.f32 %v2656, %v2709
      %v2744 = vsub.f32 %v2660, %v2712
      %v2745 = vsub.f32 %v2662, %v2712
      %v2746 = vsub.f32 %v2664, %v2715
      %v2747 = vsub.f32 %v2666, %v2715
      %v2748 = vmul.f32 %v2716, 1.442695
      %v2749 = vpow.pop %v2748
      %v2750 = vmul.f32 %v2717, 1.442695
      %v2751 = vpow.pop %v2750
      %v2752 = vmul.f32 %v2718, 1.442695
      %v2753 = vpow.pop %v2752
      %v2754 = vmul.f32 %v2719, 1.442695
      %v2755 = vpow.pop %v2754
      %v2756 = vmul.f32 %v2720, 1.442695
      %v2757 = vpow.pop %v2756
      %v2758 = vmul.f32 %v2721, 1.442695
      %v2759 = vpow.pop %v2758
      %v2760 = vmul.f32 %v2722, 1.442695
      %v2761 = vpow.pop %v2760
      %v2762 = vmul.f32 %v2723, 1.442695
      %v2763 = vpow.pop %v2762
      %v2764 = vmul.f32 %v2724, 1.442695
      %v2765 = vpow.pop %v2764
      %v2766 = vmul.f32 %v2725, 1.442695
      %v2767 = vpow.pop %v2766
      %v2768 = vmul.f32 %v2726, 1.442695
      %v2769 = vpow.pop %v2768
      %v2770 = vmul.f32 %v2727, 1.442695
      %v2771 = vpow.pop %v2770
      %v2772 = vmul.f32 %v2728, 1.442695
      %v2773 = vpow.pop %v2772
      %v2774 = vmul.f32 %v2729, 1.442695
      %v2775 = vpow.pop %v2774
      %v2776 = vmul.f32 %v2730, 1.442695
      %v2777 = vpow.pop %v2776
      %v2778 = vmul.f32 %v2731, 1.442695
      %v2779 = vpow.pop %v2778
      %v2780 = vmul.f32 %v2732, 1.442695
      %v2781 = vpow.pop %v2780
      %v2782 = vmul.f32 %v2733, 1.442695
      %v2783 = vpow.pop %v2782
      %v2784 = vmul.f32 %v2734, 1.442695
      %v2785 = vpow.pop %v2784
      %v2786 = vmul.f32 %v2735, 1.442695
      %v2787 = vpow.pop %v2786
      %v2788 = vmul.f32 %v2736, 1.442695
      %v2789 = vpow.pop %v2788
      %v2790 = vmul.f32 %v2737, 1.442695
      %v2791 = vpow.pop %v2790
      %v2792 = vmul.f32 %v2738, 1.442695
      %v2793 = vpow.pop %v2792
      %v2794 = vmul.f32 %v2739, 1.442695
      %v2795 = vpow.pop %v2794
      %v2796 = vmul.f32 %v2740, 1.442695
      %v2797 = vpow.pop %v2796
      %v2798 = vmul.f32 %v2741, 1.442695
      %v2799 = vpow.pop %v2798
      %v2800 = vmul.f32 %v2742, 1.442695
      %v2801 = vpow.pop %v2800
      %v2802 = vmul.f32 %v2743, 1.442695
      %v2803 = vpow.pop %v2802
      %v2804 = vmul.f32 %v2744, 1.442695
      %v2805 = vpow.pop %v2804
      %v2806 = vmul.f32 %v2745, 1.442695
      %v2807 = vpow.pop %v2806
      %v2808 = vmul.f32 %v2746, 1.442695
      %v2809 = vpow.pop %v2808
      %v2810 = vmul.f32 %v2747, 1.442695
      %v2811 = vpow.pop %v2810
      %v2812 = vadd.f32 %v2749, %v2751
      %2813 = vadd.xlane.f32.xlu0 %v2812
      %v2814 = vpop.xlane.xlu0 %2813
      %v2815 = vadd.f32 %v2753, %v2755
      %2816 = vadd.xlane.f32.xlu0 %v2815
      %v2817 = vpop.xlane.xlu0 %2816
      %v2818 = vadd.f32 %v2757, %v2759
      %2819 = vadd.xlane.f32.xlu0 %v2818
      %v2820 = vpop.xlane.xlu0 %2819
      %v2821 = vadd.f32 %v2761, %v2763
      %2822 = vadd.xlane.f32.xlu0 %v2821
      %v2823 = vpop.xlane.xlu0 %2822
      %v2824 = vadd.f32 %v2765, %v2767
      %2825 = vadd.xlane.f32.xlu0 %v2824
      %v2826 = vpop.xlane.xlu0 %2825
      %v2827 = vadd.f32 %v2769, %v2771
      %2828 = vadd.xlane.f32.xlu0 %v2827
      %v2829 = vpop.xlane.xlu0 %2828
      %v2830 = vadd.f32 %v2773, %v2775
      %2831 = vadd.xlane.f32.xlu0 %v2830
      %v2832 = vpop.xlane.xlu0 %2831
      %v2833 = vadd.f32 %v2777, %v2779
      %2834 = vadd.xlane.f32.xlu0 %v2833
      %v2835 = vpop.xlane.xlu0 %2834
      %v2836 = vadd.f32 %v2781, %v2783
      %2837 = vadd.xlane.f32.xlu0 %v2836
      %v2838 = vpop.xlane.xlu0 %2837
      %v2839 = vadd.f32 %v2785, %v2787
      %2840 = vadd.xlane.f32.xlu0 %v2839
      %v2841 = vpop.xlane.xlu0 %2840
      %v2842 = vadd.f32 %v2789, %v2791
      %2843 = vadd.xlane.f32.xlu0 %v2842
      %v2844 = vpop.xlane.xlu0 %2843
      %v2845 = vadd.f32 %v2793, %v2795
      %2846 = vadd.xlane.f32.xlu0 %v2845
      %v2847 = vpop.xlane.xlu0 %2846
      %v2848 = vadd.f32 %v2797, %v2799
      %2849 = vadd.xlane.f32.xlu0 %v2848
      %v2850 = vpop.xlane.xlu0 %2849
      %v2851 = vadd.f32 %v2801, %v2803
      %2852 = vadd.xlane.f32.xlu0 %v2851
      %v2853 = vpop.xlane.xlu0 %2852
      %v2854 = vadd.f32 %v2805, %v2807
      %2855 = vadd.xlane.f32.xlu0 %v2854
      %v2856 = vpop.xlane.xlu0 %2855
      %v2857 = vadd.f32 %v2809, %v2811
      %2858 = vadd.xlane.f32.xlu0 %v2857
      %v2859 = vpop.xlane.xlu0 %2858
      %v2860 = vpack.c.bf16 %v2753, %v2749
      %v2861 = vpack.c.bf16 %v2755, %v2751
      %v2862 = vpack.c.bf16 %v2761, %v2757
      %v2863 = vpack.c.bf16 %v2763, %v2759
      %v2864 = vpack.c.bf16 %v2769, %v2765
      %v2865 = vpack.c.bf16 %v2771, %v2767
      %v2866 = vpack.c.bf16 %v2777, %v2773
      %v2867 = vpack.c.bf16 %v2779, %v2775
      %v2868 = vpack.c.bf16 %v2785, %v2781
      %v2869 = vpack.c.bf16 %v2787, %v2783
      %v2870 = vpack.c.bf16 %v2793, %v2789
      %v2871 = vpack.c.bf16 %v2795, %v2791
      %v2872 = vpack.c.bf16 %v2801, %v2797
      %v2873 = vpack.c.bf16 %v2803, %v2799
      %v2874 = vpack.c.bf16 %v2809, %v2805
      %v2875 = vpack.c.bf16 %v2811, %v2807
      %s2876 = scalar_lea.vmem %s535, 256
      %v2877 = vld [vmem:[%s2876] sm:$0xf]
      %v2878 = vld [vmem:[%s2876 + $0x4] sm:$0xf]
      %v2879 = vld [vmem:[%s2876 + $0x8] sm:$0xf]
      %v2880 = vld [vmem:[%s2876 + $0xc] sm:$0xf]
      %v2881 = vld [vmem:[%s2876 + $0x10] sm:$0xf]
      %v2882 = vld [vmem:[%s2876 + $0x14] sm:$0xf]
      %v2883 = vld [vmem:[%s2876 + $0x18] sm:$0xf]
      %v2884 = vld [vmem:[%s2876 + $0x1c] sm:$0xf]
      %v2885 = vld [vmem:[%s2876 + $0x20] sm:$0xf]
      %v2886 = vld [vmem:[%s2876 + $0x24] sm:$0xf]
      %v2887 = vld [vmem:[%s2876 + $0x28] sm:$0xf]
      %v2888 = vld [vmem:[%s2876 + $0x2c] sm:$0xf]
      %v2889 = vld [vmem:[%s2876 + $0x30] sm:$0xf]
      %v2890 = vld [vmem:[%s2876 + $0x34] sm:$0xf]
      %v2891 = vld [vmem:[%s2876 + $0x38] sm:$0xf]
      %v2892 = vld [vmem:[%s2876 + $0x3c] sm:$0xf]
      %v2893 = vld [vmem:[%s2876 + $0x40] sm:$0xf]
      %v2894 = vld [vmem:[%s2876 + $0x44] sm:$0xf]
      %v2895 = vld [vmem:[%s2876 + $0x48] sm:$0xf]
      %v2896 = vld [vmem:[%s2876 + $0x4c] sm:$0xf]
      %v2897 = vld [vmem:[%s2876 + $0x50] sm:$0xf]
      %v2898 = vld [vmem:[%s2876 + $0x54] sm:$0xf]
      %v2899 = vld [vmem:[%s2876 + $0x58] sm:$0xf]
      %v2900 = vld [vmem:[%s2876 + $0x5c] sm:$0xf]
      %v2901 = vld [vmem:[%s2876 + $0x60] sm:$0xf]
      %v2902 = vld [vmem:[%s2876 + $0x64] sm:$0xf]
      %v2903 = vld [vmem:[%s2876 + $0x68] sm:$0xf]
      %v2904 = vld [vmem:[%s2876 + $0x6c] sm:$0xf]
      %v2905 = vld [vmem:[%s2876 + $0x70] sm:$0xf]
      %v2906 = vld [vmem:[%s2876 + $0x74] sm:$0xf]
      %v2907 = vld [vmem:[%s2876 + $0x78] sm:$0xf]
      %v2908 = vld [vmem:[%s2876 + $0x7c] sm:$0xf]
      %v2941 = vunpack.c.l.b16 %v2877
      %v2942 = vunpack.c.l.b16 %v2878
      %v2943 = vunpack.c.l.b16 %v2879
      %v2944 = vunpack.c.l.b16 %v2880
      %v2945 = vunpack.c.l.b16 %v2881
      %v2946 = vunpack.c.l.b16 %v2882
      %v2947 = vunpack.c.l.b16 %v2883
      %v2948 = vunpack.c.l.b16 %v2884
      %v2949 = vunpack.c.l.b16 %v2885
      %v2950 = vunpack.c.l.b16 %v2886
      %v2951 = vunpack.c.l.b16 %v2887
      %v2952 = vunpack.c.l.b16 %v2888
      %v2953 = vunpack.c.l.b16 %v2889
      %v2954 = vunpack.c.l.b16 %v2890
      %v2955 = vunpack.c.l.b16 %v2891
      %v2956 = vunpack.c.l.b16 %v2892
      %v2957 = vunpack.c.l.b16 %v2893
      %v2958 = vunpack.c.l.b16 %v2894
      %v2959 = vunpack.c.l.b16 %v2895
      %v2960 = vunpack.c.l.b16 %v2896
      %v2961 = vunpack.c.l.b16 %v2897
      %v2962 = vunpack.c.l.b16 %v2898
      %v2963 = vunpack.c.l.b16 %v2899
      %v2964 = vunpack.c.l.b16 %v2900
      %v2965 = vunpack.c.l.b16 %v2901
      %v2966 = vunpack.c.l.b16 %v2902
      %v2967 = vunpack.c.l.b16 %v2903
      %v2968 = vunpack.c.l.b16 %v2904
      %v2969 = vunpack.c.l.b16 %v2905
      %v2970 = vunpack.c.l.b16 %v2906
      %v2971 = vunpack.c.l.b16 %v2907
      %v2972 = vunpack.c.l.b16 %v2908
      %v2973 = vpack.c.b16 %v2942, %v2941
      %v2974 = vpack.c.b16 %v2944, %v2943
      %v2975 = vpack.c.b16 %v2946, %v2945
      %v2976 = vpack.c.b16 %v2948, %v2947
      %v2977 = vpack.c.b16 %v2950, %v2949
      %v2978 = vpack.c.b16 %v2952, %v2951
      %v2979 = vpack.c.b16 %v2954, %v2953
      %v2980 = vpack.c.b16 %v2956, %v2955
      %v2981 = vpack.c.b16 %v2958, %v2957
      %v2982 = vpack.c.b16 %v2960, %v2959
      %v2983 = vpack.c.b16 %v2962, %v2961
      %v2984 = vpack.c.b16 %v2964, %v2963
      %v2985 = vpack.c.b16 %v2966, %v2965
      %v2986 = vpack.c.b16 %v2968, %v2967
      %v2987 = vpack.c.b16 %v2970, %v2969
      %v2988 = vpack.c.b16 %v2972, %v2971
      %3005 = vmatprep.subr.bf16.mxu0 0
      %3006 = vmatpush1.bf16.msra.mxu0 %v2973
      %3007 = vmatprep.subr.bf16.mxu0 0
      %3008 = vmatpush1.bf16.msra.mxu0 %v2974
      %3009 = vmatprep.subr.bf16.mxu0 0
      %3010 = vmatpush1.bf16.msra.mxu0 %v2975
      %3011 = vmatprep.subr.bf16.mxu0 0
      %3012 = vmatpush1.bf16.msra.mxu0 %v2976
      %3013 = vmatprep.subr.bf16.mxu0 0
      %3014 = vmatpush1.bf16.msra.mxu0 %v2977
      %3015 = vmatprep.subr.bf16.mxu0 0
      %3016 = vmatpush1.bf16.msra.mxu0 %v2978
      %3017 = vmatprep.subr.bf16.mxu0 0
      %3018 = vmatpush1.bf16.msra.mxu0 %v2979
      %3019 = vmatprep.subr.bf16.mxu0 0
      %3020 = vmatpush1.bf16.msra.mxu0 %v2980
      %3021 = vmatprep.subr.bf16.mxu0 0
      %3022 = vmatpush1.bf16.msra.mxu0 %v2981
      %3023 = vmatprep.subr.bf16.mxu0 0
      %3024 = vmatpush1.bf16.msra.mxu0 %v2982
      %3025 = vmatprep.subr.bf16.mxu0 0
      %3026 = vmatpush1.bf16.msra.mxu0 %v2983
      %3027 = vmatprep.subr.bf16.mxu0 0
      %3028 = vmatpush1.bf16.msra.mxu0 %v2984
      %3029 = vmatprep.subr.bf16.mxu0 0
      %3030 = vmatpush1.bf16.msra.mxu0 %v2985
      %3031 = vmatprep.subr.bf16.mxu0 0
      %3032 = vmatpush1.bf16.msra.mxu0 %v2986
      %3033 = vmatprep.subr.bf16.mxu0 0
      %3034 = vmatpush1.bf16.msra.mxu0 %v2987
      %3035 = vmatprep.subr.bf16.mxu0 0
      %3036 = vmatpush1.bf16.msra.mxu0 %v2988
      %3037 = vmatprep.mubr.bf16.mxu0 %v2861
      %3038 = vmatmul.mubr.bf16.gmra.mrb[0].mxu0 %v2860
      %v3039 = vpop.f32.mrb[0].mxu0
      %v3040 = vadd.f32 0.0, %v3039
      %v3041 = vpop.f32.mrb[0].mxu0
      %v3042 = vpop.f32.mrb[0].mxu0
      %v3043 = vadd.f32 0.0, %v3042
      %v3044 = vpop.f32.mrb[0].mxu0
      %3045 = vmatprep.mubr.bf16.mxu0 %v2863
      %3046 = vmatmul.mubr.bf16.gmra.mrb[0].mxu0 %v2862
      %v3047 = vpop.f32.mrb[0].mxu0
      %v3048 = vadd.f32 0.0, %v3047
      %v3049 = vpop.f32.mrb[0].mxu0
      %v3050 = vpop.f32.mrb[0].mxu0
      %v3051 = vadd.f32 0.0, %v3050
      %v3052 = vpop.f32.mrb[0].mxu0
      %3053 = vmatprep.mubr.bf16.mxu0 %v2865
      %3054 = vmatmul.mubr.bf16.gmra.mrb[0].mxu0 %v2864
      %v3055 = vpop.f32.mrb[0].mxu0
      %v3056 = vadd.f32 0.0, %v3055
      %v3057 = vpop.f32.mrb[0].mxu0
      %v3058 = vpop.f32.mrb[0].mxu0
      %v3059 = vadd.f32 0.0, %v3058
      %v3060 = vpop.f32.mrb[0].mxu0
      %3061 = vmatprep.mubr.bf16.mxu0 %v2867
      %3062 = vmatmul.mubr.bf16.gmra.mrb[0].mxu0 %v2866
      %v3063 = vpop.f32.mrb[0].mxu0
      %v3064 = vadd.f32 0.0, %v3063
      %v3065 = vpop.f32.mrb[0].mxu0
      %v3066 = vpop.f32.mrb[0].mxu0
      %v3067 = vadd.f32 0.0, %v3066
      %v3068 = vpop.f32.mrb[0].mxu0
      %3069 = vmatprep.mubr.bf16.mxu0 %v2869
      %3070 = vmatmul.mubr.bf16.gmra.mrb[0].mxu0 %v2868
      %v3071 = vpop.f32.mrb[0].mxu0
      %v3072 = vadd.f32 0.0, %v3071
      %v3073 = vpop.f32.mrb[0].mxu0
      %v3074 = vpop.f32.mrb[0].mxu0
      %v3075 = vadd.f32 0.0, %v3074
      %v3076 = vpop.f32.mrb[0].mxu0
      %3077 = vmatprep.mubr.bf16.mxu0 %v2871
      %3078 = vmatmul.mubr.bf16.gmra.mrb[0].mxu0 %v2870
      %v3079 = vpop.f32.mrb[0].mxu0
      %v3080 = vadd.f32 0.0, %v3079
      %v3081 = vpop.f32.mrb[0].mxu0
      %v3082 = vpop.f32.mrb[0].mxu0
      %v3083 = vadd.f32 0.0, %v3082
      %v3084 = vpop.f32.mrb[0].mxu0
      %3085 = vmatprep.mubr.bf16.mxu0 %v2873
      %3086 = vmatmul.mubr.bf16.gmra.mrb[0].mxu0 %v2872
      %v3087 = vpop.f32.mrb[0].mxu0
      %v3088 = vadd.f32 0.0, %v3087
      %v3089 = vpop.f32.mrb[0].mxu0
      %v3090 = vpop.f32.mrb[0].mxu0
      %v3091 = vadd.f32 0.0, %v3090
      %v3092 = vpop.f32.mrb[0].mxu0
      %3093 = vmatprep.mubr.bf16.mxu0 %v2875
      %3094 = vmatmul.mubr.bf16.gmra.mrb[0].mxu0 %v2874
      %v3095 = vpop.f32.mrb[0].mxu0
      %v3096 = vadd.f32 0.0, %v3095
      %v3097 = vpop.f32.mrb[0].mxu0
      %v3098 = vpop.f32.mrb[0].mxu0
      %v3099 = vadd.f32 0.0, %v3098
      %v3100 = vpop.f32.mrb[0].mxu0
      %3101 = vdwg.mxu0
      %v3102 = vrcp.pop %v2814
      %v3103 = vrcp.pop %v2817
      %v3104 = vrcp.pop %v2820
      %v3105 = vrcp.pop %v2823
      %v3106 = vrcp.pop %v2826
      %v3107 = vrcp.pop %v2829
      %v3108 = vrcp.pop %v2832
      %v3109 = vrcp.pop %v2835
      %v3110 = vrcp.pop %v2838
      %v3111 = vrcp.pop %v2841
      %v3112 = vrcp.pop %v2844
      %v3113 = vrcp.pop %v2847
      %v3114 = vrcp.pop %v2850
      %v3115 = vrcp.pop %v2853
      %v3116 = vrcp.pop %v2856
      %v3117 = vrcp.pop %v2859
      %v3118 = vmul.f32 %v3040, %v3102
      %v3119 = vmul.f32 %v3043, %v3103
      %v3120 = vmul.f32 %v3048, %v3104
      %v3121 = vmul.f32 %v3051, %v3105
      %v3122 = vmul.f32 %v3056, %v3106
      %v3123 = vmul.f32 %v3059, %v3107
      %v3124 = vmul.f32 %v3064, %v3108
      %v3125 = vmul.f32 %v3067, %v3109
      %v3126 = vmul.f32 %v3072, %v3110
      %v3127 = vmul.f32 %v3075, %v3111
      %v3128 = vmul.f32 %v3080, %v3112
      %v3129 = vmul.f32 %v3083, %v3113
      %v3130 = vmul.f32 %v3088, %v3114
      %v3131 = vmul.f32 %v3091, %v3115
      %v3132 = vmul.f32 %v3096, %v3116
      %v3133 = vmul.f32 %v3099, %v3117
      %v3134 = vld [vmem:[#allocation3] sm:$0xff]
      %v3135 = vld [vmem:[#allocation3 + $0x8] sm:$0xff]
      %v3136 = vld [vmem:[#allocation3 + $0x10] sm:$0xff]
      %v3137 = vld [vmem:[#allocation3 + $0x18] sm:$0xff]
      %v3138 = vld [vmem:[#allocation3 + $0x20] sm:$0xff]
      %v3139 = vld [vmem:[#allocation3 + $0x28] sm:$0xff]
      %v3140 = vld [vmem:[#allocation3 + $0x30] sm:$0xff]
      %v3141 = vld [vmem:[#allocation3 + $0x38] sm:$0xff]
      %v3142 = vld [vmem:[#allocation3 + $0x40] sm:$0xff]
      %v3143 = vld [vmem:[#allocation3 + $0x48] sm:$0xff]
      %v3144 = vld [vmem:[#allocation3 + $0x50] sm:$0xff]
      %v3145 = vld [vmem:[#allocation3 + $0x58] sm:$0xff]
      %v3146 = vld [vmem:[#allocation3 + $0x60] sm:$0xff]
      %v3147 = vld [vmem:[#allocation3 + $0x68] sm:$0xff]
      %v3148 = vld [vmem:[#allocation3 + $0x70] sm:$0xff]
      %v3149 = vld [vmem:[#allocation3 + $0x78] sm:$0xff]
      %v3150 = vpack.c.bf16 %v3119, %v3118
      %v3151 = vpack.c.bf16 %v3121, %v3120
      %v3152 = vpack.c.bf16 %v3123, %v3122
      %v3153 = vpack.c.bf16 %v3125, %v3124
      %v3154 = vpack.c.bf16 %v3127, %v3126
      %v3155 = vpack.c.bf16 %v3129, %v3128
      %v3156 = vpack.c.bf16 %v3131, %v3130
      %v3157 = vpack.c.bf16 %v3133, %v3132
      %s3158 = scalar_lea.vmem %s7, 8
      %v3159 = vld [vmem:[%s3158] sm:$0xf]
      %v3161 = vsel %vm756, %v3150, 0
      %v3164 = vsel %vm756, %v3151, 0
      %v3167 = vsel %vm756, %v3152, 0
      %v3170 = vsel %vm756, %v3153, 0
      %v3173 = vsel %vm756, %v3154, 0
      %v3176 = vsel %vm756, %v3155, 0
      %v3179 = vsel %vm756, %v3156, 0
      %v3182 = vsel %vm756, %v3157, 0
      %v3185 = vsel %vm938, %v3159, 0
      %3187 = vmatprep.subr.bf16.mxu0 0
      %3188 = vmatpush1.bf16.msra.mxu0 %v3185
      %3189 = vmatprep.subr.bf16.mxu0 0
      %3190 = vmatpush1.bf16.msra.mxu0 0
      %3191 = vmatprep.subr.bf16.mxu0 0
      %3192 = vmatpush1.bf16.msra.mxu0 0
      %3193 = vmatprep.subr.bf16.mxu0 0
      %3194 = vmatpush1.bf16.msra.mxu0 0
      %3195 = vmatprep.subr.bf16.mxu0 0
      %3196 = vmatpush1.bf16.msra.mxu0 0
      %3197 = vmatprep.subr.bf16.mxu0 0
      %3198 = vmatpush1.bf16.msra.mxu0 0
      %3199 = vmatprep.subr.bf16.mxu0 0
      %3200 = vmatpush1.bf16.msra.mxu0 0
      %3201 = vmatprep.subr.bf16.mxu0 0
      %3202 = vmatpush1.bf16.msra.mxu0 0
      %3203 = vmatprep.subr.bf16.mxu0 0
      %3204 = vmatpush1.bf16.msra.mxu0 0
      %3205 = vmatprep.subr.bf16.mxu0 0
      %3206 = vmatpush1.bf16.msra.mxu0 0
      %3207 = vmatprep.subr.bf16.mxu0 0
      %3208 = vmatpush1.bf16.msra.mxu0 0
      %3209 = vmatprep.subr.bf16.mxu0 0
      %3210 = vmatpush1.bf16.msra.mxu0 0
      %3211 = vmatprep.subr.bf16.mxu0 0
      %3212 = vmatpush1.bf16.msra.mxu0 0
      %3213 = vmatprep.subr.bf16.mxu0 0
      %3214 = vmatpush1.bf16.msra.mxu0 0
      %3215 = vmatprep.subr.bf16.mxu0 0
      %3216 = vmatpush1.bf16.msra.mxu0 0
      %3217 = vmatprep.subr.bf16.mxu0 0
      %3218 = vmatpush1.bf16.msra.mxu0 0
      %3219 = vmatprep.mubr.bf16.mxu0 0
      %3220 = vmatmul.mubr.bf16.gmra.mrb[0].mxu0 %v3161
      %v3221 = vpop.f32.mrb[0].mxu0
      %v3222 = vadd.f32 0.0, %v3221
      %v3223 = vpop.f32.mrb[0].mxu0
      %v3224 = vpop.f32.mrb[0].mxu0
      %v3225 = vadd.f32 0.0, %v3224
      %v3226 = vpop.f32.mrb[0].mxu0
      %3227 = vmatprep.mubr.bf16.mxu0 0
      %3228 = vmatmul.mubr.bf16.gmra.mrb[0].mxu0 %v3164
      %v3229 = vpop.f32.mrb[0].mxu0
      %v3230 = vadd.f32 0.0, %v3229
      %v3231 = vpop.f32.mrb[0].mxu0
      %v3232 = vpop.f32.mrb[0].mxu0
      %v3233 = vadd.f32 0.0, %v3232
      %v3234 = vpop.f32.mrb[0].mxu0
      %3235 = vmatprep.mubr.bf16.mxu0 0
      %3236 = vmatmul.mubr.bf16.gmra.mrb[0].mxu0 %v3167
      %v3237 = vpop.f32.mrb[0].mxu0
      %v3238 = vadd.f32 0.0, %v3237
      %v3239 = vpop.f32.mrb[0].mxu0
      %v3240 = vpop.f32.mrb[0].mxu0
      %v3241 = vadd.f32 0.0, %v3240
      %v3242 = vpop.f32.mrb[0].mxu0
      %3243 = vmatprep.mubr.bf16.mxu0 0
      %3244 = vmatmul.mubr.bf16.gmra.mrb[0].mxu0 %v3170
      %v3245 = vpop.f32.mrb[0].mxu0
      %v3246 = vadd.f32 0.0, %v3245
      %v3247 = vpop.f32.mrb[0].mxu0
      %v3248 = vpop.f32.mrb[0].mxu0
      %v3249 = vadd.f32 0.0, %v3248
      %v3250 = vpop.f32.mrb[0].mxu0
      %3251 = vmatprep.mubr.bf16.mxu0 0
      %3252 = vmatmul.mubr.bf16.gmra.mrb[0].mxu0 %v3173
      %v3253 = vpop.f32.mrb[0].mxu0
      %v3254 = vadd.f32 0.0, %v3253
      %v3255 = vpop.f32.mrb[0].mxu0
      %v3256 = vpop.f32.mrb[0].mxu0
      %v3257 = vadd.f32 0.0, %v3256
      %v3258 = vpop.f32.mrb[0].mxu0
      %3259 = vmatprep.mubr.bf16.mxu0 0
      %3260 = vmatmul.mubr.bf16.gmra.mrb[0].mxu0 %v3176
      %v3261 = vpop.f32.mrb[0].mxu0
      %v3262 = vadd.f32 0.0, %v3261
      %v3263 = vpop.f32.mrb[0].mxu0
      %v3264 = vpop.f32.mrb[0].mxu0
      %v3265 = vadd.f32 0.0, %v3264
      %v3266 = vpop.f32.mrb[0].mxu0
      %3267 = vmatprep.mubr.bf16.mxu0 0
      %3268 = vmatmul.mubr.bf16.gmra.mrb[0].mxu0 %v3179
      %v3269 = vpop.f32.mrb[0].mxu0
      %v3270 = vadd.f32 0.0, %v3269
      %v3271 = vpop.f32.mrb[0].mxu0
      %v3272 = vpop.f32.mrb[0].mxu0
      %v3273 = vadd.f32 0.0, %v3272
      %v3274 = vpop.f32.mrb[0].mxu0
      %3275 = vmatprep.mubr.bf16.mxu0 0
      %3276 = vmatmul.mubr.bf16.gmra.mrb[0].mxu0 %v3182
      %v3277 = vpop.f32.mrb[0].mxu0
      %v3278 = vadd.f32 0.0, %v3277
      %v3279 = vpop.f32.mrb[0].mxu0
      %v3280 = vpop.f32.mrb[0].mxu0
      %v3281 = vadd.f32 0.0, %v3280
      %v3282 = vpop.f32.mrb[0].mxu0
      %3283 = vdwg.mxu0
      %v3284 = vadd.f32 %v3134, %v3222
      %v3285 = vadd.f32 %v3135, %v3225
      %v3286 = vadd.f32 %v3136, %v3230
      %v3287 = vadd.f32 %v3137, %v3233
      %v3288 = vadd.f32 %v3138, %v3238
      %v3289 = vadd.f32 %v3139, %v3241
      %v3290 = vadd.f32 %v3140, %v3246
      %v3291 = vadd.f32 %v3141, %v3249
      %v3292 = vadd.f32 %v3142, %v3254
      %v3293 = vadd.f32 %v3143, %v3257
      %v3294 = vadd.f32 %v3144, %v3262
      %v3295 = vadd.f32 %v3145, %v3265
      %v3296 = vadd.f32 %v3146, %v3270
      %v3297 = vadd.f32 %v3147, %v3273
      %v3298 = vadd.f32 %v3148, %v3278
      %v3299 = vadd.f32 %v3149, %v3281
      %3300 = vst.msk [vmem:[#allocation3] sm:$0xff] %vm626, %v3284
      %3301 = vst.msk [vmem:[#allocation3 + $0x8] sm:$0xff] %vm626, %v3285
      %3302 = vst.msk [vmem:[#allocation3 + $0x10] sm:$0xff] %vm626, %v3286
      %3303 = vst.msk [vmem:[#allocation3 + $0x18] sm:$0xff] %vm626, %v3287
      %3304 = vst.msk [vmem:[#allocation3 + $0x20] sm:$0xff] %vm626, %v3288
      %3305 = vst.msk [vmem:[#allocation3 + $0x28] sm:$0xff] %vm626, %v3289
      %3306 = vst.msk [vmem:[#allocation3 + $0x30] sm:$0xff] %vm626, %v3290
      %3307 = vst.msk [vmem:[#allocation3 + $0x38] sm:$0xff] %vm626, %v3291
      %3308 = vst.msk [vmem:[#allocation3 + $0x40] sm:$0xff] %vm626, %v3292
      %3309 = vst.msk [vmem:[#allocation3 + $0x48] sm:$0xff] %vm626, %v3293
      %3310 = vst.msk [vmem:[#allocation3 + $0x50] sm:$0xff] %vm626, %v3294
      %3311 = vst.msk [vmem:[#allocation3 + $0x58] sm:$0xff] %vm626, %v3295
      %3312 = vst.msk [vmem:[#allocation3 + $0x60] sm:$0xff] %vm626, %v3296
      %3313 = vst.msk [vmem:[#allocation3 + $0x68] sm:$0xff] %vm626, %v3297
      %3314 = vst.msk [vmem:[#allocation3 + $0x70] sm:$0xff] %vm626, %v3298
      %3315 = vst.msk [vmem:[#allocation3 + $0x78] sm:$0xff] %vm626, %v3299
      %v3316 = vld [vmem:[%s863] sm:$0xff]
      %v3317 = vld [vmem:[%s863 + $0x8] sm:$0xff]
      %v3318 = vld [vmem:[%s863 + $0x10] sm:$0xff]
      %v3319 = vld [vmem:[%s863 + $0x18] sm:$0xff]
      %v3320 = vld [vmem:[%s863 + $0x20] sm:$0xff]
      %v3321 = vld [vmem:[%s863 + $0x28] sm:$0xff]
      %v3322 = vld [vmem:[%s863 + $0x30] sm:$0xff]
      %v3323 = vld [vmem:[%s863 + $0x38] sm:$0xff]
      %s3324 = scalar_lea.vmem %s530, 24
      %v3325 = vld [vmem:[%s3324] sm:$0xff]
      %v3327 = vunpack.c.l.b16 %v3325
      %v3328 = vunpack.c.h.b16 %v3325
      %v3329 = vpack.c.b16 %v3327, %v3327
      %v3330 = vpack.c.b16 %v3328, %v3328
      %v3332 = vsel %vm756, %v3316, 0
      %v3335 = vsel %vm756, %v3317, 0
      %v3338 = vsel %vm756, %v3318, 0
      %v3341 = vsel %vm756, %v3319, 0
      %v3344 = vsel %vm756, %v3320, 0
      %v3347 = vsel %vm756, %v3321, 0
      %v3350 = vsel %vm756, %v3322, 0
      %v3353 = vsel %vm756, %v3323, 0
      %v3356 = vsel %vm938, %v3329, 0
      %v3359 = vsel %vm938, %v3330, 0
      %3361 = vmatprep.subr.bf16.mxu0 %v3359
      %3362 = vmatpush1.bf16.msra.mxu0 %v3356
      %3363 = vmatprep.subr.bf16.mxu0 0
      %3364 = vmatpush1.bf16.msra.mxu0 0
      %3365 = vmatprep.subr.bf16.mxu0 0
      %3366 = vmatpush1.bf16.msra.mxu0 0
      %3367 = vmatprep.subr.bf16.mxu0 0
      %3368 = vmatpush1.bf16.msra.mxu0 0
      %3369 = vmatprep.subr.bf16.mxu0 0
      %3370 = vmatpush1.bf16.msra.mxu0 0
      %3371 = vmatprep.subr.bf16.mxu0 0
      %3372 = vmatpush1.bf16.msra.mxu0 0
      %3373 = vmatprep.subr.bf16.mxu0 0
      %3374 = vmatpush1.bf16.msra.mxu0 0
      %3375 = vmatprep.subr.bf16.mxu0 0
      %3376 = vmatpush1.bf16.msra.mxu0 0
      %3377 = vmatprep.subr.bf16.mxu0 0
      %3378 = vmatpush1.bf16.msra.mxu0 0
      %3379 = vmatprep.subr.bf16.mxu0 0
      %3380 = vmatpush1.bf16.msra.mxu0 0
      %3381 = vmatprep.subr.bf16.mxu0 0
      %3382 = vmatpush1.bf16.msra.mxu0 0
      %3383 = vmatprep.subr.bf16.mxu0 0
      %3384 = vmatpush1.bf16.msra.mxu0 0
      %3385 = vmatprep.subr.bf16.mxu0 0
      %3386 = vmatpush1.bf16.msra.mxu0 0
      %3387 = vmatprep.subr.bf16.mxu0 0
      %3388 = vmatpush1.bf16.msra.mxu0 0
      %3389 = vmatprep.subr.bf16.mxu0 0
      %3390 = vmatpush1.bf16.msra.mxu0 0
      %3391 = vmatprep.subr.bf16.mxu0 0
      %3392 = vmatpush1.bf16.msra.mxu0 0
      %3393 = vmatprep.mubr.bf16.mxu0 0
      %3394 = vmatmul.mubr.bf16.gmra.mrb[0].mxu0 %v3332
      %v3395 = vpop.f32.mrb[0].mxu0
      %v3396 = vadd.f32 %v902, %v3395
      %v3397 = vpop.f32.mrb[0].mxu0
      %v3398 = vadd.f32 %v906, %v3397
      %v3399 = vpop.f32.mrb[0].mxu0
      %v3400 = vadd.f32 %v902, %v3399
      %v3401 = vpop.f32.mrb[0].mxu0
      %v3402 = vadd.f32 %v906, %v3401
      %3403 = vmatprep.mubr.bf16.mxu0 0
      %3404 = vmatmul.mubr.bf16.gmra.mrb[0].mxu0 %v3335
      %v3405 = vpop.f32.mrb[0].mxu0
      %v3406 = vadd.f32 %v902, %v3405
      %v3407 = vpop.f32.mrb[0].mxu0
      %v3408 = vadd.f32 %v906, %v3407
      %v3409 = vpop.f32.mrb[0].mxu0
      %v3410 = vadd.f32 %v902, %v3409
      %v3411 = vpop.f32.mrb[0].mxu0
      %v3412 = vadd.f32 %v906, %v3411
      %3413 = vmatprep.mubr.bf16.mxu0 0
      %3414 = vmatmul.mubr.bf16.gmra.mrb[0].mxu0 %v3338
      %v3415 = vpop.f32.mrb[0].mxu0
      %v3416 = vadd.f32 %v902, %v3415
      %v3417 = vpop.f32.mrb[0].mxu0
      %v3418 = vadd.f32 %v906, %v3417
      %v3419 = vpop.f32.mrb[0].mxu0
      %v3420 = vadd.f32 %v902, %v3419
      %v3421 = vpop.f32.mrb[0].mxu0
      %v3422 = vadd.f32 %v906, %v3421
      %3423 = vmatprep.mubr.bf16.mxu0 0
      %3424 = vmatmul.mubr.bf16.gmra.mrb[0].mxu0 %v3341
      %v3425 = vpop.f32.mrb[0].mxu0
      %v3426 = vadd.f32 %v902, %v3425
      %v3427 = vpop.f32.mrb[0].mxu0
      %v3428 = vadd.f32 %v906, %v3427
      %v3429 = vpop.f32.mrb[0].mxu0
      %v3430 = vadd.f32 %v902, %v3429
      %v3431 = vpop.f32.mrb[0].mxu0
      %v3432 = vadd.f32 %v906, %v3431
      %3433 = vmatprep.mubr.bf16.mxu0 0
      %3434 = vmatmul.mubr.bf16.gmra.mrb[0].mxu0 %v3344
      %v3435 = vpop.f32.mrb[0].mxu0
      %v3436 = vadd.f32 %v902, %v3435
      %v3437 = vpop.f32.mrb[0].mxu0
      %v3438 = vadd.f32 %v906, %v3437
      %v3439 = vpop.f32.mrb[0].mxu0
      %v3440 = vadd.f32 %v902, %v3439
      %v3441 = vpop.f32.mrb[0].mxu0
      %v3442 = vadd.f32 %v906, %v3441
      %3443 = vmatprep.mubr.bf16.mxu0 0
      %3444 = vmatmul.mubr.bf16.gmra.mrb[0].mxu0 %v3347
      %v3445 = vpop.f32.mrb[0].mxu0
      %v3446 = vadd.f32 %v902, %v3445
      %v3447 = vpop.f32.mrb[0].mxu0
      %v3448 = vadd.f32 %v906, %v3447
      %v3449 = vpop.f32.mrb[0].mxu0
      %v3450 = vadd.f32 %v902, %v3449
      %v3451 = vpop.f32.mrb[0].mxu0
      %v3452 = vadd.f32 %v906, %v3451
      %3453 = vmatprep.mubr.bf16.mxu0 0
      %3454 = vmatmul.mubr.bf16.gmra.mrb[0].mxu0 %v3350
      %v3455 = vpop.f32.mrb[0].mxu0
      %v3456 = vadd.f32 %v902, %v3455
      %v3457 = vpop.f32.mrb[0].mxu0
      %v3458 = vadd.f32 %v906, %v3457
      %v3459 = vpop.f32.mrb[0].mxu0
      %v3460 = vadd.f32 %v902, %v3459
      %v3461 = vpop.f32.mrb[0].mxu0
      %v3462 = vadd.f32 %v906, %v3461
      %3463 = vmatprep.mubr.bf16.mxu0 0
      %3464 = vmatmul.mubr.bf16.gmra.mrb[0].mxu0 %v3353
      %v3465 = vpop.f32.mrb[0].mxu0
      %v3466 = vadd.f32 %v902, %v3465
      %v3467 = vpop.f32.mrb[0].mxu0
      %v3468 = vadd.f32 %v906, %v3467
      %v3469 = vpop.f32.mrb[0].mxu0
      %v3470 = vadd.f32 %v902, %v3469
      %v3471 = vpop.f32.mrb[0].mxu0
      %v3472 = vadd.f32 %v906, %v3471
      %3473 = vdwg.mxu0
      %v3474 = vmax.f32 %v3396, %v3398
      %3475 = vmax.xlane.f32.xlu0 %v3474
      %v3476 = vpop.xlane.xlu0 %3475
      %v3477 = vmax.f32 %v3400, %v3402
      %3478 = vmax.xlane.f32.xlu0 %v3477
      %v3479 = vpop.xlane.xlu0 %3478
      %v3480 = vmax.f32 %v3406, %v3408
      %3481 = vmax.xlane.f32.xlu0 %v3480
      %v3482 = vpop.xlane.xlu0 %3481
      %v3483 = vmax.f32 %v3410, %v3412
      %3484 = vmax.xlane.f32.xlu0 %v3483
      %v3485 = vpop.xlane.xlu0 %3484
      %v3486 = vmax.f32 %v3416, %v3418
      %3487 = vmax.xlane.f32.xlu0 %v3486
      %v3488 = vpop.xlane.xlu0 %3487
      %v3489 = vmax.f32 %v3420, %v3422
      %3490 = vmax.xlane.f32.xlu0 %v3489
      %v3491 = vpop.xlane.xlu0 %3490
      %v3492 = vmax.f32 %v3426, %v3428
      %3493 = vmax.xlane.f32.xlu0 %v3492
      %v3494 = vpop.xlane.xlu0 %3493
      %v3495 = vmax.f32 %v3430, %v3432
      %3496 = vmax.xlane.f32.xlu0 %v3495
      %v3497 = vpop.xlane.xlu0 %3496
      %v3498 = vmax.f32 %v3436, %v3438
      %3499 = vmax.xlane.f32.xlu0 %v3498
      %v3500 = vpop.xlane.xlu0 %3499
      %v3501 = vmax.f32 %v3440, %v3442
      %3502 = vmax.xlane.f32.xlu0 %v3501
      %v3503 = vpop.xlane.xlu0 %3502
      %v3504 = vmax.f32 %v3446, %v3448
      %3505 = vmax.xlane.f32.xlu0 %v3504
      %v3506 = vpop.xlane.xlu0 %3505
      %v3507 = vmax.f32 %v3450, %v3452
      %3508 = vmax.xlane.f32.xlu0 %v3507
      %v3509 = vpop.xlane.xlu0 %3508
      %v3510 = vmax.f32 %v3456, %v3458
      %3511 = vmax.xlane.f32.xlu0 %v3510
      %v3512 = vpop.xlane.xlu0 %3511
      %v3513 = vmax.f32 %v3460, %v3462
      %3514 = vmax.xlane.f32.xlu0 %v3513
      %v3515 = vpop.xlane.xlu0 %3514
      %v3516 = vmax.f32 %v3466, %v3468
      %3517 = vmax.xlane.f32.xlu0 %v3516
      %v3518 = vpop.xlane.xlu0 %3517
      %v3519 = vmax.f32 %v3470, %v3472
      %3520 = vmax.xlane.f32.xlu0 %v3519
      %v3521 = vpop.xlane.xlu0 %3520
      %v3522 = vsub.f32 %v3396, %v3476
      %v3523 = vsub.f32 %v3398, %v3476
      %v3524 = vsub.f32 %v3400, %v3479
      %v3525 = vsub.f32 %v3402, %v3479
      %v3526 = vsub.f32 %v3406, %v3482
      %v3527 = vsub.f32 %v3408, %v3482
      %v3528 = vsub.f32 %v3410, %v3485
      %v3529 = vsub.f32 %v3412, %v3485
      %v3530 = vsub.f32 %v3416, %v3488
      %v3531 = vsub.f32 %v3418, %v3488
      %v3532 = vsub.f32 %v3420, %v3491
      %v3533 = vsub.f32 %v3422, %v3491
      %v3534 = vsub.f32 %v3426, %v3494
      %v3535 = vsub.f32 %v3428, %v3494
      %v3536 = vsub.f32 %v3430, %v3497
      %v3537 = vsub.f32 %v3432, %v3497
      %v3538 = vsub.f32 %v3436, %v3500
      %v3539 = vsub.f32 %v3438, %v3500
      %v3540 = vsub.f32 %v3440, %v3503
      %v3541 = vsub.f32 %v3442, %v3503
      %v3542 = vsub.f32 %v3446, %v3506
      %v3543 = vsub.f32 %v3448, %v3506
      %v3544 = vsub.f32 %v3450, %v3509
      %v3545 = vsub.f32 %v3452, %v3509
      %v3546 = vsub.f32 %v3456, %v3512
      %v3547 = vsub.f32 %v3458, %v3512
      %v3548 = vsub.f32 %v3460, %v3515
      %v3549 = vsub.f32 %v3462, %v3515
      %v3550 = vsub.f32 %v3466, %v3518
      %v3551 = vsub.f32 %v3468, %v3518
      %v3552 = vsub.f32 %v3470, %v3521
      %v3553 = vsub.f32 %v3472, %v3521
      %v3554 = vmul.f32 %v3522, 1.442695
      %v3555 = vpow.pop %v3554
      %v3556 = vmul.f32 %v3523, 1.442695
      %v3557 = vpow.pop %v3556
      %v3558 = vmul.f32 %v3524, 1.442695
      %v3559 = vpow.pop %v3558
      %v3560 = vmul.f32 %v3525, 1.442695
      %v3561 = vpow.pop %v3560
      %v3562 = vmul.f32 %v3526, 1.442695
      %v3563 = vpow.pop %v3562
      %v3564 = vmul.f32 %v3527, 1.442695
      %v3565 = vpow.pop %v3564
      %v3566 = vmul.f32 %v3528, 1.442695
      %v3567 = vpow.pop %v3566
      %v3568 = vmul.f32 %v3529, 1.442695
      %v3569 = vpow.pop %v3568
      %v3570 = vmul.f32 %v3530, 1.442695
      %v3571 = vpow.pop %v3570
      %v3572 = vmul.f32 %v3531, 1.442695
      %v3573 = vpow.pop %v3572
      %v3574 = vmul.f32 %v3532, 1.442695
      %v3575 = vpow.pop %v3574
      %v3576 = vmul.f32 %v3533, 1.442695
      %v3577 = vpow.pop %v3576
      %v3578 = vmul.f32 %v3534, 1.442695
      %v3579 = vpow.pop %v3578
      %v3580 = vmul.f32 %v3535, 1.442695
      %v3581 = vpow.pop %v3580
      %v3582 = vmul.f32 %v3536, 1.442695
      %v3583 = vpow.pop %v3582
      %v3584 = vmul.f32 %v3537, 1.442695
      %v3585 = vpow.pop %v3584
      %v3586 = vmul.f32 %v3538, 1.442695
      %v3587 = vpow.pop %v3586
      %v3588 = vmul.f32 %v3539, 1.442695
      %v3589 = vpow.pop %v3588
      %v3590 = vmul.f32 %v3540, 1.442695
      %v3591 = vpow.pop %v3590
      %v3592 = vmul.f32 %v3541, 1.442695
      %v3593 = vpow.pop %v3592
      %v3594 = vmul.f32 %v3542, 1.442695
      %v3595 = vpow.pop %v3594
      %v3596 = vmul.f32 %v3543, 1.442695
      %v3597 = vpow.pop %v3596
      %v3598 = vmul.f32 %v3544, 1.442695
      %v3599 = vpow.pop %v3598
      %v3600 = vmul.f32 %v3545, 1.442695
      %v3601 = vpow.pop %v3600
      %v3602 = vmul.f32 %v3546, 1.442695
      %v3603 = vpow.pop %v3602
      %v3604 = vmul.f32 %v3547, 1.442695
      %v3605 = vpow.pop %v3604
      %v3606 = vmul.f32 %v3548, 1.442695
      %v3607 = vpow.pop %v3606
      %v3608 = vmul.f32 %v3549, 1.442695
      %v3609 = vpow.pop %v3608
      %v3610 = vmul.f32 %v3550, 1.442695
      %v3611 = vpow.pop %v3610
      %v3612 = vmul.f32 %v3551, 1.442695
      %v3613 = vpow.pop %v3612
      %v3614 = vmul.f32 %v3552, 1.442695
      %v3615 = vpow.pop %v3614
      %v3616 = vmul.f32 %v3553, 1.442695
      %v3617 = vpow.pop %v3616
      %v3618 = vadd.f32 %v3555, %v3557
      %3619 = vadd.xlane.f32.xlu0 %v3618
      %v3620 = vpop.xlane.xlu0 %3619
      %v3621 = vadd.f32 %v3559, %v3561
      %3622 = vadd.xlane.f32.xlu0 %v3621
      %v3623 = vpop.xlane.xlu0 %3622
      %v3624 = vadd.f32 %v3563, %v3565
      %3625 = vadd.xlane.f32.xlu0 %v3624
      %v3626 = vpop.xlane.xlu0 %3625
      %v3627 = vadd.f32 %v3567, %v3569
      %3628 = vadd.xlane.f32.xlu0 %v3627
      %v3629 = vpop.xlane.xlu0 %3628
      %v3630 = vadd.f32 %v3571, %v3573
      %3631 = vadd.xlane.f32.xlu0 %v3630
      %v3632 = vpop.xlane.xlu0 %3631
      %v3633 = vadd.f32 %v3575, %v3577
      %3634 = vadd.xlane.f32.xlu0 %v3633
      %v3635 = vpop.xlane.xlu0 %3634
      %v3636 = vadd.f32 %v3579, %v3581
      %3637 = vadd.xlane.f32.xlu0 %v3636
      %v3638 = vpop.xlane.xlu0 %3637
      %v3639 = vadd.f32 %v3583, %v3585
      %3640 = vadd.xlane.f32.xlu0 %v3639
      %v3641 = vpop.xlane.xlu0 %3640
      %v3642 = vadd.f32 %v3587, %v3589
      %3643 = vadd.xlane.f32.xlu0 %v3642
      %v3644 = vpop.xlane.xlu0 %3643
      %v3645 = vadd.f32 %v3591, %v3593
      %3646 = vadd.xlane.f32.xlu0 %v3645
      %v3647 = vpop.xlane.xlu0 %3646
      %v3648 = vadd.f32 %v3595, %v3597
      %3649 = vadd.xlane.f32.xlu0 %v3648
      %v3650 = vpop.xlane.xlu0 %3649
      %v3651 = vadd.f32 %v3599, %v3601
      %3652 = vadd.xlane.f32.xlu0 %v3651
      %v3653 = vpop.xlane.xlu0 %3652
      %v3654 = vadd.f32 %v3603, %v3605
      %3655 = vadd.xlane.f32.xlu0 %v3654
      %v3656 = vpop.xlane.xlu0 %3655
      %v3657 = vadd.f32 %v3607, %v3609
      %3658 = vadd.xlane.f32.xlu0 %v3657
      %v3659 = vpop.xlane.xlu0 %3658
      %v3660 = vadd.f32 %v3611, %v3613
      %3661 = vadd.xlane.f32.xlu0 %v3660
      %v3662 = vpop.xlane.xlu0 %3661
      %v3663 = vadd.f32 %v3615, %v3617
      %3664 = vadd.xlane.f32.xlu0 %v3663
      %v3665 = vpop.xlane.xlu0 %3664
      %v3666 = vpack.c.bf16 %v3559, %v3555
      %v3667 = vpack.c.bf16 %v3561, %v3557
      %v3668 = vpack.c.bf16 %v3567, %v3563
      %v3669 = vpack.c.bf16 %v3569, %v3565
      %v3670 = vpack.c.bf16 %v3575, %v3571
      %v3671 = vpack.c.bf16 %v3577, %v3573
      %v3672 = vpack.c.bf16 %v3583, %v3579
      %v3673 = vpack.c.bf16 %v3585, %v3581
      %v3674 = vpack.c.bf16 %v3591, %v3587
      %v3675 = vpack.c.bf16 %v3593, %v3589
      %v3676 = vpack.c.bf16 %v3599, %v3595
      %v3677 = vpack.c.bf16 %v3601, %v3597
      %v3678 = vpack.c.bf16 %v3607, %v3603
      %v3679 = vpack.c.bf16 %v3609, %v3605
      %v3680 = vpack.c.bf16 %v3615, %v3611
      %v3681 = vpack.c.bf16 %v3617, %v3613
      %s3682 = scalar_lea.vmem %s535, 384
      %v3683 = vld [vmem:[%s3682] sm:$0xf]
      %v3684 = vld [vmem:[%s3682 + $0x4] sm:$0xf]
      %v3685 = vld [vmem:[%s3682 + $0x8] sm:$0xf]
      %v3686 = vld [vmem:[%s3682 + $0xc] sm:$0xf]
      %v3687 = vld [vmem:[%s3682 + $0x10] sm:$0xf]
      %v3688 = vld [vmem:[%s3682 + $0x14] sm:$0xf]
      %v3689 = vld [vmem:[%s3682 + $0x18] sm:$0xf]
      %v3690 = vld [vmem:[%s3682 + $0x1c] sm:$0xf]
      %v3691 = vld [vmem:[%s3682 + $0x20] sm:$0xf]
      %v3692 = vld [vmem:[%s3682 + $0x24] sm:$0xf]
      %v3693 = vld [vmem:[%s3682 + $0x28] sm:$0xf]
      %v3694 = vld [vmem:[%s3682 + $0x2c] sm:$0xf]
      %v3695 = vld [vmem:[%s3682 + $0x30] sm:$0xf]
      %v3696 = vld [vmem:[%s3682 + $0x34] sm:$0xf]
      %v3697 = vld [vmem:[%s3682 + $0x38] sm:$0xf]
      %v3698 = vld [vmem:[%s3682 + $0x3c] sm:$0xf]
      %v3699 = vld [vmem:[%s3682 + $0x40] sm:$0xf]
      %v3700 = vld [vmem:[%s3682 + $0x44] sm:$0xf]
      %v3701 = vld [vmem:[%s3682 + $0x48] sm:$0xf]
      %v3702 = vld [vmem:[%s3682 + $0x4c] sm:$0xf]
      %v3703 = vld [vmem:[%s3682 + $0x50] sm:$0xf]
      %v3704 = vld [vmem:[%s3682 + $0x54] sm:$0xf]
      %v3705 = vld [vmem:[%s3682 + $0x58] sm:$0xf]
      %v3706 = vld [vmem:[%s3682 + $0x5c] sm:$0xf]
      %v3707 = vld [vmem:[%s3682 + $0x60] sm:$0xf]
      %v3708 = vld [vmem:[%s3682 + $0x64] sm:$0xf]
      %v3709 = vld [vmem:[%s3682 + $0x68] sm:$0xf]
      %v3710 = vld [vmem:[%s3682 + $0x6c] sm:$0xf]
      %v3711 = vld [vmem:[%s3682 + $0x70] sm:$0xf]
      %v3712 = vld [vmem:[%s3682 + $0x74] sm:$0xf]
      %v3713 = vld [vmem:[%s3682 + $0x78] sm:$0xf]
      %v3714 = vld [vmem:[%s3682 + $0x7c] sm:$0xf]
      %v3747 = vunpack.c.l.b16 %v3683
      %v3748 = vunpack.c.l.b16 %v3684
      %v3749 = vunpack.c.l.b16 %v3685
      %v3750 = vunpack.c.l.b16 %v3686
      %v3751 = vunpack.c.l.b16 %v3687
      %v3752 = vunpack.c.l.b16 %v3688
      %v3753 = vunpack.c.l.b16 %v3689
      %v3754 = vunpack.c.l.b16 %v3690
      %v3755 = vunpack.c.l.b16 %v3691
      %v3756 = vunpack.c.l.b16 %v3692
      %v3757 = vunpack.c.l.b16 %v3693
      %v3758 = vunpack.c.l.b16 %v3694
      %v3759 = vunpack.c.l.b16 %v3695
      %v3760 = vunpack.c.l.b16 %v3696
      %v3761 = vunpack.c.l.b16 %v3697
      %v3762 = vunpack.c.l.b16 %v3698
      %v3763 = vunpack.c.l.b16 %v3699
      %v3764 = vunpack.c.l.b16 %v3700
      %v3765 = vunpack.c.l.b16 %v3701
      %v3766 = vunpack.c.l.b16 %v3702
      %v3767 = vunpack.c.l.b16 %v3703
      %v3768 = vunpack.c.l.b16 %v3704
      %v3769 = vunpack.c.l.b16 %v3705
      %v3770 = vunpack.c.l.b16 %v3706
      %v3771 = vunpack.c.l.b16 %v3707
      %v3772 = vunpack.c.l.b16 %v3708
      %v3773 = vunpack.c.l.b16 %v3709
      %v3774 = vunpack.c.l.b16 %v3710
      %v3775 = vunpack.c.l.b16 %v3711
      %v3776 = vunpack.c.l.b16 %v3712
      %v3777 = vunpack.c.l.b16 %v3713
      %v3778 = vunpack.c.l.b16 %v3714
      %v3779 = vpack.c.b16 %v3748, %v3747
      %v3780 = vpack.c.b16 %v3750, %v3749
      %v3781 = vpack.c.b16 %v3752, %v3751
      %v3782 = vpack.c.b16 %v3754, %v3753
      %v3783 = vpack.c.b16 %v3756, %v3755
      %v3784 = vpack.c.b16 %v3758, %v3757
      %v3785 = vpack.c.b16 %v3760, %v3759
      %v3786 = vpack.c.b16 %v3762, %v3761
      %v3787 = vpack.c.b16 %v3764, %v3763
      %v3788 = vpack.c.b16 %v3766, %v3765
      %v3789 = vpack.c.b16 %v3768, %v3767
      %v3790 = vpack.c.b16 %v3770, %v3769
      %v3791 = vpack.c.b16 %v3772, %v3771
      %v3792 = vpack.c.b16 %v3774, %v3773
      %v3793 = vpack.c.b16 %v3776, %v3775
      %v3794 = vpack.c.b16 %v3778, %v3777
      %3811 = vmatprep.subr.bf16.mxu0 0
      %3812 = vmatpush1.bf16.msra.mxu0 %v3779
      %3813 = vmatprep.subr.bf16.mxu0 0
      %3814 = vmatpush1.bf16.msra.mxu0 %v3780
      %3815 = vmatprep.subr.bf16.mxu0 0
      %3816 = vmatpush1.bf16.msra.mxu0 %v3781
      %3817 = vmatprep.subr.bf16.mxu0 0
      %3818 = vmatpush1.bf16.msra.mxu0 %v3782
      %3819 = vmatprep.subr.bf16.mxu0 0
      %3820 = vmatpush1.bf16.msra.mxu0 %v3783
      %3821 = vmatprep.subr.bf16.mxu0 0
      %3822 = vmatpush1.bf16.msra.mxu0 %v3784
      %3823 = vmatprep.subr.bf16.mxu0 0
      %3824 = vmatpush1.bf16.msra.mxu0 %v3785
      %3825 = vmatprep.subr.bf16.mxu0 0
      %3826 = vmatpush1.bf16.msra.mxu0 %v3786
      %3827 = vmatprep.subr.bf16.mxu0 0
      %3828 = vmatpush1.bf16.msra.mxu0 %v3787
      %3829 = vmatprep.subr.bf16.mxu0 0
      %3830 = vmatpush1.bf16.msra.mxu0 %v3788
      %3831 = vmatprep.subr.bf16.mxu0 0
      %3832 = vmatpush1.bf16.msra.mxu0 %v3789
      %3833 = vmatprep.subr.bf16.mxu0 0
      %3834 = vmatpush1.bf16.msra.mxu0 %v3790
      %3835 = vmatprep.subr.bf16.mxu0 0
      %3836 = vmatpush1.bf16.msra.mxu0 %v3791
      %3837 = vmatprep.subr.bf16.mxu0 0
      %3838 = vmatpush1.bf16.msra.mxu0 %v3792
      %3839 = vmatprep.subr.bf16.mxu0 0
      %3840 = vmatpush1.bf16.msra.mxu0 %v3793
      %3841 = vmatprep.subr.bf16.mxu0 0
      %3842 = vmatpush1.bf16.msra.mxu0 %v3794
      %3843 = vmatprep.mubr.bf16.mxu0 %v3667
      %3844 = vmatmul.mubr.bf16.gmra.mrb[0].mxu0 %v3666
      %v3845 = vpop.f32.mrb[0].mxu0
      %v3846 = vadd.f32 0.0, %v3845
      %v3847 = vpop.f32.mrb[0].mxu0
      %v3848 = vpop.f32.mrb[0].mxu0
      %v3849 = vadd.f32 0.0, %v3848
      %v3850 = vpop.f32.mrb[0].mxu0
      %3851 = vmatprep.mubr.bf16.mxu0 %v3669
      %3852 = vmatmul.mubr.bf16.gmra.mrb[0].mxu0 %v3668
      %v3853 = vpop.f32.mrb[0].mxu0
      %v3854 = vadd.f32 0.0, %v3853
      %v3855 = vpop.f32.mrb[0].mxu0
      %v3856 = vpop.f32.mrb[0].mxu0
      %v3857 = vadd.f32 0.0, %v3856
      %v3858 = vpop.f32.mrb[0].mxu0
      %3859 = vmatprep.mubr.bf16.mxu0 %v3671
      %3860 = vmatmul.mubr.bf16.gmra.mrb[0].mxu0 %v3670
      %v3861 = vpop.f32.mrb[0].mxu0
      %v3862 = vadd.f32 0.0, %v3861
      %v3863 = vpop.f32.mrb[0].mxu0
      %v3864 = vpop.f32.mrb[0].mxu0
      %v3865 = vadd.f32 0.0, %v3864
      %v3866 = vpop.f32.mrb[0].mxu0
      %3867 = vmatprep.mubr.bf16.mxu0 %v3673
      %3868 = vmatmul.mubr.bf16.gmra.mrb[0].mxu0 %v3672
      %v3869 = vpop.f32.mrb[0].mxu0
      %v3870 = vadd.f32 0.0, %v3869
      %v3871 = vpop.f32.mrb[0].mxu0
      %v3872 = vpop.f32.mrb[0].mxu0
      %v3873 = vadd.f32 0.0, %v3872
      %v3874 = vpop.f32.mrb[0].mxu0
      %3875 = vmatprep.mubr.bf16.mxu0 %v3675
      %3876 = vmatmul.mubr.bf16.gmra.mrb[0].mxu0 %v3674
      %v3877 = vpop.f32.mrb[0].mxu0
      %v3878 = vadd.f32 0.0, %v3877
      %v3879 = vpop.f32.mrb[0].mxu0
      %v3880 = vpop.f32.mrb[0].mxu0
      %v3881 = vadd.f32 0.0, %v3880
      %v3882 = vpop.f32.mrb[0].mxu0
      %3883 = vmatprep.mubr.bf16.mxu0 %v3677
      %3884 = vmatmul.mubr.bf16.gmra.mrb[0].mxu0 %v3676
      %v3885 = vpop.f32.mrb[0].mxu0
      %v3886 = vadd.f32 0.0, %v3885
      %v3887 = vpop.f32.mrb[0].mxu0
      %v3888 = vpop.f32.mrb[0].mxu0
      %v3889 = vadd.f32 0.0, %v3888
      %v3890 = vpop.f32.mrb[0].mxu0
      %3891 = vmatprep.mubr.bf16.mxu0 %v3679
      %3892 = vmatmul.mubr.bf16.gmra.mrb[0].mxu0 %v3678
      %v3893 = vpop.f32.mrb[0].mxu0
      %v3894 = vadd.f32 0.0, %v3893
      %v3895 = vpop.f32.mrb[0].mxu0
      %v3896 = vpop.f32.mrb[0].mxu0
      %v3897 = vadd.f32 0.0, %v3896
      %v3898 = vpop.f32.mrb[0].mxu0
      %3899 = vmatprep.mubr.bf16.mxu0 %v3681
      %3900 = vmatmul.mubr.bf16.gmra.mrb[0].mxu0 %v3680
      %v3901 = vpop.f32.mrb[0].mxu0
      %v3902 = vadd.f32 0.0, %v3901
      %v3903 = vpop.f32.mrb[0].mxu0
      %v3904 = vpop.f32.mrb[0].mxu0
      %v3905 = vadd.f32 0.0, %v3904
      %v3906 = vpop.f32.mrb[0].mxu0
      %3907 = vdwg.mxu0
      %v3908 = vrcp.pop %v3620
      %v3909 = vrcp.pop %v3623
      %v3910 = vrcp.pop %v3626
      %v3911 = vrcp.pop %v3629
      %v3912 = vrcp.pop %v3632
      %v3913 = vrcp.pop %v3635
      %v3914 = vrcp.pop %v3638
      %v3915 = vrcp.pop %v3641
      %v3916 = vrcp.pop %v3644
      %v3917 = vrcp.pop %v3647
      %v3918 = vrcp.pop %v3650
      %v3919 = vrcp.pop %v3653
      %v3920 = vrcp.pop %v3656
      %v3921 = vrcp.pop %v3659
      %v3922 = vrcp.pop %v3662
      %v3923 = vrcp.pop %v3665
      %v3924 = vmul.f32 %v3846, %v3908
      %v3925 = vmul.f32 %v3849, %v3909
      %v3926 = vmul.f32 %v3854, %v3910
      %v3927 = vmul.f32 %v3857, %v3911
      %v3928 = vmul.f32 %v3862, %v3912
      %v3929 = vmul.f32 %v3865, %v3913
      %v3930 = vmul.f32 %v3870, %v3914
      %v3931 = vmul.f32 %v3873, %v3915
      %v3932 = vmul.f32 %v3878, %v3916
      %v3933 = vmul.f32 %v3881, %v3917
      %v3934 = vmul.f32 %v3886, %v3918
      %v3935 = vmul.f32 %v3889, %v3919
      %v3936 = vmul.f32 %v3894, %v3920
      %v3937 = vmul.f32 %v3897, %v3921
      %v3938 = vmul.f32 %v3902, %v3922
      %v3939 = vmul.f32 %v3905, %v3923
      %v3940 = vld [vmem:[#allocation3] sm:$0xff]
      %v3941 = vld [vmem:[#allocation3 + $0x8] sm:$0xff]
      %v3942 = vld [vmem:[#allocation3 + $0x10] sm:$0xff]
      %v3943 = vld [vmem:[#allocation3 + $0x18] sm:$0xff]
      %v3944 = vld [vmem:[#allocation3 + $0x20] sm:$0xff]
      %v3945 = vld [vmem:[#allocation3 + $0x28] sm:$0xff]
      %v3946 = vld [vmem:[#allocation3 + $0x30] sm:$0xff]
      %v3947 = vld [vmem:[#allocation3 + $0x38] sm:$0xff]
      %v3948 = vld [vmem:[#allocation3 + $0x40] sm:$0xff]
      %v3949 = vld [vmem:[#allocation3 + $0x48] sm:$0xff]
      %v3950 = vld [vmem:[#allocation3 + $0x50] sm:$0xff]
      %v3951 = vld [vmem:[#allocation3 + $0x58] sm:$0xff]
      %v3952 = vld [vmem:[#allocation3 + $0x60] sm:$0xff]
      %v3953 = vld [vmem:[#allocation3 + $0x68] sm:$0xff]
      %v3954 = vld [vmem:[#allocation3 + $0x70] sm:$0xff]
      %v3955 = vld [vmem:[#allocation3 + $0x78] sm:$0xff]
      %v3956 = vpack.c.bf16 %v3925, %v3924
      %v3957 = vpack.c.bf16 %v3927, %v3926
      %v3958 = vpack.c.bf16 %v3929, %v3928
      %v3959 = vpack.c.bf16 %v3931, %v3930
      %v3960 = vpack.c.bf16 %v3933, %v3932
      %v3961 = vpack.c.bf16 %v3935, %v3934
      %v3962 = vpack.c.bf16 %v3937, %v3936
      %v3963 = vpack.c.bf16 %v3939, %v3938
      %s3964 = scalar_lea.vmem %s7, 12
      %v3965 = vld [vmem:[%s3964] sm:$0xf]
      %v3967 = vsel %vm756, %v3956, 0
      %v3970 = vsel %vm756, %v3957, 0
      %v3973 = vsel %vm756, %v3958, 0
      %v3976 = vsel %vm756, %v3959, 0
      %v3979 = vsel %vm756, %v3960, 0
      %v3982 = vsel %vm756, %v3961, 0
      %v3985 = vsel %vm756, %v3962, 0
      %v3988 = vsel %vm756, %v3963, 0
      %v3991 = vsel %vm938, %v3965, 0
      %3993 = vmatprep.subr.bf16.mxu0 0
      %3994 = vmatpush1.bf16.msra.mxu0 %v3991
      %3995 = vmatprep.subr.bf16.mxu0 0
      %3996 = vmatpush1.bf16.msra.mxu0 0
      %3997 = vmatprep.subr.bf16.mxu0 0
      %3998 = vmatpush1.bf16.msra.mxu0 0
      %3999 = vmatprep.subr.bf16.mxu0 0
      %4000 = vmatpush1.bf16.msra.mxu0 0
      %4001 = vmatprep.subr.bf16.mxu0 0
      %4002 = vmatpush1.bf16.msra.mxu0 0
      %4003 = vmatprep.subr.bf16.mxu0 0
      %4004 = vmatpush1.bf16.msra.mxu0 0
      %4005 = vmatprep.subr.bf16.mxu0 0
      %4006 = vmatpush1.bf16.msra.mxu0 0
      %4007 = vmatprep.subr.bf16.mxu0 0
      %4008 = vmatpush1.bf16.msra.mxu0 0
      %4009 = vmatprep.subr.bf16.mxu0 0
      %4010 = vmatpush1.bf16.msra.mxu0 0
      %4011 = vmatprep.subr.bf16.mxu0 0
      %4012 = vmatpush1.bf16.msra.mxu0 0
      %4013 = vmatprep.subr.bf16.mxu0 0
      %4014 = vmatpush1.bf16.msra.mxu0 0
      %4015 = vmatprep.subr.bf16.mxu0 0
      %4016 = vmatpush1.bf16.msra.mxu0 0
      %4017 = vmatprep.subr.bf16.mxu0 0
      %4018 = vmatpush1.bf16.msra.mxu0 0
      %4019 = vmatprep.subr.bf16.mxu0 0
      %4020 = vmatpush1.bf16.msra.mxu0 0
      %4021 = vmatprep.subr.bf16.mxu0 0
      %4022 = vmatpush1.bf16.msra.mxu0 0
      %4023 = vmatprep.subr.bf16.mxu0 0
      %4024 = vmatpush1.bf16.msra.mxu0 0
      %4025 = vmatprep.mubr.bf16.mxu0 0
      %4026 = vmatmul.mubr.bf16.gmra.mrb[0].mxu0 %v3967
      %v4027 = vpop.f32.mrb[0].mxu0
      %v4028 = vadd.f32 0.0, %v4027
      %v4029 = vpop.f32.mrb[0].mxu0
      %v4030 = vpop.f32.mrb[0].mxu0
      %v4031 = vadd.f32 0.0, %v4030
      %v4032 = vpop.f32.mrb[0].mxu0
      %4033 = vmatprep.mubr.bf16.mxu0 0
      %4034 = vmatmul.mubr.bf16.gmra.mrb[0].mxu0 %v3970
      %v4035 = vpop.f32.mrb[0].mxu0
      %v4036 = vadd.f32 0.0, %v4035
      %v4037 = vpop.f32.mrb[0].mxu0
      %v4038 = vpop.f32.mrb[0].mxu0
      %v4039 = vadd.f32 0.0, %v4038
      %v4040 = vpop.f32.mrb[0].mxu0
      %4041 = vmatprep.mubr.bf16.mxu0 0
      %4042 = vmatmul.mubr.bf16.gmra.mrb[0].mxu0 %v3973
      %v4043 = vpop.f32.mrb[0].mxu0
      %v4044 = vadd.f32 0.0, %v4043
      %v4045 = vpop.f32.mrb[0].mxu0
      %v4046 = vpop.f32.mrb[0].mxu0
      %v4047 = vadd.f32 0.0, %v4046
      %v4048 = vpop.f32.mrb[0].mxu0
      %4049 = vmatprep.mubr.bf16.mxu0 0
      %4050 = vmatmul.mubr.bf16.gmra.mrb[0].mxu0 %v3976
      %v4051 = vpop.f32.mrb[0].mxu0
      %v4052 = vadd.f32 0.0, %v4051
      %v4053 = vpop.f32.mrb[0].mxu0
      %v4054 = vpop.f32.mrb[0].mxu0
      %v4055 = vadd.f32 0.0, %v4054
      %v4056 = vpop.f32.mrb[0].mxu0
      %4057 = vmatprep.mubr.bf16.mxu0 0
      %4058 = vmatmul.mubr.bf16.gmra.mrb[0].mxu0 %v3979
      %v4059 = vpop.f32.mrb[0].mxu0
      %v4060 = vadd.f32 0.0, %v4059
      %v4061 = vpop.f32.mrb[0].mxu0
      %v4062 = vpop.f32.mrb[0].mxu0
      %v4063 = vadd.f32 0.0, %v4062
      %v4064 = vpop.f32.mrb[0].mxu0
      %4065 = vmatprep.mubr.bf16.mxu0 0
      %4066 = vmatmul.mubr.bf16.gmra.mrb[0].mxu0 %v3982
      %v4067 = vpop.f32.mrb[0].mxu0
      %v4068 = vadd.f32 0.0, %v4067
      %v4069 = vpop.f32.mrb[0].mxu0
      %v4070 = vpop.f32.mrb[0].mxu0
      %v4071 = vadd.f32 0.0, %v4070
      %v4072 = vpop.f32.mrb[0].mxu0
      %4073 = vmatprep.mubr.bf16.mxu0 0
      %4074 = vmatmul.mubr.bf16.gmra.mrb[0].mxu0 %v3985
      %v4075 = vpop.f32.mrb[0].mxu0
      %v4076 = vadd.f32 0.0, %v4075
      %v4077 = vpop.f32.mrb[0].mxu0
      %v4078 = vpop.f32.mrb[0].mxu0
      %v4079 = vadd.f32 0.0, %v4078
      %v4080 = vpop.f32.mrb[0].mxu0
      %4081 = vmatprep.mubr.bf16.mxu0 0
      %4082 = vmatmul.mubr.bf16.gmra.mrb[0].mxu0 %v3988
      %v4083 = vpop.f32.mrb[0].mxu0
      %v4084 = vadd.f32 0.0, %v4083
      %v4085 = vpop.f32.mrb[0].mxu0
      %v4086 = vpop.f32.mrb[0].mxu0
      %v4087 = vadd.f32 0.0, %v4086
      %v4088 = vpop.f32.mrb[0].mxu0
      %4089 = vdwg.mxu0
      %v4090 = vadd.f32 %v3940, %v4028
      %v4091 = vadd.f32 %v3941, %v4031
      %v4092 = vadd.f32 %v3942, %v4036
      %v4093 = vadd.f32 %v3943, %v4039
      %v4094 = vadd.f32 %v3944, %v4044
      %v4095 = vadd.f32 %v3945, %v4047
      %v4096 = vadd.f32 %v3946, %v4052
      %v4097 = vadd.f32 %v3947, %v4055
      %v4098 = vadd.f32 %v3948, %v4060
      %v4099 = vadd.f32 %v3949, %v4063
      %v4100 = vadd.f32 %v3950, %v4068
      %v4101 = vadd.f32 %v3951, %v4071
      %v4102 = vadd.f32 %v3952, %v4076
      %v4103 = vadd.f32 %v3953, %v4079
      %v4104 = vadd.f32 %v3954, %v4084
      %v4105 = vadd.f32 %v3955, %v4087
      %4106 = vst.msk [vmem:[#allocation3] sm:$0xff] %vm626, %v4090
      %4107 = vst.msk [vmem:[#allocation3 + $0x8] sm:$0xff] %vm626, %v4091
      %4108 = vst.msk [vmem:[#allocation3 + $0x10] sm:$0xff] %vm626, %v4092
      %4109 = vst.msk [vmem:[#allocation3 + $0x18] sm:$0xff] %vm626, %v4093
      %4110 = vst.msk [vmem:[#allocation3 + $0x20] sm:$0xff] %vm626, %v4094
      %4111 = vst.msk [vmem:[#allocation3 + $0x28] sm:$0xff] %vm626, %v4095
      %4112 = vst.msk [vmem:[#allocation3 + $0x30] sm:$0xff] %vm626, %v4096
      %4113 = vst.msk [vmem:[#allocation3 + $0x38] sm:$0xff] %vm626, %v4097
      %4114 = vst.msk [vmem:[#allocation3 + $0x40] sm:$0xff] %vm626, %v4098
      %4115 = vst.msk [vmem:[#allocation3 + $0x48] sm:$0xff] %vm626, %v4099
      %4116 = vst.msk [vmem:[#allocation3 + $0x50] sm:$0xff] %vm626, %v4100
      %4117 = vst.msk [vmem:[#allocation3 + $0x58] sm:$0xff] %vm626, %v4101
      %4118 = vst.msk [vmem:[#allocation3 + $0x60] sm:$0xff] %vm626, %v4102
      %4119 = vst.msk [vmem:[#allocation3 + $0x68] sm:$0xff] %vm626, %v4103
      %4120 = vst.msk [vmem:[#allocation3 + $0x70] sm:$0xff] %vm626, %v4104
      %4121 = vst.msk [vmem:[#allocation3 + $0x78] sm:$0xff] %vm626, %v4105
      %v4122 = vld [vmem:[#allocation3] sm:$0xff]
      %v4123 = vld [vmem:[#allocation3 + $0x8] sm:$0xff]
      %v4124 = vld [vmem:[#allocation3 + $0x10] sm:$0xff]
      %v4125 = vld [vmem:[#allocation3 + $0x18] sm:$0xff]
      %v4126 = vld [vmem:[#allocation3 + $0x20] sm:$0xff]
      %v4127 = vld [vmem:[#allocation3 + $0x28] sm:$0xff]
      %v4128 = vld [vmem:[#allocation3 + $0x30] sm:$0xff]
      %v4129 = vld [vmem:[#allocation3 + $0x38] sm:$0xff]
      %v4130 = vld [vmem:[#allocation3 + $0x40] sm:$0xff]
      %v4131 = vld [vmem:[#allocation3 + $0x48] sm:$0xff]
      %v4132 = vld [vmem:[#allocation3 + $0x50] sm:$0xff]
      %v4133 = vld [vmem:[#allocation3 + $0x58] sm:$0xff]
      %v4134 = vld [vmem:[#allocation3 + $0x60] sm:$0xff]
      %v4135 = vld [vmem:[#allocation3 + $0x68] sm:$0xff]
      %v4136 = vld [vmem:[#allocation3 + $0x70] sm:$0xff]
      %v4137 = vld [vmem:[#allocation3 + $0x78] sm:$0xff]
      %v4138 = vadd.f32 %v547, %v4122
      %v4139 = vadd.f32 %v548, %v4123
      %v4140 = vadd.f32 %v549, %v4124
      %v4141 = vadd.f32 %v550, %v4125
      %v4142 = vadd.f32 %v551, %v4126
      %v4143 = vadd.f32 %v552, %v4127
      %v4144 = vadd.f32 %v553, %v4128
      %v4145 = vadd.f32 %v554, %v4129
      %v4146 = vadd.f32 %v555, %v4130
      %v4147 = vadd.f32 %v556, %v4131
      %v4148 = vadd.f32 %v557, %v4132
      %v4149 = vadd.f32 %v558, %v4133
      %v4150 = vadd.f32 %v559, %v4134
      %v4151 = vadd.f32 %v560, %v4135
      %v4152 = vadd.f32 %v561, %v4136
      %v4153 = vadd.f32 %v562, %v4137
      %v4154 = vld [vmem:[%s11] sm:$0x1]
      %v4155 = vlaneseq
      %v4156 = vshrl.u32 %v4155, 7
      %v4157 = vsub.s32 0, %v4156
      %v4158 = vrot.slane %v4154, %v4157
      %v4159 = vadd.f32 %v4138, %v4158
      %v4160 = vadd.f32 %v4139, %v4158
      %v4161 = vadd.f32 %v4140, %v4158
      %v4162 = vadd.f32 %v4141, %v4158
      %v4163 = vadd.f32 %v4142, %v4158
      %v4164 = vadd.f32 %v4143, %v4158
      %v4165 = vadd.f32 %v4144, %v4158
      %v4166 = vadd.f32 %v4145, %v4158
      %v4167 = vadd.f32 %v4146, %v4158
      %v4168 = vadd.f32 %v4147, %v4158
      %v4169 = vadd.f32 %v4148, %v4158
      %v4170 = vadd.f32 %v4149, %v4158
      %v4171 = vadd.f32 %v4150, %v4158
      %v4172 = vadd.f32 %v4151, %v4158
      %v4173 = vadd.f32 %v4152, %v4158
      %v4174 = vadd.f32 %v4153, %v4158
      %v4175 = vsel %vm626, %v4159, 0.0
      %4176 = vadd.xlane.f32.xlu0 %v4175
      %v4177 = vpop.xlane.xlu0 %4176
      %v4178 = vsel %vm626, %v4160, 0.0
      %4179 = vadd.xlane.f32.xlu0 %v4178
      %v4180 = vpop.xlane.xlu0 %4179
      %v4181 = vsel %vm626, %v4161, 0.0
      %4182 = vadd.xlane.f32.xlu0 %v4181
      %v4183 = vpop.xlane.xlu0 %4182
      %v4184 = vsel %vm626, %v4162, 0.0
      %4185 = vadd.xlane.f32.xlu0 %v4184
      %v4186 = vpop.xlane.xlu0 %4185
      %v4187 = vsel %vm626, %v4163, 0.0
      %4188 = vadd.xlane.f32.xlu0 %v4187
      %v4189 = vpop.xlane.xlu0 %4188
      %v4190 = vsel %vm626, %v4164, 0.0
      %4191 = vadd.xlane.f32.xlu0 %v4190
      %v4192 = vpop.xlane.xlu0 %4191
      %v4193 = vsel %vm626, %v4165, 0.0
      %4194 = vadd.xlane.f32.xlu0 %v4193
      %v4195 = vpop.xlane.xlu0 %4194
      %v4196 = vsel %vm626, %v4166, 0.0
      %4197 = vadd.xlane.f32.xlu0 %v4196
      %v4198 = vpop.xlane.xlu0 %4197
      %v4199 = vsel %vm626, %v4167, 0.0
      %4200 = vadd.xlane.f32.xlu0 %v4199
      %v4201 = vpop.xlane.xlu0 %4200
      %v4202 = vsel %vm626, %v4168, 0.0
      %4203 = vadd.xlane.f32.xlu0 %v4202
      %v4204 = vpop.xlane.xlu0 %4203
      %v4205 = vsel %vm626, %v4169, 0.0
      %4206 = vadd.xlane.f32.xlu0 %v4205
      %v4207 = vpop.xlane.xlu0 %4206
      %v4208 = vsel %vm626, %v4170, 0.0
      %4209 = vadd.xlane.f32.xlu0 %v4208
      %v4210 = vpop.xlane.xlu0 %4209
      %v4211 = vsel %vm626, %v4171, 0.0
      %4212 = vadd.xlane.f32.xlu0 %v4211
      %v4213 = vpop.xlane.xlu0 %4212
      %v4214 = vsel %vm626, %v4172, 0.0
      %4215 = vadd.xlane.f32.xlu0 %v4214
      %v4216 = vpop.xlane.xlu0 %4215
      %v4217 = vsel %vm626, %v4173, 0.0
      %4218 = vadd.xlane.f32.xlu0 %v4217
      %v4219 = vpop.xlane.xlu0 %4218
      %v4220 = vsel %vm626, %v4174, 0.0
      %4221 = vadd.xlane.f32.xlu0 %v4220
      %v4222 = vpop.xlane.xlu0 %4221
      %v4223 = vrcp.pop 32.0
      %v4224 = vmul.f32 %v4177, %v4223
      %v4225 = vmul.f32 %v4180, %v4223
      %v4226 = vmul.f32 %v4183, %v4223
      %v4227 = vmul.f32 %v4186, %v4223
      %v4228 = vmul.f32 %v4189, %v4223
      %v4229 = vmul.f32 %v4192, %v4223
      %v4230 = vmul.f32 %v4195, %v4223
      %v4231 = vmul.f32 %v4198, %v4223
      %v4232 = vmul.f32 %v4201, %v4223
      %v4233 = vmul.f32 %v4204, %v4223
      %v4234 = vmul.f32 %v4207, %v4223
      %v4235 = vmul.f32 %v4210, %v4223
      %v4236 = vmul.f32 %v4213, %v4223
      %v4237 = vmul.f32 %v4216, %v4223
      %v4238 = vmul.f32 %v4219, %v4223
      %v4239 = vmul.f32 %v4222, %v4223
      %v4240 = vsub.f32 %v4159, %v4224
      %v4241 = vsub.f32 %v4160, %v4225
      %v4242 = vsub.f32 %v4161, %v4226
      %v4243 = vsub.f32 %v4162, %v4227
      %v4244 = vsub.f32 %v4163, %v4228
      %v4245 = vsub.f32 %v4164, %v4229
      %v4246 = vsub.f32 %v4165, %v4230
      %v4247 = vsub.f32 %v4166, %v4231
      %v4248 = vsub.f32 %v4167, %v4232
      %v4249 = vsub.f32 %v4168, %v4233
      %v4250 = vsub.f32 %v4169, %v4234
      %v4251 = vsub.f32 %v4170, %v4235
      %v4252 = vsub.f32 %v4171, %v4236
      %v4253 = vsub.f32 %v4172, %v4237
      %v4254 = vsub.f32 %v4173, %v4238
      %v4255 = vsub.f32 %v4174, %v4239
      %v4256 = vmul.f32 %v4240, %v4240
      %v4257 = vmul.f32 %v4241, %v4241
      %v4258 = vmul.f32 %v4242, %v4242
      %v4259 = vmul.f32 %v4243, %v4243
      %v4260 = vmul.f32 %v4244, %v4244
      %v4261 = vmul.f32 %v4245, %v4245
      %v4262 = vmul.f32 %v4246, %v4246
      %v4263 = vmul.f32 %v4247, %v4247
      %v4264 = vmul.f32 %v4248, %v4248
      %v4265 = vmul.f32 %v4249, %v4249
      %v4266 = vmul.f32 %v4250, %v4250
      %v4267 = vmul.f32 %v4251, %v4251
      %v4268 = vmul.f32 %v4252, %v4252
      %v4269 = vmul.f32 %v4253, %v4253
      %v4270 = vmul.f32 %v4254, %v4254
      %v4271 = vmul.f32 %v4255, %v4255
      %v4272 = vsel %vm626, %v4256, 0.0
      %4273 = vadd.xlane.f32.xlu0 %v4272
      %v4274 = vpop.xlane.xlu0 %4273
      %v4275 = vsel %vm626, %v4257, 0.0
      %4276 = vadd.xlane.f32.xlu0 %v4275
      %v4277 = vpop.xlane.xlu0 %4276
      %v4278 = vsel %vm626, %v4258, 0.0
      %4279 = vadd.xlane.f32.xlu0 %v4278
      %v4280 = vpop.xlane.xlu0 %4279
      %v4281 = vsel %vm626, %v4259, 0.0
      %4282 = vadd.xlane.f32.xlu0 %v4281
      %v4283 = vpop.xlane.xlu0 %4282
      %v4284 = vsel %vm626, %v4260, 0.0
      %4285 = vadd.xlane.f32.xlu0 %v4284
      %v4286 = vpop.xlane.xlu0 %4285
      %v4287 = vsel %vm626, %v4261, 0.0
      %4288 = vadd.xlane.f32.xlu0 %v4287
      %v4289 = vpop.xlane.xlu0 %4288
      %v4290 = vsel %vm626, %v4262, 0.0
      %4291 = vadd.xlane.f32.xlu0 %v4290
      %v4292 = vpop.xlane.xlu0 %4291
      %v4293 = vsel %vm626, %v4263, 0.0
      %4294 = vadd.xlane.f32.xlu0 %v4293
      %v4295 = vpop.xlane.xlu0 %4294
      %v4296 = vsel %vm626, %v4264, 0.0
      %4297 = vadd.xlane.f32.xlu0 %v4296
      %v4298 = vpop.xlane.xlu0 %4297
      %v4299 = vsel %vm626, %v4265, 0.0
      %4300 = vadd.xlane.f32.xlu0 %v4299
      %v4301 = vpop.xlane.xlu0 %4300
      %v4302 = vsel %vm626, %v4266, 0.0
      %4303 = vadd.xlane.f32.xlu0 %v4302
      %v4304 = vpop.xlane.xlu0 %4303
      %v4305 = vsel %vm626, %v4267, 0.0
      %4306 = vadd.xlane.f32.xlu0 %v4305
      %v4307 = vpop.xlane.xlu0 %4306
      %v4308 = vsel %vm626, %v4268, 0.0
      %4309 = vadd.xlane.f32.xlu0 %v4308
      %v4310 = vpop.xlane.xlu0 %4309
      %v4311 = vsel %vm626, %v4269, 0.0
      %4312 = vadd.xlane.f32.xlu0 %v4311
      %v4313 = vpop.xlane.xlu0 %4312
      %v4314 = vsel %vm626, %v4270, 0.0
      %4315 = vadd.xlane.f32.xlu0 %v4314
      %v4316 = vpop.xlane.xlu0 %4315
      %v4317 = vsel %vm626, %v4271, 0.0
      %4318 = vadd.xlane.f32.xlu0 %v4317
      %v4319 = vpop.xlane.xlu0 %4318
      %v4320 = vmul.f32 %v4274, %v4223
      %v4321 = vmul.f32 %v4277, %v4223
      %v4322 = vmul.f32 %v4280, %v4223
      %v4323 = vmul.f32 %v4283, %v4223
      %v4324 = vmul.f32 %v4286, %v4223
      %v4325 = vmul.f32 %v4289, %v4223
      %v4326 = vmul.f32 %v4292, %v4223
      %v4327 = vmul.f32 %v4295, %v4223
      %v4328 = vmul.f32 %v4298, %v4223
      %v4329 = vmul.f32 %v4301, %v4223
      %v4330 = vmul.f32 %v4304, %v4223
      %v4331 = vmul.f32 %v4307, %v4223
      %v4332 = vmul.f32 %v4310, %v4223
      %v4333 = vmul.f32 %v4313, %v4223
      %v4334 = vmul.f32 %v4316, %v4223
      %v4335 = vmul.f32 %v4319, %v4223
      %v4336 = vadd.f32 %v4320, 1e-05
      %v4337 = vadd.f32 %v4321, 1e-05
      %v4338 = vadd.f32 %v4322, 1e-05
      %v4339 = vadd.f32 %v4323, 1e-05
      %v4340 = vadd.f32 %v4324, 1e-05
      %v4341 = vadd.f32 %v4325, 1e-05
      %v4342 = vadd.f32 %v4326, 1e-05
      %v4343 = vadd.f32 %v4327, 1e-05
      %v4344 = vadd.f32 %v4328, 1e-05
      %v4345 = vadd.f32 %v4329, 1e-05
      %v4346 = vadd.f32 %v4330, 1e-05
      %v4347 = vadd.f32 %v4331, 1e-05
      %v4348 = vadd.f32 %v4332, 1e-05
      %v4349 = vadd.f32 %v4333, 1e-05
      %v4350 = vadd.f32 %v4334, 1e-05
      %v4351 = vadd.f32 %v4335, 1e-05
      %v4352 = vrsqrt.pop %v4336
      %v4353 = vrsqrt.pop %v4337
      %v4354 = vrsqrt.pop %v4338
      %v4355 = vrsqrt.pop %v4339
      %v4356 = vrsqrt.pop %v4340
      %v4357 = vrsqrt.pop %v4341
      %v4358 = vrsqrt.pop %v4342
      %v4359 = vrsqrt.pop %v4343
      %v4360 = vrsqrt.pop %v4344
      %v4361 = vrsqrt.pop %v4345
      %v4362 = vrsqrt.pop %v4346
      %v4363 = vrsqrt.pop %v4347
      %v4364 = vrsqrt.pop %v4348
      %v4365 = vrsqrt.pop %v4349
      %v4366 = vrsqrt.pop %v4350
      %v4367 = vrsqrt.pop %v4351
      %v4368 = vmul.f32 %v4240, %v4352
      %v4369 = vmul.f32 %v4241, %v4353
      %v4370 = vmul.f32 %v4242, %v4354
      %v4371 = vmul.f32 %v4243, %v4355
      %v4372 = vmul.f32 %v4244, %v4356
      %v4373 = vmul.f32 %v4245, %v4357
      %v4374 = vmul.f32 %v4246, %v4358
      %v4375 = vmul.f32 %v4247, %v4359
      %v4376 = vmul.f32 %v4248, %v4360
      %v4377 = vmul.f32 %v4249, %v4361
      %v4378 = vmul.f32 %v4250, %v4362
      %v4379 = vmul.f32 %v4251, %v4363
      %v4380 = vmul.f32 %v4252, %v4364
      %v4381 = vmul.f32 %v4253, %v4365
      %v4382 = vmul.f32 %v4254, %v4366
      %v4383 = vmul.f32 %v4255, %v4367
      %v4384 = vld [vmem:[%s11 + $0x1] sm:$0x1]
      %v4385 = vlaneseq
      %v4386 = vshrl.u32 %v4385, 7
      %v4387 = vsub.s32 0, %v4386
      %v4388 = vrot.slane %v4384, %v4387
      %v4389 = vmul.f32 %v4368, %v4388
      %v4390 = vmul.f32 %v4369, %v4388
      %v4391 = vmul.f32 %v4370, %v4388
      %v4392 = vmul.f32 %v4371, %v4388
      %v4393 = vmul.f32 %v4372, %v4388
      %v4394 = vmul.f32 %v4373, %v4388
      %v4395 = vmul.f32 %v4374, %v4388
      %v4396 = vmul.f32 %v4375, %v4388
      %v4397 = vmul.f32 %v4376, %v4388
      %v4398 = vmul.f32 %v4377, %v4388
      %v4399 = vmul.f32 %v4378, %v4388
      %v4400 = vmul.f32 %v4379, %v4388
      %v4401 = vmul.f32 %v4380, %v4388
      %v4402 = vmul.f32 %v4381, %v4388
      %v4403 = vmul.f32 %v4382, %v4388
      %v4404 = vmul.f32 %v4383, %v4388
      %v4405 = vld [vmem:[%s11 + $0x2] sm:$0x1]
      %v4406 = vlaneseq
      %v4407 = vshrl.u32 %v4406, 7
      %v4408 = vsub.s32 0, %v4407
      %v4409 = vrot.slane %v4405, %v4408
      %v4410 = vadd.f32 %v4389, %v4409
      %v4411 = vadd.f32 %v4390, %v4409
      %v4412 = vadd.f32 %v4391, %v4409
      %v4413 = vadd.f32 %v4392, %v4409
      %v4414 = vadd.f32 %v4393, %v4409
      %v4415 = vadd.f32 %v4394, %v4409
      %v4416 = vadd.f32 %v4395, %v4409
      %v4417 = vadd.f32 %v4396, %v4409
      %v4418 = vadd.f32 %v4397, %v4409
      %v4419 = vadd.f32 %v4398, %v4409
      %v4420 = vadd.f32 %v4399, %v4409
      %v4421 = vadd.f32 %v4400, %v4409
      %v4422 = vadd.f32 %v4401, %v4409
      %v4423 = vadd.f32 %v4402, %v4409
      %v4424 = vadd.f32 %v4403, %v4409
      %v4425 = vadd.f32 %v4404, %v4409
      %v4426 = vpack.c.bf16 %v4411, %v4410
      %v4427 = vpack.c.bf16 %v4413, %v4412
      %v4428 = vpack.c.bf16 %v4415, %v4414
      %v4429 = vpack.c.bf16 %v4417, %v4416
      %v4430 = vpack.c.bf16 %v4419, %v4418
      %v4431 = vpack.c.bf16 %v4421, %v4420
      %v4432 = vpack.c.bf16 %v4423, %v4422
      %v4433 = vpack.c.bf16 %v4425, %v4424
      %v4434 = vld [vmem:[%s8] sm:$0xf]
      %v4435 = vld [vmem:[%s8 + $0x4] sm:$0xf]
      %v4436 = vld [vmem:[%s8 + $0x8] sm:$0xf]
      %v4437 = vld [vmem:[%s8 + $0xc] sm:$0xf]
      %v4438 = vld [vmem:[%s9] sm:$0x1]
      %v4440 = vlaneseq
      %v4441 = vshrl.u32 %v4440, 7
      %v4442 = vsub.s32 0, %v4441
      %v4443 = vrot.slane %v4438, %v4442
      %v4449 = vunpack.c.l.b16 %v4434
      %v4450 = vunpack.c.l.b16 %v4435
      %v4451 = vunpack.c.l.b16 %v4436
      %v4452 = vunpack.c.l.b16 %v4437
      %v4453 = vpack.c.b16 %v4450, %v4449
      %v4454 = vpack.c.b16 %v4452, %v4451
      %v4458 = vsel %vm626, %v4426, 0
      %v4461 = vsel %vm626, %v4427, 0
      %v4464 = vsel %vm626, %v4428, 0
      %v4467 = vsel %vm626, %v4429, 0
      %v4470 = vsel %vm626, %v4430, 0
      %v4473 = vsel %vm626, %v4431, 0
      %v4476 = vsel %vm626, %v4432, 0
      %v4479 = vsel %vm626, %v4433, 0
      %4481 = vmatprep.subr.bf16.mxu0 0
      %4482 = vmatpush1.bf16.msra.mxu0 %v4453
      %4483 = vmatprep.subr.bf16.mxu0 0
      %4484 = vmatpush1.bf16.msra.mxu0 %v4454
      %4485 = vmatprep.subr.bf16.mxu0 0
      %4486 = vmatpush1.bf16.msra.mxu0 0
      %4487 = vmatprep.subr.bf16.mxu0 0
      %4488 = vmatpush1.bf16.msra.mxu0 0
      %4489 = vmatprep.subr.bf16.mxu0 0
      %4490 = vmatpush1.bf16.msra.mxu0 0
      %4491 = vmatprep.subr.bf16.mxu0 0
      %4492 = vmatpush1.bf16.msra.mxu0 0
      %4493 = vmatprep.subr.bf16.mxu0 0
      %4494 = vmatpush1.bf16.msra.mxu0 0
      %4495 = vmatprep.subr.bf16.mxu0 0
      %4496 = vmatpush1.bf16.msra.mxu0 0
      %4497 = vmatprep.subr.bf16.mxu0 0
      %4498 = vmatpush1.bf16.msra.mxu0 0
      %4499 = vmatprep.subr.bf16.mxu0 0
      %4500 = vmatpush1.bf16.msra.mxu0 0
      %4501 = vmatprep.subr.bf16.mxu0 0
      %4502 = vmatpush1.bf16.msra.mxu0 0
      %4503 = vmatprep.subr.bf16.mxu0 0
      %4504 = vmatpush1.bf16.msra.mxu0 0
      %4505 = vmatprep.subr.bf16.mxu0 0
      %4506 = vmatpush1.bf16.msra.mxu0 0
      %4507 = vmatprep.subr.bf16.mxu0 0
      %4508 = vmatpush1.bf16.msra.mxu0 0
      %4509 = vmatprep.subr.bf16.mxu0 0
      %4510 = vmatpush1.bf16.msra.mxu0 0
      %4511 = vmatprep.subr.bf16.mxu0 0
      %4512 = vmatpush1.bf16.msra.mxu0 0
      %4513 = vmatprep.mubr.bf16.mxu0 0
      %4514 = vmatmul.mubr.bf16.gmra.mrb[0].mxu0 %v4458
      %v4515 = vpop.f32.mrb[0].mxu0
      %v4516 = vadd.f32 %v4443, %v4515
      %v4517 = vpop.f32.mrb[0].mxu0
      %v4518 = vpop.f32.mrb[0].mxu0
      %v4519 = vadd.f32 %v4443, %v4518
      %v4520 = vpop.f32.mrb[0].mxu0
      %4521 = vmatprep.mubr.bf16.mxu0 0
      %4522 = vmatmul.mubr.bf16.gmra.mrb[0].mxu0 %v4461
      %v4523 = vpop.f32.mrb[0].mxu0
      %v4524 = vadd.f32 %v4443, %v4523
      %v4525 = vpop.f32.mrb[0].mxu0
      %v4526 = vpop.f32.mrb[0].mxu0
      %v4527 = vadd.f32 %v4443, %v4526
      %v4528 = vpop.f32.mrb[0].mxu0
      %4529 = vmatprep.mubr.bf16.mxu0 0
      %4530 = vmatmul.mubr.bf16.gmra.mrb[0].mxu0 %v4464
      %v4531 = vpop.f32.mrb[0].mxu0
      %v4532 = vadd.f32 %v4443, %v4531
      %v4533 = vpop.f32.mrb[0].mxu0
      %v4534 = vpop.f32.mrb[0].mxu0
      %v4535 = vadd.f32 %v4443, %v4534
      %v4536 = vpop.f32.mrb[0].mxu0
      %4537 = vmatprep.mubr.bf16.mxu0 0
      %4538 = vmatmul.mubr.bf16.gmra.mrb[0].mxu0 %v4467
      %v4539 = vpop.f32.mrb[0].mxu0
      %v4540 = vadd.f32 %v4443, %v4539
      %v4541 = vpop.f32.mrb[0].mxu0
      %v4542 = vpop.f32.mrb[0].mxu0
      %v4543 = vadd.f32 %v4443, %v4542
      %v4544 = vpop.f32.mrb[0].mxu0
      %4545 = vmatprep.mubr.bf16.mxu0 0
      %4546 = vmatmul.mubr.bf16.gmra.mrb[0].mxu0 %v4470
      %v4547 = vpop.f32.mrb[0].mxu0
      %v4548 = vadd.f32 %v4443, %v4547
      %v4549 = vpop.f32.mrb[0].mxu0
      %v4550 = vpop.f32.mrb[0].mxu0
      %v4551 = vadd.f32 %v4443, %v4550
      %v4552 = vpop.f32.mrb[0].mxu0
      %4553 = vmatprep.mubr.bf16.mxu0 0
      %4554 = vmatmul.mubr.bf16.gmra.mrb[0].mxu0 %v4473
      %v4555 = vpop.f32.mrb[0].mxu0
      %v4556 = vadd.f32 %v4443, %v4555
      %v4557 = vpop.f32.mrb[0].mxu0
      %v4558 = vpop.f32.mrb[0].mxu0
      %v4559 = vadd.f32 %v4443, %v4558
      %v4560 = vpop.f32.mrb[0].mxu0
      %4561 = vmatprep.mubr.bf16.mxu0 0
      %4562 = vmatmul.mubr.bf16.gmra.mrb[0].mxu0 %v4476
      %v4563 = vpop.f32.mrb[0].mxu0
      %v4564 = vadd.f32 %v4443, %v4563
      %v4565 = vpop.f32.mrb[0].mxu0
      %v4566 = vpop.f32.mrb[0].mxu0
      %v4567 = vadd.f32 %v4443, %v4566
      %v4568 = vpop.f32.mrb[0].mxu0
      %4569 = vmatprep.mubr.bf16.mxu0 0
      %4570 = vmatmul.mubr.bf16.gmra.mrb[0].mxu0 %v4479
      %v4571 = vpop.f32.mrb[0].mxu0
      %v4572 = vadd.f32 %v4443, %v4571
      %v4573 = vpop.f32.mrb[0].mxu0
      %v4574 = vpop.f32.mrb[0].mxu0
      %v4575 = vadd.f32 %v4443, %v4574
      %v4576 = vpop.f32.mrb[0].mxu0
      %4577 = vdwg.mxu0
      %v4578 = vmax.f32 %v4516, 0.0
      %v4579 = vmax.f32 %v4519, 0.0
      %v4580 = vmax.f32 %v4524, 0.0
      %v4581 = vmax.f32 %v4527, 0.0
      %v4582 = vmax.f32 %v4532, 0.0
      %v4583 = vmax.f32 %v4535, 0.0
      %v4584 = vmax.f32 %v4540, 0.0
      %v4585 = vmax.f32 %v4543, 0.0
      %v4586 = vmax.f32 %v4548, 0.0
      %v4587 = vmax.f32 %v4551, 0.0
      %v4588 = vmax.f32 %v4556, 0.0
      %v4589 = vmax.f32 %v4559, 0.0
      %v4590 = vmax.f32 %v4564, 0.0
      %v4591 = vmax.f32 %v4567, 0.0
      %v4592 = vmax.f32 %v4572, 0.0
      %v4593 = vmax.f32 %v4575, 0.0
      %v4594 = vpack.c.bf16 %v4579, %v4578
      %v4595 = vpack.c.bf16 %v4581, %v4580
      %v4596 = vpack.c.bf16 %v4583, %v4582
      %v4597 = vpack.c.bf16 %v4585, %v4584
      %v4598 = vpack.c.bf16 %v4587, %v4586
      %v4599 = vpack.c.bf16 %v4589, %v4588
      %v4600 = vpack.c.bf16 %v4591, %v4590
      %v4601 = vpack.c.bf16 %v4593, %v4592
      %v4602 = vld [vmem:[%s10] sm:$0xf]
      %v4603 = vld [vmem:[%s10 + $0x4] sm:$0xf]
      %v4604 = vld [vmem:[%s10 + $0x8] sm:$0xf]
      %v4605 = vld [vmem:[%s10 + $0xc] sm:$0xf]
      %v4606 = vld [vmem:[%s10 + $0x10] sm:$0xf]
      %v4607 = vld [vmem:[%s10 + $0x14] sm:$0xf]
      %v4608 = vld [vmem:[%s10 + $0x18] sm:$0xf]
      %v4609 = vld [vmem:[%s10 + $0x1c] sm:$0xf]
      %v4610 = vld [vmem:[%s11 + $0x3] sm:$0x1]
      %v4611 = vlaneseq
      %v4612 = vshrl.u32 %v4611, 7
      %v4613 = vsub.s32 0, %v4612
      %v4614 = vrot.slane %v4610, %v4613
      %v4623 = vunpack.c.l.b16 %v4602
      %v4624 = vunpack.c.l.b16 %v4603
      %v4625 = vunpack.c.l.b16 %v4604
      %v4626 = vunpack.c.l.b16 %v4605
      %v4627 = vunpack.c.l.b16 %v4606
      %v4628 = vunpack.c.l.b16 %v4607
      %v4629 = vunpack.c.l.b16 %v4608
      %v4630 = vunpack.c.l.b16 %v4609
      %v4631 = vpack.c.b16 %v4624, %v4623
      %v4632 = vpack.c.b16 %v4626, %v4625
      %v4633 = vpack.c.b16 %v4628, %v4627
      %v4634 = vpack.c.b16 %v4630, %v4629
      %vm4639 = vcmask 523264
      %v4641 = vsel %vm4639, %v4594, 0
      %v4644 = vsel %vm4639, %v4595, 0
      %v4647 = vsel %vm4639, %v4596, 0
      %v4650 = vsel %vm4639, %v4597, 0
      %v4653 = vsel %vm4639, %v4598, 0
      %v4656 = vsel %vm4639, %v4599, 0
      %v4659 = vsel %vm4639, %v4600, 0
      %v4662 = vsel %vm4639, %v4601, 0
      %4664 = vmatprep.subr.bf16.mxu0 0
      %4665 = vmatpush1.bf16.msra.mxu0 %v4631
      %4666 = vmatprep.subr.bf16.mxu0 0
      %4667 = vmatpush1.bf16.msra.mxu0 %v4632
      %4668 = vmatprep.subr.bf16.mxu0 0
      %4669 = vmatpush1.bf16.msra.mxu0 %v4633
      %4670 = vmatprep.subr.bf16.mxu0 0
      %4671 = vmatpush1.bf16.msra.mxu0 %v4634
      %4672 = vmatprep.subr.bf16.mxu0 0
      %4673 = vmatpush1.bf16.msra.mxu0 0
      %4674 = vmatprep.subr.bf16.mxu0 0
      %4675 = vmatpush1.bf16.msra.mxu0 0
      %4676 = vmatprep.subr.bf16.mxu0 0
      %4677 = vmatpush1.bf16.msra.mxu0 0
      %4678 = vmatprep.subr.bf16.mxu0 0
      %4679 = vmatpush1.bf16.msra.mxu0 0
      %4680 = vmatprep.subr.bf16.mxu0 0
      %4681 = vmatpush1.bf16.msra.mxu0 0
      %4682 = vmatprep.subr.bf16.mxu0 0
      %4683 = vmatpush1.bf16.msra.mxu0 0
      %4684 = vmatprep.subr.bf16.mxu0 0
      %4685 = vmatpush1.bf16.msra.mxu0 0
      %4686 = vmatprep.subr.bf16.mxu0 0
      %4687 = vmatpush1.bf16.msra.mxu0 0
      %4688 = vmatprep.subr.bf16.mxu0 0
      %4689 = vmatpush1.bf16.msra.mxu0 0
      %4690 = vmatprep.subr.bf16.mxu0 0
      %4691 = vmatpush1.bf16.msra.mxu0 0
      %4692 = vmatprep.subr.bf16.mxu0 0
      %4693 = vmatpush1.bf16.msra.mxu0 0
      %4694 = vmatprep.subr.bf16.mxu0 0
      %4695 = vmatpush1.bf16.msra.mxu0 0
      %4696 = vmatprep.mubr.bf16.mxu0 0
      %4697 = vmatmul.mubr.bf16.gmra.mrb[0].mxu0 %v4641
      %v4698 = vpop.f32.mrb[0].mxu0
      %v4699 = vadd.f32 %v4614, %v4698
      %v4700 = vpop.f32.mrb[0].mxu0
      %v4701 = vpop.f32.mrb[0].mxu0
      %v4702 = vadd.f32 %v4614, %v4701
      %v4703 = vpop.f32.mrb[0].mxu0
      %4704 = vmatprep.mubr.bf16.mxu0 0
      %4705 = vmatmul.mubr.bf16.gmra.mrb[0].mxu0 %v4644
      %v4706 = vpop.f32.mrb[0].mxu0
      %v4707 = vadd.f32 %v4614, %v4706
      %v4708 = vpop.f32.mrb[0].mxu0
      %v4709 = vpop.f32.mrb[0].mxu0
      %v4710 = vadd.f32 %v4614, %v4709
      %v4711 = vpop.f32.mrb[0].mxu0
      %4712 = vmatprep.mubr.bf16.mxu0 0
      %4713 = vmatmul.mubr.bf16.gmra.mrb[0].mxu0 %v4647
      %v4714 = vpop.f32.mrb[0].mxu0
      %v4715 = vadd.f32 %v4614, %v4714
      %v4716 = vpop.f32.mrb[0].mxu0
      %v4717 = vpop.f32.mrb[0].mxu0
      %v4718 = vadd.f32 %v4614, %v4717
      %v4719 = vpop.f32.mrb[0].mxu0
      %4720 = vmatprep.mubr.bf16.mxu0 0
      %4721 = vmatmul.mubr.bf16.gmra.mrb[0].mxu0 %v4650
      %v4722 = vpop.f32.mrb[0].mxu0
      %v4723 = vadd.f32 %v4614, %v4722
      %v4724 = vpop.f32.mrb[0].mxu0
      %v4725 = vpop.f32.mrb[0].mxu0
      %v4726 = vadd.f32 %v4614, %v4725
      %v4727 = vpop.f32.mrb[0].mxu0
      %4728 = vmatprep.mubr.bf16.mxu0 0
      %4729 = vmatmul.mubr.bf16.gmra.mrb[0].mxu0 %v4653
      %v4730 = vpop.f32.mrb[0].mxu0
      %v4731 = vadd.f32 %v4614, %v4730
      %v4732 = vpop.f32.mrb[0].mxu0
      %v4733 = vpop.f32.mrb[0].mxu0
      %v4734 = vadd.f32 %v4614, %v4733
      %v4735 = vpop.f32.mrb[0].mxu0
      %4736 = vmatprep.mubr.bf16.mxu0 0
      %4737 = vmatmul.mubr.bf16.gmra.mrb[0].mxu0 %v4656
      %v4738 = vpop.f32.mrb[0].mxu0
      %v4739 = vadd.f32 %v4614, %v4738
      %v4740 = vpop.f32.mrb[0].mxu0
      %v4741 = vpop.f32.mrb[0].mxu0
      %v4742 = vadd.f32 %v4614, %v4741
      %v4743 = vpop.f32.mrb[0].mxu0
      %4744 = vmatprep.mubr.bf16.mxu0 0
      %4745 = vmatmul.mubr.bf16.gmra.mrb[0].mxu0 %v4659
      %v4746 = vpop.f32.mrb[0].mxu0
      %v4747 = vadd.f32 %v4614, %v4746
      %v4748 = vpop.f32.mrb[0].mxu0
      %v4749 = vpop.f32.mrb[0].mxu0
      %v4750 = vadd.f32 %v4614, %v4749
      %v4751 = vpop.f32.mrb[0].mxu0
      %4752 = vmatprep.mubr.bf16.mxu0 0
      %4753 = vmatmul.mubr.bf16.gmra.mrb[0].mxu0 %v4662
      %v4754 = vpop.f32.mrb[0].mxu0
      %v4755 = vadd.f32 %v4614, %v4754
      %v4756 = vpop.f32.mrb[0].mxu0
      %v4757 = vpop.f32.mrb[0].mxu0
      %v4758 = vadd.f32 %v4614, %v4757
      %v4759 = vpop.f32.mrb[0].mxu0
      %4760 = vdwg.mxu0
      %v4761 = vadd.f32 %v4410, %v4699
      %v4762 = vadd.f32 %v4411, %v4702
      %v4763 = vadd.f32 %v4412, %v4707
      %v4764 = vadd.f32 %v4413, %v4710
      %v4765 = vadd.f32 %v4414, %v4715
      %v4766 = vadd.f32 %v4415, %v4718
      %v4767 = vadd.f32 %v4416, %v4723
      %v4768 = vadd.f32 %v4417, %v4726
      %v4769 = vadd.f32 %v4418, %v4731
      %v4770 = vadd.f32 %v4419, %v4734
      %v4771 = vadd.f32 %v4420, %v4739
      %v4772 = vadd.f32 %v4421, %v4742
      %v4773 = vadd.f32 %v4422, %v4747
      %v4774 = vadd.f32 %v4423, %v4750
      %v4775 = vadd.f32 %v4424, %v4755
      %v4776 = vadd.f32 %v4425, %v4758
      %v4777 = vsel %vm626, %v4761, 0.0
      %4778 = vadd.xlane.f32.xlu0 %v4777
      %v4779 = vpop.xlane.xlu0 %4778
      %v4780 = vsel %vm626, %v4762, 0.0
      %4781 = vadd.xlane.f32.xlu0 %v4780
      %v4782 = vpop.xlane.xlu0 %4781
      %v4783 = vsel %vm626, %v4763, 0.0
      %4784 = vadd.xlane.f32.xlu0 %v4783
      %v4785 = vpop.xlane.xlu0 %4784
      %v4786 = vsel %vm626, %v4764, 0.0
      %4787 = vadd.xlane.f32.xlu0 %v4786
      %v4788 = vpop.xlane.xlu0 %4787
      %v4789 = vsel %vm626, %v4765, 0.0
      %4790 = vadd.xlane.f32.xlu0 %v4789
      %v4791 = vpop.xlane.xlu0 %4790
      %v4792 = vsel %vm626, %v4766, 0.0
      %4793 = vadd.xlane.f32.xlu0 %v4792
      %v4794 = vpop.xlane.xlu0 %4793
      %v4795 = vsel %vm626, %v4767, 0.0
      %4796 = vadd.xlane.f32.xlu0 %v4795
      %v4797 = vpop.xlane.xlu0 %4796
      %v4798 = vsel %vm626, %v4768, 0.0
      %4799 = vadd.xlane.f32.xlu0 %v4798
      %v4800 = vpop.xlane.xlu0 %4799
      %v4801 = vsel %vm626, %v4769, 0.0
      %4802 = vadd.xlane.f32.xlu0 %v4801
      %v4803 = vpop.xlane.xlu0 %4802
      %v4804 = vsel %vm626, %v4770, 0.0
      %4805 = vadd.xlane.f32.xlu0 %v4804
      %v4806 = vpop.xlane.xlu0 %4805
      %v4807 = vsel %vm626, %v4771, 0.0
      %4808 = vadd.xlane.f32.xlu0 %v4807
      %v4809 = vpop.xlane.xlu0 %4808
      %v4810 = vsel %vm626, %v4772, 0.0
      %4811 = vadd.xlane.f32.xlu0 %v4810
      %v4812 = vpop.xlane.xlu0 %4811
      %v4813 = vsel %vm626, %v4773, 0.0
      %4814 = vadd.xlane.f32.xlu0 %v4813
      %v4815 = vpop.xlane.xlu0 %4814
      %v4816 = vsel %vm626, %v4774, 0.0
      %4817 = vadd.xlane.f32.xlu0 %v4816
      %v4818 = vpop.xlane.xlu0 %4817
      %v4819 = vsel %vm626, %v4775, 0.0
      %4820 = vadd.xlane.f32.xlu0 %v4819
      %v4821 = vpop.xlane.xlu0 %4820
      %v4822 = vsel %vm626, %v4776, 0.0
      %4823 = vadd.xlane.f32.xlu0 %v4822
      %v4824 = vpop.xlane.xlu0 %4823
      %v4825 = vmul.f32 %v4779, %v4223
      %v4826 = vmul.f32 %v4782, %v4223
      %v4827 = vmul.f32 %v4785, %v4223
      %v4828 = vmul.f32 %v4788, %v4223
      %v4829 = vmul.f32 %v4791, %v4223
      %v4830 = vmul.f32 %v4794, %v4223
      %v4831 = vmul.f32 %v4797, %v4223
      %v4832 = vmul.f32 %v4800, %v4223
      %v4833 = vmul.f32 %v4803, %v4223
      %v4834 = vmul.f32 %v4806, %v4223
      %v4835 = vmul.f32 %v4809, %v4223
      %v4836 = vmul.f32 %v4812, %v4223
      %v4837 = vmul.f32 %v4815, %v4223
      %v4838 = vmul.f32 %v4818, %v4223
      %v4839 = vmul.f32 %v4821, %v4223
      %v4840 = vmul.f32 %v4824, %v4223
      %v4841 = vsub.f32 %v4761, %v4825
      %v4842 = vsub.f32 %v4762, %v4826
      %v4843 = vsub.f32 %v4763, %v4827
      %v4844 = vsub.f32 %v4764, %v4828
      %v4845 = vsub.f32 %v4765, %v4829
      %v4846 = vsub.f32 %v4766, %v4830
      %v4847 = vsub.f32 %v4767, %v4831
      %v4848 = vsub.f32 %v4768, %v4832
      %v4849 = vsub.f32 %v4769, %v4833
      %v4850 = vsub.f32 %v4770, %v4834
      %v4851 = vsub.f32 %v4771, %v4835
      %v4852 = vsub.f32 %v4772, %v4836
      %v4853 = vsub.f32 %v4773, %v4837
      %v4854 = vsub.f32 %v4774, %v4838
      %v4855 = vsub.f32 %v4775, %v4839
      %v4856 = vsub.f32 %v4776, %v4840
      %v4857 = vmul.f32 %v4841, %v4841
      %v4858 = vmul.f32 %v4842, %v4842
      %v4859 = vmul.f32 %v4843, %v4843
      %v4860 = vmul.f32 %v4844, %v4844
      %v4861 = vmul.f32 %v4845, %v4845
      %v4862 = vmul.f32 %v4846, %v4846
      %v4863 = vmul.f32 %v4847, %v4847
      %v4864 = vmul.f32 %v4848, %v4848
      %v4865 = vmul.f32 %v4849, %v4849
      %v4866 = vmul.f32 %v4850, %v4850
      %v4867 = vmul.f32 %v4851, %v4851
      %v4868 = vmul.f32 %v4852, %v4852
      %v4869 = vmul.f32 %v4853, %v4853
      %v4870 = vmul.f32 %v4854, %v4854
      %v4871 = vmul.f32 %v4855, %v4855
      %v4872 = vmul.f32 %v4856, %v4856
      %v4873 = vsel %vm626, %v4857, 0.0
      %4874 = vadd.xlane.f32.xlu0 %v4873
      %v4875 = vpop.xlane.xlu0 %4874
      %v4876 = vsel %vm626, %v4858, 0.0
      %4877 = vadd.xlane.f32.xlu0 %v4876
      %v4878 = vpop.xlane.xlu0 %4877
      %v4879 = vsel %vm626, %v4859, 0.0
      %4880 = vadd.xlane.f32.xlu0 %v4879
      %v4881 = vpop.xlane.xlu0 %4880
      %v4882 = vsel %vm626, %v4860, 0.0
      %4883 = vadd.xlane.f32.xlu0 %v4882
      %v4884 = vpop.xlane.xlu0 %4883
      %v4885 = vsel %vm626, %v4861, 0.0
      %4886 = vadd.xlane.f32.xlu0 %v4885
      %v4887 = vpop.xlane.xlu0 %4886
      %v4888 = vsel %vm626, %v4862, 0.0
      %4889 = vadd.xlane.f32.xlu0 %v4888
      %v4890 = vpop.xlane.xlu0 %4889
      %v4891 = vsel %vm626, %v4863, 0.0
      %4892 = vadd.xlane.f32.xlu0 %v4891
      %v4893 = vpop.xlane.xlu0 %4892
      %v4894 = vsel %vm626, %v4864, 0.0
      %4895 = vadd.xlane.f32.xlu0 %v4894
      %v4896 = vpop.xlane.xlu0 %4895
      %v4897 = vsel %vm626, %v4865, 0.0
      %4898 = vadd.xlane.f32.xlu0 %v4897
      %v4899 = vpop.xlane.xlu0 %4898
      %v4900 = vsel %vm626, %v4866, 0.0
      %4901 = vadd.xlane.f32.xlu0 %v4900
      %v4902 = vpop.xlane.xlu0 %4901
      %v4903 = vsel %vm626, %v4867, 0.0
      %4904 = vadd.xlane.f32.xlu0 %v4903
      %v4905 = vpop.xlane.xlu0 %4904
      %v4906 = vsel %vm626, %v4868, 0.0
      %4907 = vadd.xlane.f32.xlu0 %v4906
      %v4908 = vpop.xlane.xlu0 %4907
      %v4909 = vsel %vm626, %v4869, 0.0
      %4910 = vadd.xlane.f32.xlu0 %v4909
      %v4911 = vpop.xlane.xlu0 %4910
      %v4912 = vsel %vm626, %v4870, 0.0
      %4913 = vadd.xlane.f32.xlu0 %v4912
      %v4914 = vpop.xlane.xlu0 %4913
      %v4915 = vsel %vm626, %v4871, 0.0
      %4916 = vadd.xlane.f32.xlu0 %v4915
      %v4917 = vpop.xlane.xlu0 %4916
      %v4918 = vsel %vm626, %v4872, 0.0
      %4919 = vadd.xlane.f32.xlu0 %v4918
      %v4920 = vpop.xlane.xlu0 %4919
      %v4921 = vmul.f32 %v4875, %v4223
      %v4922 = vmul.f32 %v4878, %v4223
      %v4923 = vmul.f32 %v4881, %v4223
      %v4924 = vmul.f32 %v4884, %v4223
      %v4925 = vmul.f32 %v4887, %v4223
      %v4926 = vmul.f32 %v4890, %v4223
      %v4927 = vmul.f32 %v4893, %v4223
      %v4928 = vmul.f32 %v4896, %v4223
      %v4929 = vmul.f32 %v4899, %v4223
      %v4930 = vmul.f32 %v4902, %v4223
      %v4931 = vmul.f32 %v4905, %v4223
      %v4932 = vmul.f32 %v4908, %v4223
      %v4933 = vmul.f32 %v4911, %v4223
      %v4934 = vmul.f32 %v4914, %v4223
      %v4935 = vmul.f32 %v4917, %v4223
      %v4936 = vmul.f32 %v4920, %v4223
      %v4937 = vadd.f32 %v4921, 1e-05
      %v4938 = vadd.f32 %v4922, 1e-05
      %v4939 = vadd.f32 %v4923, 1e-05
      %v4940 = vadd.f32 %v4924, 1e-05
      %v4941 = vadd.f32 %v4925, 1e-05
      %v4942 = vadd.f32 %v4926, 1e-05
      %v4943 = vadd.f32 %v4927, 1e-05
      %v4944 = vadd.f32 %v4928, 1e-05
      %v4945 = vadd.f32 %v4929, 1e-05
      %v4946 = vadd.f32 %v4930, 1e-05
      %v4947 = vadd.f32 %v4931, 1e-05
      %v4948 = vadd.f32 %v4932, 1e-05
      %v4949 = vadd.f32 %v4933, 1e-05
      %v4950 = vadd.f32 %v4934, 1e-05
      %v4951 = vadd.f32 %v4935, 1e-05
      %v4952 = vadd.f32 %v4936, 1e-05
      %v4953 = vrsqrt.pop %v4937
      %v4954 = vrsqrt.pop %v4938
      %v4955 = vrsqrt.pop %v4939
      %v4956 = vrsqrt.pop %v4940
      %v4957 = vrsqrt.pop %v4941
      %v4958 = vrsqrt.pop %v4942
      %v4959 = vrsqrt.pop %v4943
      %v4960 = vrsqrt.pop %v4944
      %v4961 = vrsqrt.pop %v4945
      %v4962 = vrsqrt.pop %v4946
      %v4963 = vrsqrt.pop %v4947
      %v4964 = vrsqrt.pop %v4948
      %v4965 = vrsqrt.pop %v4949
      %v4966 = vrsqrt.pop %v4950
      %v4967 = vrsqrt.pop %v4951
      %v4968 = vrsqrt.pop %v4952
      %v4969 = vmul.f32 %v4841, %v4953
      %v4970 = vmul.f32 %v4842, %v4954
      %v4971 = vmul.f32 %v4843, %v4955
      %v4972 = vmul.f32 %v4844, %v4956
      %v4973 = vmul.f32 %v4845, %v4957
      %v4974 = vmul.f32 %v4846, %v4958
      %v4975 = vmul.f32 %v4847, %v4959
      %v4976 = vmul.f32 %v4848, %v4960
      %v4977 = vmul.f32 %v4849, %v4961
      %v4978 = vmul.f32 %v4850, %v4962
      %v4979 = vmul.f32 %v4851, %v4963
      %v4980 = vmul.f32 %v4852, %v4964
      %v4981 = vmul.f32 %v4853, %v4965
      %v4982 = vmul.f32 %v4854, %v4966
      %v4983 = vmul.f32 %v4855, %v4967
      %v4984 = vmul.f32 %v4856, %v4968
      %v4985 = vld [vmem:[%s11 + $0x4] sm:$0x1]
      %v4986 = vlaneseq
      %v4987 = vshrl.u32 %v4986, 7
      %v4988 = vsub.s32 0, %v4987
      %v4989 = vrot.slane %v4985, %v4988
      %v4990 = vmul.f32 %v4969, %v4989
      %v4991 = vmul.f32 %v4970, %v4989
      %v4992 = vmul.f32 %v4971, %v4989
      %v4993 = vmul.f32 %v4972, %v4989
      %v4994 = vmul.f32 %v4973, %v4989
      %v4995 = vmul.f32 %v4974, %v4989
      %v4996 = vmul.f32 %v4975, %v4989
      %v4997 = vmul.f32 %v4976, %v4989
      %v4998 = vmul.f32 %v4977, %v4989
      %v4999 = vmul.f32 %v4978, %v4989
      %v5000 = vmul.f32 %v4979, %v4989
      %v5001 = vmul.f32 %v4980, %v4989
      %v5002 = vmul.f32 %v4981, %v4989
      %v5003 = vmul.f32 %v4982, %v4989
      %v5004 = vmul.f32 %v4983, %v4989
      %v5005 = vmul.f32 %v4984, %v4989
      %v5006 = vld [vmem:[%s11 + $0x5] sm:$0x1]
      %v5007 = vlaneseq
      %v5008 = vshrl.u32 %v5007, 7
      %v5009 = vsub.s32 0, %v5008
      %v5010 = vrot.slane %v5006, %v5009
      %v5011 = vadd.f32 %v4990, %v5010
      %v5012 = vadd.f32 %v4991, %v5010
      %v5013 = vadd.f32 %v4992, %v5010
      %v5014 = vadd.f32 %v4993, %v5010
      %v5015 = vadd.f32 %v4994, %v5010
      %v5016 = vadd.f32 %v4995, %v5010
      %v5017 = vadd.f32 %v4996, %v5010
      %v5018 = vadd.f32 %v4997, %v5010
      %v5019 = vadd.f32 %v4998, %v5010
      %v5020 = vadd.f32 %v4999, %v5010
      %v5021 = vadd.f32 %v5000, %v5010
      %v5022 = vadd.f32 %v5001, %v5010
      %v5023 = vadd.f32 %v5002, %v5010
      %v5024 = vadd.f32 %v5003, %v5010
      %v5025 = vadd.f32 %v5004, %v5010
      %v5026 = vadd.f32 %v5005, %v5010
      %5027 = vst.msk [vmem:[%s544] sm:$0xff] %vm626, %v5011
      %5028 = vst.msk [vmem:[%s544 + $0x8] sm:$0xff] %vm626, %v5012
      %5029 = vst.msk [vmem:[%s544 + $0x10] sm:$0xff] %vm626, %v5013
      %5030 = vst.msk [vmem:[%s544 + $0x18] sm:$0xff] %vm626, %v5014
      %5031 = vst.msk [vmem:[%s544 + $0x20] sm:$0xff] %vm626, %v5015
      %5032 = vst.msk [vmem:[%s544 + $0x28] sm:$0xff] %vm626, %v5016
      %5033 = vst.msk [vmem:[%s544 + $0x30] sm:$0xff] %vm626, %v5017
      %5034 = vst.msk [vmem:[%s544 + $0x38] sm:$0xff] %vm626, %v5018
      %5035 = vst.msk [vmem:[%s544 + $0x40] sm:$0xff] %vm626, %v5019
      %5036 = vst.msk [vmem:[%s544 + $0x48] sm:$0xff] %vm626, %v5020
      %5037 = vst.msk [vmem:[%s544 + $0x50] sm:$0xff] %vm626, %v5021
      %5038 = vst.msk [vmem:[%s544 + $0x58] sm:$0xff] %vm626, %v5022
      %5039 = vst.msk [vmem:[%s544 + $0x60] sm:$0xff] %vm626, %v5023
      %5040 = vst.msk [vmem:[%s544 + $0x68] sm:$0xff] %vm626, %v5024
      %5041 = vst.msk [vmem:[%s544 + $0x70] sm:$0xff] %vm626, %v5025
      %5042 = vst.msk [vmem:[%s544 + $0x78] sm:$0xff] %vm626, %v5026
      %s5043 = smul.u32 16, %s28
      %p5044 = scmp.lt.s32.totalorder %s27, 1
      %s5045 = scalar_select %p5044, %s27, 1
      %p5046 = scmp.lt.s32.totalorder %s5043, 31
      %s5047 = scalar_select %p5046, %s5043, 31
      %s5048 = smul.addr %s5045, 32
      %s5049 = sadd.s32 %s5047, %s5048
      %s5050 = smul.addr %s5049, 8
      %s5051 = scalar_lea.vmem %s12, %s5050
      // Predicated region
      $region69: #{tpu_custom_call.1} parent=67 // pred_check
        %p5052 = pneg %p336
      $region70: #{tpu_custom_call.1} parent=67 // pred_check_branch
        %5054 = sbr.rel (%p5052) target = $region72
      $region71: #{tpu_custom_call.1} parent=67 // pred_region
        %s5055 = smul.u32 16, %s28
      $region72: #{tpu_custom_call.1} parent=67 // pred_fallthru
        _
    $region68: #{tpu_custom_call.1} parent=5 // pred_fallthru
      _
    %p5056 = scmp.le.s32.totalorder 2, %s18
    // Predicated region
    $region73: #{tpu_custom_call.1} parent=5 // pred_check
      %p5057 = pneg %p5056
    $region74: #{tpu_custom_call.1} parent=5 // pred_check_branch
      %5059 = sbr.rel (%p5057) target = $region76
    $region75: #{tpu_custom_call.1} parent=5 // pred_region
      %s5060 = ssub.s32 %s18, 2
      // Predicated region
      $region77: #{tpu_custom_call.1} parent=75 // pred_check
        %p5061 = pneg %p342
      $region78: #{tpu_custom_call.1} parent=75 // pred_check_branch
        %5063 = sbr.rel (%p5061) target = $region80
      $region79: #{tpu_custom_call.1} parent=75 // pred_region
        %s5064 = smul.u32 16, %s30
        %p5065 = scmp.lt.s32.totalorder %s29, 1
        %s5066 = scalar_select %p5065, %s29, 1
        %p5067 = scmp.lt.s32.totalorder %s5064, 31
        %s5068 = scalar_select %p5067, %s5064, 31
        %s5069 = smul.addr %s5066, 32
        %s5070 = sadd.s32 %s5068, %s5069
        %s5071 = smul.addr %s5070, 8
        %s5072 = scalar_lea.vmem %s12, %s5071
      $region80: #{tpu_custom_call.1} parent=75 // pred_fallthru
        _
    $region76: #{tpu_custom_call.1} parent=5 // pred_fallthru
      _
  $region6: #{tpu_custom_call.1} parent=0 // loop_footer
    %s22 = sadd.s32 1, %s18
  $region7: #{tpu_custom_call.1} parent=0 // loop_footer_branch
    %17 = sbr.rel target = $region3
  $region8: #{tpu_custom_call.1} parent=0 // loop_exit
    _

</llo_original>
